<compile_context>
chip_gen: v6e
topology: v6e:2x2x1
jax: 0.10.0
libtpu: 0.0.40
codegen_flags: <defaults>
</compile_context>

<pallas_src>
import functools
import math

import jax
import jax.numpy as jnp
from jax.experimental import pallas as pl
from jax.experimental.pallas import tpu as pltpu  # noqa: F401  (TPU backend)

D_MODEL = 32
N_HEAD = 4
D_K = 8
D_V = 8
D_FF = 64
LN_EPS = 1e-5          # torch nn.LayerNorm default
NEG_INF = -1e30


# ----------------------------- fused kernel -------------------------------- #

def _fused_layer_kernel(x_ref, addmask_ref, pmask_ref,
                        wqkv_ref, bqkv_ref, wo_ref, bo_ref, g1_ref, be1_ref,
                        w1_ref, bf1_ref, w2_ref, bf2_ref, g2_ref, be2_ref,
                        o_ref, *, n_head, d_k, d_v):
    """Self-attention + LN + pad-zero + FFN + LN for a whole (B, N, D) batch."""
    B, N, D = x_ref.shape
    x2d = x_ref[...].reshape(B * N, D)          # (B*N, D)
    addmask = addmask_ref[...]                  # (B, 1, N)  additive key mask (0 / -1e30)
    pmask = pmask_ref[...]                      # (B*N, 1)   1.0 = padded query row

    # ---- fused Q|K|V projection: one matmul instead of three ----
    qkv = jnp.dot(x2d, wqkv_ref[...], preferred_element_type=jnp.float32) + bqkv_ref[...]
    qkv = qkv.reshape(B, N, 3 * n_head * d_k)   # (B, N, 3*H*dk)
    hd = n_head * d_k
    scale = 1.0 / math.sqrt(d_k)

    # ---- attention: static head loop (H=4), batched over B inside each op ----
    ctx_heads = []
    for h in range(n_head):
        qh = qkv[:, :, h * d_k:(h + 1) * d_k]                    # (B, N, dk)
        kh = qkv[:, :, hd + h * d_k:hd + (h + 1) * d_k]          # (B, N, dk)
        vh = qkv[:, :, 2 * hd + h * d_v:2 * hd + (h + 1) * d_v]  # (B, N, dv)
        s = jnp.einsum('bqd,bkd->bqk', qh, kh,
                       preferred_element_type=jnp.float32) * scale   # (B, N, N)
        s = s + addmask                                              # additive key mask
        s = s - jnp.max(s, axis=-1, keepdims=True)
        p = jnp.exp(s)
        p = p * pl.reciprocal(jnp.sum(p, axis=-1, keepdims=True), approx=True)
        ctx_heads.append(jnp.einsum('bqk,bkd->bqd', p, vh,
                                    preferred_element_type=jnp.float32))
    ctx = jnp.concatenate(ctx_heads, axis=-1).reshape(B * N, n_head * d_v)

    # ---- output projection + residual + LayerNorm (one-pass variance) ----
    attn = jnp.dot(ctx, wo_ref[...], preferred_element_type=jnp.float32) + bo_ref[...]
    res = x2d + attn
    mean = jnp.mean(res, axis=-1, keepdims=True)
    var = jnp.mean(res * res, axis=-1, keepdims=True) - mean * mean
    y = (res - mean) * jax.lax.rsqrt(var + LN_EPS) * g1_ref[...] + be1_ref[...]
    # zero-fill padded query rows (as in torch MultiHeadAttention)
    y = jnp.where(pmask > 0.5, 0.0, y)

    # ---- position-wise FFN + residual + LayerNorm ----
    hidden = jnp.maximum(
        jnp.dot(y, w1_ref[...], preferred_element_type=jnp.float32) + bf1_ref[...], 0.0)
    ff = jnp.dot(hidden, w2_ref[...], preferred_element_type=jnp.float32) + bf2_ref[...]
    res2 = y + ff
    mean2 = jnp.mean(res2, axis=-1, keepdims=True)
    var2 = jnp.mean(res2 * res2, axis=-1, keepdims=True) - mean2 * mean2
    o_ref[...] = ((res2 - mean2) * jax.lax.rsqrt(var2 + LN_EPS)
                  * g2_ref[...] + be2_ref[...])


# ----------------------------- wrapper -------------------------------------- #

def fused_block_pallas(mha_params, pff_params, x, pad_bool):
    """One pallas_call: self-MHA + LN + pad-zero + FFN + LN, whole batch.

    mha_params = (wqkv, bqkv, wo, bo, gamma1, beta1)
    pff_params = (w1, b1, w2, b2, gamma2, beta2)
    """
    B, N, D = x.shape
    addmask = jnp.where(pad_bool[:, None, :], NEG_INF, 0.0).astype(jnp.float32)  # (B,1,N)
    pmask = pad_bool.astype(jnp.float32).reshape(B * N, 1)                        # (B*N,1)
    kern = functools.partial(_fused_layer_kernel, n_head=N_HEAD, d_k=D_K, d_v=D_V)
    # No grid: a single kernel invocation with every operand resident in VMEM
    # (total working set is a few KB on every TPU generation).
    out2d = pl.pallas_call(
        kern,
        out_shape=jax.ShapeDtypeStruct((B * N, D), jnp.float32),
    )(x, addmask, pmask, *mha_params, *pff_params)
    return out2d.reshape(B, N, D)


# ------------------------ parameter construction --------------------------- #

def init_mha_params(key):
    ks = jax.random.split(key, 4)
    s = 0.05
    wq = s * jax.random.normal(ks[0], (D_MODEL, N_HEAD * D_K), jnp.float32)
    wk = s * jax.random.normal(ks[1], (D_MODEL, N_HEAD * D_K), jnp.float32)
    wv = s * jax.random.normal(ks[2], (D_MODEL, N_HEAD * D_V), jnp.float32)
    wo = s * jax.random.normal(ks[3], (N_HEAD * D_V, D_MODEL), jnp.float32)
    wqkv = jnp.concatenate([wq, wk, wv], axis=1)               # (D, 3*H*dk)
    bqkv = jnp.zeros((1, 3 * N_HEAD * D_K), jnp.float32)
    bo = jnp.zeros((1, D_MODEL), jnp.float32)
    gamma = jnp.ones((1, D_MODEL), jnp.float32)
    beta = jnp.zeros((1, D_MODEL), jnp.float32)
    return (wqkv, bqkv, wo, bo, gamma, beta)


def init_pff_params(key):
    ks = jax.random.split(key, 2)
    s = 0.05
    w1 = s * jax.random.normal(ks[0], (D_MODEL, D_FF), jnp.float32)
    w2 = s * jax.random.normal(ks[1], (D_FF, D_MODEL), jnp.float32)
    b1 = jnp.zeros((1, D_FF), jnp.float32)
    b2 = jnp.zeros((1, D_MODEL), jnp.float32)
    gamma = jnp.ones((1, D_MODEL), jnp.float32)
    beta = jnp.zeros((1, D_MODEL), jnp.float32)
    return (w1, b1, w2, b2, gamma, beta)


# -------------------------- full layer forward ------------------------------ #

@jax.jit
def cross_modality_encoder_layer(params, vision, v_pad, language, l_pad):
    """Forward pass of CrossModalityEncoderLayer.

    The torch forward computes two cross-attention results and immediately
    overwrites them with the self-attention results; that dead work is omitted
    here (the returned tensors are identical to the torch module's outputs).
    """
    vision_out = fused_block_pallas(params["v_mha"], params["v_pff"], vision, v_pad)
    language_out = fused_block_pallas(params["l_mha"], params["l_pff"], language, l_pad)
    return vision_out, language_out


# ----------------------------- reference ------------------------------------ #

def _mha_ref(p, q, k, v, pad, amask):
    wqkv, bqkv, wo, bo, g, be = p
    hd = N_HEAD * D_K
    B, Nq, _ = q.shape
    Nk = k.shape[1]
    qp = (q @ wqkv[:, :hd] + bqkv[:, :hd]).reshape(B, Nq, N_HEAD, D_K).transpose(0, 2, 1, 3)
    kp = (k @ wqkv[:, hd:2 * hd] + bqkv[:, hd:2 * hd]).reshape(B, Nk, N_HEAD, D_K).transpose(0, 2, 1, 3)
    vp = (v @ wqkv[:, 2 * hd:] + bqkv[:, 2 * hd:]).reshape(B, Nk, N_HEAD, D_V).transpose(0, 2, 1, 3)
    att = jnp.einsum("bhqd,bhkd->bhqk", qp, kp) / math.sqrt(D_K)
    att = jnp.where(amask[:, None, :, :] > 0.5, NEG_INF, att)
    att = jax.nn.softmax(att, axis=-1)
    out = jnp.einsum("bhqk,bhkd->bhqd", att, vp).transpose(0, 2, 1, 3).reshape(B, Nq, -1)
    out = out @ wo + bo
    res = q + out
    mean = res.mean(-1, keepdims=True)
    var = ((res - mean) ** 2).mean(-1, keepdims=True)
    normed = (res - mean) * jax.lax.rsqrt(var + LN_EPS) * g + be
    return jnp.where(pad > 0.5, 0.0, normed)


def _pff_ref(p, x):
    w1, b1, w2, b2, g, be = p
    y = jnp.maximum(x @ w1 + b1, 0.0) @ w2 + b2
    res = x + y
    mean = res.mean(-1, keepdims=True)
    var = ((res - mean) ** 2).mean(-1, keepdims=True)
    return (res - mean) * jax.lax.rsqrt(var + LN_EPS) * g + be


def _layer_ref(params, vision, v_pad, language, l_pad):
    v_pad_m = v_pad[:, :, None].astype(jnp.float32)
    l_pad_m = l_pad[:, :, None].astype(jnp.float32)
    v_attn_m = v_pad[:, None, :].astype(jnp.float32)
    l_attn_m = l_pad[:, None, :].astype(jnp.float32)
    va = _mha_ref(params["v_mha"], vision, vision, vision, v_pad_m, v_attn_m)
    la = _mha_ref(params["l_mha"], language, language, language, l_pad_m, l_attn_m)
    return _pff_ref(params["v_pff"], va), _pff_ref(params["l_pff"], la)


# -------------------------------- main -------------------------------------- #

if __name__ == "__main__":
    root = jax.random.PRNGKey(0)
    k_in_v, k_in_l, k1, k2, k3, k4, k5, k6 = jax.random.split(root, 8)

    B, Nv, Nl = 2, 16, 8
    vision = jax.random.normal(k_in_v, (B, Nv, D_MODEL), jnp.float32)
    language = jax.random.normal(k_in_l, (B, Nl, D_MODEL), jnp.float32)

    # boolean padding masks: True = padded position
    v_pad = jnp.zeros((B, Nv), jnp.bool_).at[1, 12:].set(True)
    l_pad = jnp.zeros((B, Nl), jnp.bool_).at[1, 6:].set(True)

    params = {
        "vl_mha": init_mha_params(k1),   # vision_language_mhattn (result overwritten in torch forward)
        "lv_mha": init_mha_params(k2),   # language_vision_mhattn (never called in torch forward)
        "v_mha": init_mha_params(k3),    # vision_mhattn
        "l_mha": init_mha_params(k4),    # language_mhattn
        "v_pff": init_pff_params(k5),
        "l_pff": init_pff_params(k6),
    }

    v_out, l_out = cross_modality_encoder_layer(params, vision, v_pad, language, l_pad)
    v_out = jax.block_until_ready(v_out)
    l_out = jax.block_until_ready(l_out)

    v_ref, l_ref = _layer_ref(params, vision, v_pad, language, l_pad)
    # tolerance allows for approx-EUP softmax reciprocal + one-pass LN variance
    assert jnp.allclose(v_out, v_ref, rtol=2e-3, atol=2e-3), "vision output mismatch"
    assert jnp.allclose(l_out, l_ref, rtol=2e-3, atol=2e-3), "language output mismatch"

    print("KERNEL_OK")
</pallas_src>

<mosaic_0001>
module attributes {stable_mosaic.version = 11 : i64} {
  func.func @_fused_layer_kernel(%arg0: memref<2x16x32xf32, #tpu.memory_space<vmem>>, %arg1: memref<2x1x16xf32, #tpu.memory_space<vmem>>, %arg2: memref<32x1xf32, #tpu.memory_space<vmem>>, %arg3: memref<32x96xf32, #tpu.memory_space<vmem>>, %arg4: memref<1x96xf32, #tpu.memory_space<vmem>>, %arg5: memref<32x32xf32, #tpu.memory_space<vmem>>, %arg6: memref<1x32xf32, #tpu.memory_space<vmem>>, %arg7: memref<1x32xf32, #tpu.memory_space<vmem>>, %arg8: memref<1x32xf32, #tpu.memory_space<vmem>>, %arg9: memref<32x64xf32, #tpu.memory_space<vmem>>, %arg10: memref<1x64xf32, #tpu.memory_space<vmem>>, %arg11: memref<64x32xf32, #tpu.memory_space<vmem>>, %arg12: memref<1x32xf32, #tpu.memory_space<vmem>>, %arg13: memref<1x32xf32, #tpu.memory_space<vmem>>, %arg14: memref<1x32xf32, #tpu.memory_space<vmem>>, %arg15: memref<32x32xf32, #tpu.memory_space<vmem>>) attributes {dimension_semantics = [], scalar_prefetch = 0 : i64, scratch_operands = 0 : i64, tpu.core_type = #tpu.core_type<tc>} {
    %c0 = arith.constant 0 : index
    %c0_0 = arith.constant 0 : index
    %c0_1 = arith.constant 0 : index
    %0 = vector.load %arg0[%c0, %c0_0, %c0_1] : memref<2x16x32xf32, #tpu.memory_space<vmem>>, vector<2x16x32xf32>
    %1 = vector.shape_cast %0 : vector<2x16x32xf32> to vector<32x32xf32>
    %c0_2 = arith.constant 0 : index
    %c0_3 = arith.constant 0 : index
    %c0_4 = arith.constant 0 : index
    %2 = vector.load %arg1[%c0_2, %c0_3, %c0_4] : memref<2x1x16xf32, #tpu.memory_space<vmem>>, vector<2x1x16xf32>
    %c0_5 = arith.constant 0 : index
    %c0_6 = arith.constant 0 : index
    %3 = vector.load %arg2[%c0_5, %c0_6] : memref<32x1xf32, #tpu.memory_space<vmem>>, vector<32x1xf32>
    %c0_7 = arith.constant 0 : index
    %c0_8 = arith.constant 0 : index
    %4 = vector.load %arg3[%c0_7, %c0_8] : memref<32x96xf32, #tpu.memory_space<vmem>>, vector<32x96xf32>
    %cst = arith.constant dense<0.000000e+00> : vector<32x96xf32>
    %5 = tpu.matmul %1, %4, %cst {dimension_numbers = #tpu.dot_dimension_numbers<[1], [0], [0], [1], [0, 0, 1, 1], [], []>} : vector<32x32xf32>, vector<32x96xf32>, vector<32x96xf32> -> vector<32x96xf32>
    %c0_9 = arith.constant 0 : index
    %c0_10 = arith.constant 0 : index
    %6 = vector.load %arg4[%c0_9, %c0_10] : memref<1x96xf32, #tpu.memory_space<vmem>>, vector<1x96xf32>
    %7 = vector.broadcast %6 : vector<1x96xf32> to vector<32x96xf32>
    %8 = arith.addf %5, %7 : vector<32x96xf32>
    %9 = vector.shape_cast %8 : vector<32x96xf32> to vector<2x16x96xf32>
    %10 = vector.extract_strided_slice %9 {offsets = [0, 0, 0], sizes = [2, 16, 8], strides = [1, 1, 1]} : vector<2x16x96xf32> to vector<2x16x8xf32>
    %11 = vector.extract_strided_slice %9 {offsets = [0, 0, 32], sizes = [2, 16, 8], strides = [1, 1, 1]} : vector<2x16x96xf32> to vector<2x16x8xf32>
    %12 = vector.extract_strided_slice %9 {offsets = [0, 0, 64], sizes = [2, 16, 8], strides = [1, 1, 1]} : vector<2x16x96xf32> to vector<2x16x8xf32>
    "tpu.trace_start"() <{level = 10 : i32, message = "bqd,bkd->bqk"}> : () -> ()
    %cst_11 = arith.constant dense<0.000000e+00> : vector<2x16x16xf32>
    %13 = tpu.matmul %10, %11, %cst_11 {dimension_numbers = #tpu.dot_dimension_numbers<[2], [2], [1], [1], [0, 0, 0, 1, 1, 1], [0], [0]>} : vector<2x16x8xf32>, vector<2x16x8xf32>, vector<2x16x16xf32> -> vector<2x16x16xf32>
    "tpu.trace_stop"() : () -> ()
    %cst_12 = arith.constant 0.353553385 : f32
    %14 = vector.broadcast %cst_12 : f32 to vector<2x16x16xf32>
    %15 = arith.mulf %13, %14 : vector<2x16x16xf32>
    %16 = vector.broadcast %2 : vector<2x1x16xf32> to vector<2x16x16xf32>
    %17 = arith.addf %15, %16 : vector<2x16x16xf32>
    %cst_13 = arith.constant dense<0xFF800000> : vector<2x16xf32>
    %18 = vector.multi_reduction <maximumf>, %17, %cst_13 [2] : vector<2x16x16xf32> to vector<2x16xf32>
    %19 = vector.shape_cast %18 : vector<2x16xf32> to vector<2x16x1xf32>
    %20 = vector.broadcast %19 : vector<2x16x1xf32> to vector<2x16x16xf32>
    %21 = arith.subf %17, %20 : vector<2x16x16xf32>
    %22 = math.exp %21 : vector<2x16x16xf32>
    %cst_14 = arith.constant dense<0.000000e+00> : vector<2x16xf32>
    %23 = vector.multi_reduction <add>, %22, %cst_14 [2] : vector<2x16x16xf32> to vector<2x16xf32>
    %24 = vector.shape_cast %23 : vector<2x16xf32> to vector<2x16x1xf32>
    %25 = tpu.reciprocal %24 {approx = true} : vector<2x16x1xf32> -> vector<2x16x1xf32>
    %26 = vector.broadcast %25 : vector<2x16x1xf32> to vector<2x16x16xf32>
    %27 = arith.mulf %22, %26 : vector<2x16x16xf32>
    "tpu.trace_start"() <{level = 10 : i32, message = "bqk,bkd->bqd"}> : () -> ()
    %cst_15 = arith.constant dense<0.000000e+00> : vector<2x16x8xf32>
    %28 = tpu.matmul %27, %12, %cst_15 {dimension_numbers = #tpu.dot_dimension_numbers<[2], [1], [1], [2], [0, 0, 0, 1, 1, 2], [0], [0]>} : vector<2x16x16xf32>, vector<2x16x8xf32>, vector<2x16x8xf32> -> vector<2x16x8xf32>
    "tpu.trace_stop"() : () -> ()
    %29 = vector.extract_strided_slice %9 {offsets = [0, 0, 8], sizes = [2, 16, 8], strides = [1, 1, 1]} : vector<2x16x96xf32> to vector<2x16x8xf32>
    %30 = vector.extract_strided_slice %9 {offsets = [0, 0, 40], sizes = [2, 16, 8], strides = [1, 1, 1]} : vector<2x16x96xf32> to vector<2x16x8xf32>
    %31 = vector.extract_strided_slice %9 {offsets = [0, 0, 72], sizes = [2, 16, 8], strides = [1, 1, 1]} : vector<2x16x96xf32> to vector<2x16x8xf32>
    "tpu.trace_start"() <{level = 10 : i32, message = "bqd,bkd->bqk"}> : () -> ()
    %cst_16 = arith.constant dense<0.000000e+00> : vector<2x16x16xf32>
    %32 = tpu.matmul %29, %30, %cst_16 {dimension_numbers = #tpu.dot_dimension_numbers<[2], [2], [1], [1], [0, 0, 0, 1, 1, 1], [0], [0]>} : vector<2x16x8xf32>, vector<2x16x8xf32>, vector<2x16x16xf32> -> vector<2x16x16xf32>
    "tpu.trace_stop"() : () -> ()
    %cst_17 = arith.constant 0.353553385 : f32
    %33 = vector.broadcast %cst_17 : f32 to vector<2x16x16xf32>
    %34 = arith.mulf %32, %33 : vector<2x16x16xf32>
    %35 = vector.broadcast %2 : vector<2x1x16xf32> to vector<2x16x16xf32>
    %36 = arith.addf %34, %35 : vector<2x16x16xf32>
    %cst_18 = arith.constant dense<0xFF800000> : vector<2x16xf32>
    %37 = vector.multi_reduction <maximumf>, %36, %cst_18 [2] : vector<2x16x16xf32> to vector<2x16xf32>
    %38 = vector.shape_cast %37 : vector<2x16xf32> to vector<2x16x1xf32>
    %39 = vector.broadcast %38 : vector<2x16x1xf32> to vector<2x16x16xf32>
    %40 = arith.subf %36, %39 : vector<2x16x16xf32>
    %41 = math.exp %40 : vector<2x16x16xf32>
    %cst_19 = arith.constant dense<0.000000e+00> : vector<2x16xf32>
    %42 = vector.multi_reduction <add>, %41, %cst_19 [2] : vector<2x16x16xf32> to vector<2x16xf32>
    %43 = vector.shape_cast %42 : vector<2x16xf32> to vector<2x16x1xf32>
    %44 = tpu.reciprocal %43 {approx = true} : vector<2x16x1xf32> -> vector<2x16x1xf32>
    %45 = vector.broadcast %44 : vector<2x16x1xf32> to vector<2x16x16xf32>
    %46 = arith.mulf %41, %45 : vector<2x16x16xf32>
    "tpu.trace_start"() <{level = 10 : i32, message = "bqk,bkd->bqd"}> : () -> ()
    %cst_20 = arith.constant dense<0.000000e+00> : vector<2x16x8xf32>
    %47 = tpu.matmul %46, %31, %cst_20 {dimension_numbers = #tpu.dot_dimension_numbers<[2], [1], [1], [2], [0, 0, 0, 1, 1, 2], [0], [0]>} : vector<2x16x16xf32>, vector<2x16x8xf32>, vector<2x16x8xf32> -> vector<2x16x8xf32>
    "tpu.trace_stop"() : () -> ()
    %48 = vector.extract_strided_slice %9 {offsets = [0, 0, 16], sizes = [2, 16, 8], strides = [1, 1, 1]} : vector<2x16x96xf32> to vector<2x16x8xf32>
    %49 = vector.extract_strided_slice %9 {offsets = [0, 0, 48], sizes = [2, 16, 8], strides = [1, 1, 1]} : vector<2x16x96xf32> to vector<2x16x8xf32>
    %50 = vector.extract_strided_slice %9 {offsets = [0, 0, 80], sizes = [2, 16, 8], strides = [1, 1, 1]} : vector<2x16x96xf32> to vector<2x16x8xf32>
    "tpu.trace_start"() <{level = 10 : i32, message = "bqd,bkd->bqk"}> : () -> ()
    %cst_21 = arith.constant dense<0.000000e+00> : vector<2x16x16xf32>
    %51 = tpu.matmul %48, %49, %cst_21 {dimension_numbers = #tpu.dot_dimension_numbers<[2], [2], [1], [1], [0, 0, 0, 1, 1, 1], [0], [0]>} : vector<2x16x8xf32>, vector<2x16x8xf32>, vector<2x16x16xf32> -> vector<2x16x16xf32>
    "tpu.trace_stop"() : () -> ()
    %cst_22 = arith.constant 0.353553385 : f32
    %52 = vector.broadcast %cst_22 : f32 to vector<2x16x16xf32>
    %53 = arith.mulf %51, %52 : vector<2x16x16xf32>
    %54 = vector.broadcast %2 : vector<2x1x16xf32> to vector<2x16x16xf32>
    %55 = arith.addf %53, %54 : vector<2x16x16xf32>
    %cst_23 = arith.constant dense<0xFF800000> : vector<2x16xf32>
    %56 = vector.multi_reduction <maximumf>, %55, %cst_23 [2] : vector<2x16x16xf32> to vector<2x16xf32>
    %57 = vector.shape_cast %56 : vector<2x16xf32> to vector<2x16x1xf32>
    %58 = vector.broadcast %57 : vector<2x16x1xf32> to vector<2x16x16xf32>
    %59 = arith.subf %55, %58 : vector<2x16x16xf32>
    %60 = math.exp %59 : vector<2x16x16xf32>
    %cst_24 = arith.constant dense<0.000000e+00> : vector<2x16xf32>
    %61 = vector.multi_reduction <add>, %60, %cst_24 [2] : vector<2x16x16xf32> to vector<2x16xf32>
    %62 = vector.shape_cast %61 : vector<2x16xf32> to vector<2x16x1xf32>
    %63 = tpu.reciprocal %62 {approx = true} : vector<2x16x1xf32> -> vector<2x16x1xf32>
    %64 = vector.broadcast %63 : vector<2x16x1xf32> to vector<2x16x16xf32>
    %65 = arith.mulf %60, %64 : vector<2x16x16xf32>
    "tpu.trace_start"() <{level = 10 : i32, message = "bqk,bkd->bqd"}> : () -> ()
    %cst_25 = arith.constant dense<0.000000e+00> : vector<2x16x8xf32>
    %66 = tpu.matmul %65, %50, %cst_25 {dimension_numbers = #tpu.dot_dimension_numbers<[2], [1], [1], [2], [0, 0, 0, 1, 1, 2], [0], [0]>} : vector<2x16x16xf32>, vector<2x16x8xf32>, vector<2x16x8xf32> -> vector<2x16x8xf32>
    "tpu.trace_stop"() : () -> ()
    %67 = vector.extract_strided_slice %9 {offsets = [0, 0, 24], sizes = [2, 16, 8], strides = [1, 1, 1]} : vector<2x16x96xf32> to vector<2x16x8xf32>
    %68 = vector.extract_strided_slice %9 {offsets = [0, 0, 56], sizes = [2, 16, 8], strides = [1, 1, 1]} : vector<2x16x96xf32> to vector<2x16x8xf32>
    %69 = vector.extract_strided_slice %9 {offsets = [0, 0, 88], sizes = [2, 16, 8], strides = [1, 1, 1]} : vector<2x16x96xf32> to vector<2x16x8xf32>
    "tpu.trace_start"() <{level = 10 : i32, message = "bqd,bkd->bqk"}> : () -> ()
    %cst_26 = arith.constant dense<0.000000e+00> : vector<2x16x16xf32>
    %70 = tpu.matmul %67, %68, %cst_26 {dimension_numbers = #tpu.dot_dimension_numbers<[2], [2], [1], [1], [0, 0, 0, 1, 1, 1], [0], [0]>} : vector<2x16x8xf32>, vector<2x16x8xf32>, vector<2x16x16xf32> -> vector<2x16x16xf32>
    "tpu.trace_stop"() : () -> ()
    %cst_27 = arith.constant 0.353553385 : f32
    %71 = vector.broadcast %cst_27 : f32 to vector<2x16x16xf32>
    %72 = arith.mulf %70, %71 : vector<2x16x16xf32>
    %73 = vector.broadcast %2 : vector<2x1x16xf32> to vector<2x16x16xf32>
    %74 = arith.addf %72, %73 : vector<2x16x16xf32>
    %cst_28 = arith.constant dense<0xFF800000> : vector<2x16xf32>
    %75 = vector.multi_reduction <maximumf>, %74, %cst_28 [2] : vector<2x16x16xf32> to vector<2x16xf32>
    %76 = vector.shape_cast %75 : vector<2x16xf32> to vector<2x16x1xf32>
    %77 = vector.broadcast %76 : vector<2x16x1xf32> to vector<2x16x16xf32>
    %78 = arith.subf %74, %77 : vector<2x16x16xf32>
    %79 = math.exp %78 : vector<2x16x16xf32>
    %cst_29 = arith.constant dense<0.000000e+00> : vector<2x16xf32>
    %80 = vector.multi_reduction <add>, %79, %cst_29 [2] : vector<2x16x16xf32> to vector<2x16xf32>
    %81 = vector.shape_cast %80 : vector<2x16xf32> to vector<2x16x1xf32>
    %82 = tpu.reciprocal %81 {approx = true} : vector<2x16x1xf32> -> vector<2x16x1xf32>
    %83 = vector.broadcast %82 : vector<2x16x1xf32> to vector<2x16x16xf32>
    %84 = arith.mulf %79, %83 : vector<2x16x16xf32>
    "tpu.trace_start"() <{level = 10 : i32, message = "bqk,bkd->bqd"}> : () -> ()
    %cst_30 = arith.constant dense<0.000000e+00> : vector<2x16x8xf32>
    %85 = tpu.matmul %84, %69, %cst_30 {dimension_numbers = #tpu.dot_dimension_numbers<[2], [1], [1], [2], [0, 0, 0, 1, 1, 2], [0], [0]>} : vector<2x16x16xf32>, vector<2x16x8xf32>, vector<2x16x8xf32> -> vector<2x16x8xf32>
    "tpu.trace_stop"() : () -> ()
    %86 = tpu.concatenate %28, %47, %66, %85 in 2 : vector<2x16x8xf32>, vector<2x16x8xf32>, vector<2x16x8xf32>, vector<2x16x8xf32> -> vector<2x16x32xf32>
    %87 = vector.shape_cast %86 : vector<2x16x32xf32> to vector<32x32xf32>
    %c0_31 = arith.constant 0 : index
    %c0_32 = arith.constant 0 : index
    %88 = vector.load %arg5[%c0_31, %c0_32] : memref<32x32xf32, #tpu.memory_space<vmem>>, vector<32x32xf32>
    %cst_33 = arith.constant dense<0.000000e+00> : vector<32x32xf32>
    %89 = tpu.matmul %87, %88, %cst_33 {dimension_numbers = #tpu.dot_dimension_numbers<[1], [0], [0], [1], [0, 0, 1, 1], [], []>} : vector<32x32xf32>, vector<32x32xf32>, vector<32x32xf32> -> vector<32x32xf32>
    %c0_34 = arith.constant 0 : index
    %c0_35 = arith.constant 0 : index
    %90 = vector.load %arg6[%c0_34, %c0_35] : memref<1x32xf32, #tpu.memory_space<vmem>>, vector<1x32xf32>
    %91 = vector.broadcast %90 : vector<1x32xf32> to vector<32x32xf32>
    %92 = arith.addf %89, %91 : vector<32x32xf32>
    %93 = arith.addf %1, %92 : vector<32x32xf32>
    %cst_36 = arith.constant dense<0.000000e+00> : vector<32xf32>
    %94 = vector.multi_reduction <add>, %93, %cst_36 [1] : vector<32x32xf32> to vector<32xf32>
    %95 = vector.shape_cast %94 : vector<32xf32> to vector<32x1xf32>
    %cst_37 = arith.constant 3.200000e+01 : f32
    %96 = vector.broadcast %cst_37 : f32 to vector<32x1xf32>
    %97 = arith.divf %95, %96 : vector<32x1xf32>
    %98 = arith.mulf %93, %93 : vector<32x32xf32>
    %cst_38 = arith.constant dense<0.000000e+00> : vector<32xf32>
    %99 = vector.multi_reduction <add>, %98, %cst_38 [1] : vector<32x32xf32> to vector<32xf32>
    %100 = vector.shape_cast %99 : vector<32xf32> to vector<32x1xf32>
    %cst_39 = arith.constant 3.200000e+01 : f32
    %101 = vector.broadcast %cst_39 : f32 to vector<32x1xf32>
    %102 = arith.divf %100, %101 : vector<32x1xf32>
    %103 = arith.mulf %97, %97 : vector<32x1xf32>
    %104 = arith.subf %102, %103 : vector<32x1xf32>
    %105 = vector.broadcast %97 : vector<32x1xf32> to vector<32x32xf32>
    %106 = arith.subf %93, %105 : vector<32x32xf32>
    %cst_40 = arith.constant 9.99999974E-6 : f32
    %107 = vector.broadcast %cst_40 : f32 to vector<32x1xf32>
    %108 = arith.addf %104, %107 : vector<32x1xf32>
    %109 = math.rsqrt %108 : vector<32x1xf32>
    %110 = vector.broadcast %109 : vector<32x1xf32> to vector<32x32xf32>
    %111 = arith.mulf %106, %110 : vector<32x32xf32>
    %c0_41 = arith.constant 0 : index
    %c0_42 = arith.constant 0 : index
    %112 = vector.load %arg7[%c0_41, %c0_42] : memref<1x32xf32, #tpu.memory_space<vmem>>, vector<1x32xf32>
    %113 = vector.broadcast %112 : vector<1x32xf32> to vector<32x32xf32>
    %114 = arith.mulf %111, %113 : vector<32x32xf32>
    %c0_43 = arith.constant 0 : index
    %c0_44 = arith.constant 0 : index
    %115 = vector.load %arg8[%c0_43, %c0_44] : memref<1x32xf32, #tpu.memory_space<vmem>>, vector<1x32xf32>
    %116 = vector.broadcast %115 : vector<1x32xf32> to vector<32x32xf32>
    %117 = arith.addf %114, %116 : vector<32x32xf32>
    %cst_45 = arith.constant 5.000000e-01 : f32
    %118 = vector.broadcast %cst_45 : f32 to vector<32x1xf32>
    %119 = arith.cmpf ogt, %3, %118 : vector<32x1xf32>
    %cst_46 = arith.constant 0.000000e+00 : f32
    %120 = vector.shape_cast %119 : vector<32x1xi1> to vector<32x1xi1>
    %121 = vector.broadcast %120 : vector<32x1xi1> to vector<32x32xi1>
    %122 = vector.broadcast %cst_46 : f32 to vector<32x32xf32>
    %123 = arith.select %121, %122, %117 : vector<32x32xi1>, vector<32x32xf32>
    %c0_47 = arith.constant 0 : index
    %c0_48 = arith.constant 0 : index
    %124 = vector.load %arg9[%c0_47, %c0_48] : memref<32x64xf32, #tpu.memory_space<vmem>>, vector<32x64xf32>
    %cst_49 = arith.constant dense<0.000000e+00> : vector<32x64xf32>
    %125 = tpu.matmul %123, %124, %cst_49 {dimension_numbers = #tpu.dot_dimension_numbers<[1], [0], [0], [1], [0, 0, 1, 1], [], []>} : vector<32x32xf32>, vector<32x64xf32>, vector<32x64xf32> -> vector<32x64xf32>
    %c0_50 = arith.constant 0 : index
    %c0_51 = arith.constant 0 : index
    %126 = vector.load %arg10[%c0_50, %c0_51] : memref<1x64xf32, #tpu.memory_space<vmem>>, vector<1x64xf32>
    %127 = vector.broadcast %126 : vector<1x64xf32> to vector<32x64xf32>
    %128 = arith.addf %125, %127 : vector<32x64xf32>
    %cst_52 = arith.constant 0.000000e+00 : f32
    %129 = vector.broadcast %cst_52 : f32 to vector<32x64xf32>
    %130 = arith.maximumf %128, %129 : vector<32x64xf32>
    %c0_53 = arith.constant 0 : index
    %c0_54 = arith.constant 0 : index
    %131 = vector.load %arg11[%c0_53, %c0_54] : memref<64x32xf32, #tpu.memory_space<vmem>>, vector<64x32xf32>
    %cst_55 = arith.constant dense<0.000000e+00> : vector<32x32xf32>
    %132 = tpu.matmul %130, %131, %cst_55 {dimension_numbers = #tpu.dot_dimension_numbers<[1], [0], [0], [1], [0, 0, 1, 1], [], []>} : vector<32x64xf32>, vector<64x32xf32>, vector<32x32xf32> -> vector<32x32xf32>
    %c0_56 = arith.constant 0 : index
    %c0_57 = arith.constant 0 : index
    %133 = vector.load %arg12[%c0_56, %c0_57] : memref<1x32xf32, #tpu.memory_space<vmem>>, vector<1x32xf32>
    %134 = vector.broadcast %133 : vector<1x32xf32> to vector<32x32xf32>
    %135 = arith.addf %132, %134 : vector<32x32xf32>
    %136 = arith.addf %123, %135 : vector<32x32xf32>
    %cst_58 = arith.constant dense<0.000000e+00> : vector<32xf32>
    %137 = vector.multi_reduction <add>, %136, %cst_58 [1] : vector<32x32xf32> to vector<32xf32>
    %138 = vector.shape_cast %137 : vector<32xf32> to vector<32x1xf32>
    %cst_59 = arith.constant 3.200000e+01 : f32
    %139 = vector.broadcast %cst_59 : f32 to vector<32x1xf32>
    %140 = arith.divf %138, %139 : vector<32x1xf32>
    %141 = arith.mulf %136, %136 : vector<32x32xf32>
    %cst_60 = arith.constant dense<0.000000e+00> : vector<32xf32>
    %142 = vector.multi_reduction <add>, %141, %cst_60 [1] : vector<32x32xf32> to vector<32xf32>
    %143 = vector.shape_cast %142 : vector<32xf32> to vector<32x1xf32>
    %cst_61 = arith.constant 3.200000e+01 : f32
    %144 = vector.broadcast %cst_61 : f32 to vector<32x1xf32>
    %145 = arith.divf %143, %144 : vector<32x1xf32>
    %146 = arith.mulf %140, %140 : vector<32x1xf32>
    %147 = arith.subf %145, %146 : vector<32x1xf32>
    %148 = vector.broadcast %140 : vector<32x1xf32> to vector<32x32xf32>
    %149 = arith.subf %136, %148 : vector<32x32xf32>
    %cst_62 = arith.constant 9.99999974E-6 : f32
    %150 = vector.broadcast %cst_62 : f32 to vector<32x1xf32>
    %151 = arith.addf %147, %150 : vector<32x1xf32>
    %152 = math.rsqrt %151 : vector<32x1xf32>
    %153 = vector.broadcast %152 : vector<32x1xf32> to vector<32x32xf32>
    %154 = arith.mulf %149, %153 : vector<32x32xf32>
    %c0_63 = arith.constant 0 : index
    %c0_64 = arith.constant 0 : index
    %155 = vector.load %arg13[%c0_63, %c0_64] : memref<1x32xf32, #tpu.memory_space<vmem>>, vector<1x32xf32>
    %156 = vector.broadcast %155 : vector<1x32xf32> to vector<32x32xf32>
    %157 = arith.mulf %154, %156 : vector<32x32xf32>
    %c0_65 = arith.constant 0 : index
    %c0_66 = arith.constant 0 : index
    %158 = vector.load %arg14[%c0_65, %c0_66] : memref<1x32xf32, #tpu.memory_space<vmem>>, vector<1x32xf32>
    %159 = vector.broadcast %158 : vector<1x32xf32> to vector<32x32xf32>
    %160 = arith.addf %157, %159 : vector<32x32xf32>
    %c0_67 = arith.constant 0 : index
    %c0_68 = arith.constant 0 : index
    %161 = vector.load %arg15[%c0_67, %c0_68] : memref<32x32xf32, #tpu.memory_space<vmem>>, vector<32x32xf32>
    tpu.vector_store %arg15[%c0_67, %c0_68], %160 {strides = array<i32>} : memref<32x32xf32, #tpu.memory_space<vmem>>, vector<32x32xf32>,
    return
  }
}

module attributes {stable_mosaic.version = 11 : i64} {
  func.func @_fused_layer_kernel(%arg0: memref<2x8x32xf32, #tpu.memory_space<vmem>>, %arg1: memref<2x1x8xf32, #tpu.memory_space<vmem>>, %arg2: memref<16x1xf32, #tpu.memory_space<vmem>>, %arg3: memref<32x96xf32, #tpu.memory_space<vmem>>, %arg4: memref<1x96xf32, #tpu.memory_space<vmem>>, %arg5: memref<32x32xf32, #tpu.memory_space<vmem>>, %arg6: memref<1x32xf32, #tpu.memory_space<vmem>>, %arg7: memref<1x32xf32, #tpu.memory_space<vmem>>, %arg8: memref<1x32xf32, #tpu.memory_space<vmem>>, %arg9: memref<32x64xf32, #tpu.memory_space<vmem>>, %arg10: memref<1x64xf32, #tpu.memory_space<vmem>>, %arg11: memref<64x32xf32, #tpu.memory_space<vmem>>, %arg12: memref<1x32xf32, #tpu.memory_space<vmem>>, %arg13: memref<1x32xf32, #tpu.memory_space<vmem>>, %arg14: memref<1x32xf32, #tpu.memory_space<vmem>>, %arg15: memref<16x32xf32, #tpu.memory_space<vmem>>) attributes {dimension_semantics = [], scalar_prefetch = 0 : i64, scratch_operands = 0 : i64, tpu.core_type = #tpu.core_type<tc>} {
    %c0 = arith.constant 0 : index
    %c0_0 = arith.constant 0 : index
    %c0_1 = arith.constant 0 : index
    %0 = vector.load %arg0[%c0, %c0_0, %c0_1] : memref<2x8x32xf32, #tpu.memory_space<vmem>>, vector<2x8x32xf32>
    %1 = vector.shape_cast %0 : vector<2x8x32xf32> to vector<16x32xf32>
    %c0_2 = arith.constant 0 : index
    %c0_3 = arith.constant 0 : index
    %c0_4 = arith.constant 0 : index
    %2 = vector.load %arg1[%c0_2, %c0_3, %c0_4] : memref<2x1x8xf32, #tpu.memory_space<vmem>>, vector<2x1x8xf32>
    %c0_5 = arith.constant 0 : index
    %c0_6 = arith.constant 0 : index
    %3 = vector.load %arg2[%c0_5, %c0_6] : memref<16x1xf32, #tpu.memory_space<vmem>>, vector<16x1xf32>
    %c0_7 = arith.constant 0 : index
    %c0_8 = arith.constant 0 : index
    %4 = vector.load %arg3[%c0_7, %c0_8] : memref<32x96xf32, #tpu.memory_space<vmem>>, vector<32x96xf32>
    %cst = arith.constant dense<0.000000e+00> : vector<16x96xf32>
    %5 = tpu.matmul %1, %4, %cst {dimension_numbers = #tpu.dot_dimension_numbers<[1], [0], [0], [1], [0, 0, 1, 1], [], []>} : vector<16x32xf32>, vector<32x96xf32>, vector<16x96xf32> -> vector<16x96xf32>
    %c0_9 = arith.constant 0 : index
    %c0_10 = arith.constant 0 : index
    %6 = vector.load %arg4[%c0_9, %c0_10] : memref<1x96xf32, #tpu.memory_space<vmem>>, vector<1x96xf32>
    %7 = vector.broadcast %6 : vector<1x96xf32> to vector<16x96xf32>
    %8 = arith.addf %5, %7 : vector<16x96xf32>
    %9 = vector.shape_cast %8 : vector<16x96xf32> to vector<2x8x96xf32>
    %10 = vector.extract_strided_slice %9 {offsets = [0, 0, 0], sizes = [2, 8, 8], strides = [1, 1, 1]} : vector<2x8x96xf32> to vector<2x8x8xf32>
    %11 = vector.extract_strided_slice %9 {offsets = [0, 0, 32], sizes = [2, 8, 8], strides = [1, 1, 1]} : vector<2x8x96xf32> to vector<2x8x8xf32>
    %12 = vector.extract_strided_slice %9 {offsets = [0, 0, 64], sizes = [2, 8, 8], strides = [1, 1, 1]} : vector<2x8x96xf32> to vector<2x8x8xf32>
    "tpu.trace_start"() <{level = 10 : i32, message = "bqd,bkd->bqk"}> : () -> ()
    %cst_11 = arith.constant dense<0.000000e+00> : vector<2x8x8xf32>
    %13 = tpu.matmul %10, %11, %cst_11 {dimension_numbers = #tpu.dot_dimension_numbers<[2], [2], [1], [1], [0, 0, 0, 1, 1, 1], [0], [0]>} : vector<2x8x8xf32>, vector<2x8x8xf32>, vector<2x8x8xf32> -> vector<2x8x8xf32>
    "tpu.trace_stop"() : () -> ()
    %cst_12 = arith.constant 0.353553385 : f32
    %14 = vector.broadcast %cst_12 : f32 to vector<2x8x8xf32>
    %15 = arith.mulf %13, %14 : vector<2x8x8xf32>
    %16 = vector.broadcast %2 : vector<2x1x8xf32> to vector<2x8x8xf32>
    %17 = arith.addf %15, %16 : vector<2x8x8xf32>
    %cst_13 = arith.constant dense<0xFF800000> : vector<2x8xf32>
    %18 = vector.multi_reduction <maximumf>, %17, %cst_13 [2] : vector<2x8x8xf32> to vector<2x8xf32>
    %19 = vector.shape_cast %18 : vector<2x8xf32> to vector<2x8x1xf32>
    %20 = vector.broadcast %19 : vector<2x8x1xf32> to vector<2x8x8xf32>
    %21 = arith.subf %17, %20 : vector<2x8x8xf32>
    %22 = math.exp %21 : vector<2x8x8xf32>
    %cst_14 = arith.constant dense<0.000000e+00> : vector<2x8xf32>
    %23 = vector.multi_reduction <add>, %22, %cst_14 [2] : vector<2x8x8xf32> to vector<2x8xf32>
    %24 = vector.shape_cast %23 : vector<2x8xf32> to vector<2x8x1xf32>
    %25 = tpu.reciprocal %24 {approx = true} : vector<2x8x1xf32> -> vector<2x8x1xf32>
    %26 = vector.broadcast %25 : vector<2x8x1xf32> to vector<2x8x8xf32>
    %27 = arith.mulf %22, %26 : vector<2x8x8xf32>
    "tpu.trace_start"() <{level = 10 : i32, message = "bqk,bkd->bqd"}> : () -> ()
    %cst_15 = arith.constant dense<0.000000e+00> : vector<2x8x8xf32>
    %28 = tpu.matmul %27, %12, %cst_15 {dimension_numbers = #tpu.dot_dimension_numbers<[2], [1], [1], [2], [0, 0, 0, 1, 1, 2], [0], [0]>} : vector<2x8x8xf32>, vector<2x8x8xf32>, vector<2x8x8xf32> -> vector<2x8x8xf32>
    "tpu.trace_stop"() : () -> ()
    %29 = vector.extract_strided_slice %9 {offsets = [0, 0, 8], sizes = [2, 8, 8], strides = [1, 1, 1]} : vector<2x8x96xf32> to vector<2x8x8xf32>
    %30 = vector.extract_strided_slice %9 {offsets = [0, 0, 40], sizes = [2, 8, 8], strides = [1, 1, 1]} : vector<2x8x96xf32> to vector<2x8x8xf32>
    %31 = vector.extract_strided_slice %9 {offsets = [0, 0, 72], sizes = [2, 8, 8], strides = [1, 1, 1]} : vector<2x8x96xf32> to vector<2x8x8xf32>
    "tpu.trace_start"() <{level = 10 : i32, message = "bqd,bkd->bqk"}> : () -> ()
    %cst_16 = arith.constant dense<0.000000e+00> : vector<2x8x8xf32>
    %32 = tpu.matmul %29, %30, %cst_16 {dimension_numbers = #tpu.dot_dimension_numbers<[2], [2], [1], [1], [0, 0, 0, 1, 1, 1], [0], [0]>} : vector<2x8x8xf32>, vector<2x8x8xf32>, vector<2x8x8xf32> -> vector<2x8x8xf32>
    "tpu.trace_stop"() : () -> ()
    %cst_17 = arith.constant 0.353553385 : f32
    %33 = vector.broadcast %cst_17 : f32 to vector<2x8x8xf32>
    %34 = arith.mulf %32, %33 : vector<2x8x8xf32>
    %35 = vector.broadcast %2 : vector<2x1x8xf32> to vector<2x8x8xf32>
    %36 = arith.addf %34, %35 : vector<2x8x8xf32>
    %cst_18 = arith.constant dense<0xFF800000> : vector<2x8xf32>
    %37 = vector.multi_reduction <maximumf>, %36, %cst_18 [2] : vector<2x8x8xf32> to vector<2x8xf32>
    %38 = vector.shape_cast %37 : vector<2x8xf32> to vector<2x8x1xf32>
    %39 = vector.broadcast %38 : vector<2x8x1xf32> to vector<2x8x8xf32>
    %40 = arith.subf %36, %39 : vector<2x8x8xf32>
    %41 = math.exp %40 : vector<2x8x8xf32>
    %cst_19 = arith.constant dense<0.000000e+00> : vector<2x8xf32>
    %42 = vector.multi_reduction <add>, %41, %cst_19 [2] : vector<2x8x8xf32> to vector<2x8xf32>
    %43 = vector.shape_cast %42 : vector<2x8xf32> to vector<2x8x1xf32>
    %44 = tpu.reciprocal %43 {approx = true} : vector<2x8x1xf32> -> vector<2x8x1xf32>
    %45 = vector.broadcast %44 : vector<2x8x1xf32> to vector<2x8x8xf32>
    %46 = arith.mulf %41, %45 : vector<2x8x8xf32>
    "tpu.trace_start"() <{level = 10 : i32, message = "bqk,bkd->bqd"}> : () -> ()
    %cst_20 = arith.constant dense<0.000000e+00> : vector<2x8x8xf32>
    %47 = tpu.matmul %46, %31, %cst_20 {dimension_numbers = #tpu.dot_dimension_numbers<[2], [1], [1], [2], [0, 0, 0, 1, 1, 2], [0], [0]>} : vector<2x8x8xf32>, vector<2x8x8xf32>, vector<2x8x8xf32> -> vector<2x8x8xf32>
    "tpu.trace_stop"() : () -> ()
    %48 = vector.extract_strided_slice %9 {offsets = [0, 0, 16], sizes = [2, 8, 8], strides = [1, 1, 1]} : vector<2x8x96xf32> to vector<2x8x8xf32>
    %49 = vector.extract_strided_slice %9 {offsets = [0, 0, 48], sizes = [2, 8, 8], strides = [1, 1, 1]} : vector<2x8x96xf32> to vector<2x8x8xf32>
    %50 = vector.extract_strided_slice %9 {offsets = [0, 0, 80], sizes = [2, 8, 8], strides = [1, 1, 1]} : vector<2x8x96xf32> to vector<2x8x8xf32>
    "tpu.trace_start"() <{level = 10 : i32, message = "bqd,bkd->bqk"}> : () -> ()
    %cst_21 = arith.constant dense<0.000000e+00> : vector<2x8x8xf32>
    %51 = tpu.matmul %48, %49, %cst_21 {dimension_numbers = #tpu.dot_dimension_numbers<[2], [2], [1], [1], [0, 0, 0, 1, 1, 1], [0], [0]>} : vector<2x8x8xf32>, vector<2x8x8xf32>, vector<2x8x8xf32> -> vector<2x8x8xf32>
    "tpu.trace_stop"() : () -> ()
    %cst_22 = arith.constant 0.353553385 : f32
    %52 = vector.broadcast %cst_22 : f32 to vector<2x8x8xf32>
    %53 = arith.mulf %51, %52 : vector<2x8x8xf32>
    %54 = vector.broadcast %2 : vector<2x1x8xf32> to vector<2x8x8xf32>
    %55 = arith.addf %53, %54 : vector<2x8x8xf32>
    %cst_23 = arith.constant dense<0xFF800000> : vector<2x8xf32>
    %56 = vector.multi_reduction <maximumf>, %55, %cst_23 [2] : vector<2x8x8xf32> to vector<2x8xf32>
    %57 = vector.shape_cast %56 : vector<2x8xf32> to vector<2x8x1xf32>
    %58 = vector.broadcast %57 : vector<2x8x1xf32> to vector<2x8x8xf32>
    %59 = arith.subf %55, %58 : vector<2x8x8xf32>
    %60 = math.exp %59 : vector<2x8x8xf32>
    %cst_24 = arith.constant dense<0.000000e+00> : vector<2x8xf32>
    %61 = vector.multi_reduction <add>, %60, %cst_24 [2] : vector<2x8x8xf32> to vector<2x8xf32>
    %62 = vector.shape_cast %61 : vector<2x8xf32> to vector<2x8x1xf32>
    %63 = tpu.reciprocal %62 {approx = true} : vector<2x8x1xf32> -> vector<2x8x1xf32>
    %64 = vector.broadcast %63 : vector<2x8x1xf32> to vector<2x8x8xf32>
    %65 = arith.mulf %60, %64 : vector<2x8x8xf32>
    "tpu.trace_start"() <{level = 10 : i32, message = "bqk,bkd->bqd"}> : () -> ()
    %cst_25 = arith.constant dense<0.000000e+00> : vector<2x8x8xf32>
    %66 = tpu.matmul %65, %50, %cst_25 {dimension_numbers = #tpu.dot_dimension_numbers<[2], [1], [1], [2], [0, 0, 0, 1, 1, 2], [0], [0]>} : vector<2x8x8xf32>, vector<2x8x8xf32>, vector<2x8x8xf32> -> vector<2x8x8xf32>
    "tpu.trace_stop"() : () -> ()
    %67 = vector.extract_strided_slice %9 {offsets = [0, 0, 24], sizes = [2, 8, 8], strides = [1, 1, 1]} : vector<2x8x96xf32> to vector<2x8x8xf32>
    %68 = vector.extract_strided_slice %9 {offsets = [0, 0, 56], sizes = [2, 8, 8], strides = [1, 1, 1]} : vector<2x8x96xf32> to vector<2x8x8xf32>
    %69 = vector.extract_strided_slice %9 {offsets = [0, 0, 88], sizes = [2, 8, 8], strides = [1, 1, 1]} : vector<2x8x96xf32> to vector<2x8x8xf32>
    "tpu.trace_start"() <{level = 10 : i32, message = "bqd,bkd->bqk"}> : () -> ()
    %cst_26 = arith.constant dense<0.000000e+00> : vector<2x8x8xf32>
    %70 = tpu.matmul %67, %68, %cst_26 {dimension_numbers = #tpu.dot_dimension_numbers<[2], [2], [1], [1], [0, 0, 0, 1, 1, 1], [0], [0]>} : vector<2x8x8xf32>, vector<2x8x8xf32>, vector<2x8x8xf32> -> vector<2x8x8xf32>
    "tpu.trace_stop"() : () -> ()
    %cst_27 = arith.constant 0.353553385 : f32
    %71 = vector.broadcast %cst_27 : f32 to vector<2x8x8xf32>
    %72 = arith.mulf %70, %71 : vector<2x8x8xf32>
    %73 = vector.broadcast %2 : vector<2x1x8xf32> to vector<2x8x8xf32>
    %74 = arith.addf %72, %73 : vector<2x8x8xf32>
    %cst_28 = arith.constant dense<0xFF800000> : vector<2x8xf32>
    %75 = vector.multi_reduction <maximumf>, %74, %cst_28 [2] : vector<2x8x8xf32> to vector<2x8xf32>
    %76 = vector.shape_cast %75 : vector<2x8xf32> to vector<2x8x1xf32>
    %77 = vector.broadcast %76 : vector<2x8x1xf32> to vector<2x8x8xf32>
    %78 = arith.subf %74, %77 : vector<2x8x8xf32>
    %79 = math.exp %78 : vector<2x8x8xf32>
    %cst_29 = arith.constant dense<0.000000e+00> : vector<2x8xf32>
    %80 = vector.multi_reduction <add>, %79, %cst_29 [2] : vector<2x8x8xf32> to vector<2x8xf32>
    %81 = vector.shape_cast %80 : vector<2x8xf32> to vector<2x8x1xf32>
    %82 = tpu.reciprocal %81 {approx = true} : vector<2x8x1xf32> -> vector<2x8x1xf32>
    %83 = vector.broadcast %82 : vector<2x8x1xf32> to vector<2x8x8xf32>
    %84 = arith.mulf %79, %83 : vector<2x8x8xf32>
    "tpu.trace_start"() <{level = 10 : i32, message = "bqk,bkd->bqd"}> : () -> ()
    %cst_30 = arith.constant dense<0.000000e+00> : vector<2x8x8xf32>
    %85 = tpu.matmul %84, %69, %cst_30 {dimension_numbers = #tpu.dot_dimension_numbers<[2], [1], [1], [2], [0, 0, 0, 1, 1, 2], [0], [0]>} : vector<2x8x8xf32>, vector<2x8x8xf32>, vector<2x8x8xf32> -> vector<2x8x8xf32>
    "tpu.trace_stop"() : () -> ()
    %86 = tpu.concatenate %28, %47, %66, %85 in 2 : vector<2x8x8xf32>, vector<2x8x8xf32>, vector<2x8x8xf32>, vector<2x8x8xf32> -> vector<2x8x32xf32>
    %87 = vector.shape_cast %86 : vector<2x8x32xf32> to vector<16x32xf32>
    %c0_31 = arith.constant 0 : index
    %c0_32 = arith.constant 0 : index
    %88 = vector.load %arg5[%c0_31, %c0_32] : memref<32x32xf32, #tpu.memory_space<vmem>>, vector<32x32xf32>
    %cst_33 = arith.constant dense<0.000000e+00> : vector<16x32xf32>
    %89 = tpu.matmul %87, %88, %cst_33 {dimension_numbers = #tpu.dot_dimension_numbers<[1], [0], [0], [1], [0, 0, 1, 1], [], []>} : vector<16x32xf32>, vector<32x32xf32>, vector<16x32xf32> -> vector<16x32xf32>
    %c0_34 = arith.constant 0 : index
    %c0_35 = arith.constant 0 : index
    %90 = vector.load %arg6[%c0_34, %c0_35] : memref<1x32xf32, #tpu.memory_space<vmem>>, vector<1x32xf32>
    %91 = vector.broadcast %90 : vector<1x32xf32> to vector<16x32xf32>
    %92 = arith.addf %89, %91 : vector<16x32xf32>
    %93 = arith.addf %1, %92 : vector<16x32xf32>
    %cst_36 = arith.constant dense<0.000000e+00> : vector<16xf32>
    %94 = vector.multi_reduction <add>, %93, %cst_36 [1] : vector<16x32xf32> to vector<16xf32>
    %95 = vector.shape_cast %94 : vector<16xf32> to vector<16x1xf32>
    %cst_37 = arith.constant 3.200000e+01 : f32
    %96 = vector.broadcast %cst_37 : f32 to vector<16x1xf32>
    %97 = arith.divf %95, %96 : vector<16x1xf32>
    %98 = arith.mulf %93, %93 : vector<16x32xf32>
    %cst_38 = arith.constant dense<0.000000e+00> : vector<16xf32>
    %99 = vector.multi_reduction <add>, %98, %cst_38 [1] : vector<16x32xf32> to vector<16xf32>
    %100 = vector.shape_cast %99 : vector<16xf32> to vector<16x1xf32>
    %cst_39 = arith.constant 3.200000e+01 : f32
    %101 = vector.broadcast %cst_39 : f32 to vector<16x1xf32>
    %102 = arith.divf %100, %101 : vector<16x1xf32>
    %103 = arith.mulf %97, %97 : vector<16x1xf32>
    %104 = arith.subf %102, %103 : vector<16x1xf32>
    %105 = vector.broadcast %97 : vector<16x1xf32> to vector<16x32xf32>
    %106 = arith.subf %93, %105 : vector<16x32xf32>
    %cst_40 = arith.constant 9.99999974E-6 : f32
    %107 = vector.broadcast %cst_40 : f32 to vector<16x1xf32>
    %108 = arith.addf %104, %107 : vector<16x1xf32>
    %109 = math.rsqrt %108 : vector<16x1xf32>
    %110 = vector.broadcast %109 : vector<16x1xf32> to vector<16x32xf32>
    %111 = arith.mulf %106, %110 : vector<16x32xf32>
    %c0_41 = arith.constant 0 : index
    %c0_42 = arith.constant 0 : index
    %112 = vector.load %arg7[%c0_41, %c0_42] : memref<1x32xf32, #tpu.memory_space<vmem>>, vector<1x32xf32>
    %113 = vector.broadcast %112 : vector<1x32xf32> to vector<16x32xf32>
    %114 = arith.mulf %111, %113 : vector<16x32xf32>
    %c0_43 = arith.constant 0 : index
    %c0_44 = arith.constant 0 : index
    %115 = vector.load %arg8[%c0_43, %c0_44] : memref<1x32xf32, #tpu.memory_space<vmem>>, vector<1x32xf32>
    %116 = vector.broadcast %115 : vector<1x32xf32> to vector<16x32xf32>
    %117 = arith.addf %114, %116 : vector<16x32xf32>
    %cst_45 = arith.constant 5.000000e-01 : f32
    %118 = vector.broadcast %cst_45 : f32 to vector<16x1xf32>
    %119 = arith.cmpf ogt, %3, %118 : vector<16x1xf32>
    %cst_46 = arith.constant 0.000000e+00 : f32
    %120 = vector.shape_cast %119 : vector<16x1xi1> to vector<16x1xi1>
    %121 = vector.broadcast %120 : vector<16x1xi1> to vector<16x32xi1>
    %122 = vector.broadcast %cst_46 : f32 to vector<16x32xf32>
    %123 = arith.select %121, %122, %117 : vector<16x32xi1>, vector<16x32xf32>
    %c0_47 = arith.constant 0 : index
    %c0_48 = arith.constant 0 : index
    %124 = vector.load %arg9[%c0_47, %c0_48] : memref<32x64xf32, #tpu.memory_space<vmem>>, vector<32x64xf32>
    %cst_49 = arith.constant dense<0.000000e+00> : vector<16x64xf32>
    %125 = tpu.matmul %123, %124, %cst_49 {dimension_numbers = #tpu.dot_dimension_numbers<[1], [0], [0], [1], [0, 0, 1, 1], [], []>} : vector<16x32xf32>, vector<32x64xf32>, vector<16x64xf32> -> vector<16x64xf32>
    %c0_50 = arith.constant 0 : index
    %c0_51 = arith.constant 0 : index
    %126 = vector.load %arg10[%c0_50, %c0_51] : memref<1x64xf32, #tpu.memory_space<vmem>>, vector<1x64xf32>
    %127 = vector.broadcast %126 : vector<1x64xf32> to vector<16x64xf32>
    %128 = arith.addf %125, %127 : vector<16x64xf32>
    %cst_52 = arith.constant 0.000000e+00 : f32
    %129 = vector.broadcast %cst_52 : f32 to vector<16x64xf32>
    %130 = arith.maximumf %128, %129 : vector<16x64xf32>
    %c0_53 = arith.constant 0 : index
    %c0_54 = arith.constant 0 : index
    %131 = vector.load %arg11[%c0_53, %c0_54] : memref<64x32xf32, #tpu.memory_space<vmem>>, vector<64x32xf32>
    %cst_55 = arith.constant dense<0.000000e+00> : vector<16x32xf32>
    %132 = tpu.matmul %130, %131, %cst_55 {dimension_numbers = #tpu.dot_dimension_numbers<[1], [0], [0], [1], [0, 0, 1, 1], [], []>} : vector<16x64xf32>, vector<64x32xf32>, vector<16x32xf32> -> vector<16x32xf32>
    %c0_56 = arith.constant 0 : index
    %c0_57 = arith.constant 0 : index
    %133 = vector.load %arg12[%c0_56, %c0_57] : memref<1x32xf32, #tpu.memory_space<vmem>>, vector<1x32xf32>
    %134 = vector.broadcast %133 : vector<1x32xf32> to vector<16x32xf32>
    %135 = arith.addf %132, %134 : vector<16x32xf32>
    %136 = arith.addf %123, %135 : vector<16x32xf32>
    %cst_58 = arith.constant dense<0.000000e+00> : vector<16xf32>
    %137 = vector.multi_reduction <add>, %136, %cst_58 [1] : vector<16x32xf32> to vector<16xf32>
    %138 = vector.shape_cast %137 : vector<16xf32> to vector<16x1xf32>
    %cst_59 = arith.constant 3.200000e+01 : f32
    %139 = vector.broadcast %cst_59 : f32 to vector<16x1xf32>
    %140 = arith.divf %138, %139 : vector<16x1xf32>
    %141 = arith.mulf %136, %136 : vector<16x32xf32>
    %cst_60 = arith.constant dense<0.000000e+00> : vector<16xf32>
    %142 = vector.multi_reduction <add>, %141, %cst_60 [1] : vector<16x32xf32> to vector<16xf32>
    %143 = vector.shape_cast %142 : vector<16xf32> to vector<16x1xf32>
    %cst_61 = arith.constant 3.200000e+01 : f32
    %144 = vector.broadcast %cst_61 : f32 to vector<16x1xf32>
    %145 = arith.divf %143, %144 : vector<16x1xf32>
    %146 = arith.mulf %140, %140 : vector<16x1xf32>
    %147 = arith.subf %145, %146 : vector<16x1xf32>
    %148 = vector.broadcast %140 : vector<16x1xf32> to vector<16x32xf32>
    %149 = arith.subf %136, %148 : vector<16x32xf32>
    %cst_62 = arith.constant 9.99999974E-6 : f32
    %150 = vector.broadcast %cst_62 : f32 to vector<16x1xf32>
    %151 = arith.addf %147, %150 : vector<16x1xf32>
    %152 = math.rsqrt %151 : vector<16x1xf32>
    %153 = vector.broadcast %152 : vector<16x1xf32> to vector<16x32xf32>
    %154 = arith.mulf %149, %153 : vector<16x32xf32>
    %c0_63 = arith.constant 0 : index
    %c0_64 = arith.constant 0 : index
    %155 = vector.load %arg13[%c0_63, %c0_64] : memref<1x32xf32, #tpu.memory_space<vmem>>, vector<1x32xf32>
    %156 = vector.broadcast %155 : vector<1x32xf32> to vector<16x32xf32>
    %157 = arith.mulf %154, %156 : vector<16x32xf32>
    %c0_65 = arith.constant 0 : index
    %c0_66 = arith.constant 0 : index
    %158 = vector.load %arg14[%c0_65, %c0_66] : memref<1x32xf32, #tpu.memory_space<vmem>>, vector<1x32xf32>
    %159 = vector.broadcast %158 : vector<1x32xf32> to vector<16x32xf32>
    %160 = arith.addf %157, %159 : vector<16x32xf32>
    %c0_67 = arith.constant 0 : index
    %c0_68 = arith.constant 0 : index
    %161 = vector.load %arg15[%c0_67, %c0_68] : memref<16x32xf32, #tpu.memory_space<vmem>>, vector<16x32xf32>
    tpu.vector_store %arg15[%c0_67, %c0_68], %160 {strides = array<i32>} : memref<16x32xf32, #tpu.memory_space<vmem>>, vector<16x32xf32>,
    return
  }
}

</mosaic_0001>

<llo_original>
// kernel: cross_modality_encoder_layer.3
$region0: #{cross_modality_encoder_layer.3}
  #allocation0 [shape = 'u32[]', space=smem, size = 0x4, offset = 0x4, fixed_abs, tag = 'smem constant byte address 0x4 - core index']
  #allocation1 [shape = 'u32[144,128]{1,0:T(1,128)}', space=vmem, size = 0x12000, scoped, tag = 'internal scratch']
  %s0 = inlined_call_operand.vmem [shape: f32[2,8,32], index: 0, kind: input, shape index: {}]
  %s1 = inlined_call_operand.vmem [shape: f32[2,1,8], index: 1, kind: input, shape index: {}]
  %s2 = inlined_call_operand.vmem [shape: f32[16,1], index: 2, kind: input, shape index: {}]
  %s3 = inlined_call_operand.vmem [shape: f32[32,96], index: 3, kind: input, shape index: {}]
  %s4 = inlined_call_operand.vmem [shape: f32[1,96], index: 4, kind: input, shape index: {}]
  %s5 = inlined_call_operand.vmem [shape: f32[32,32], index: 5, kind: input, shape index: {}]
  %s6 = inlined_call_operand.vmem [shape: f32[1,32], index: 6, kind: input, shape index: {}]
  %s7 = inlined_call_operand.vmem [shape: f32[1,32], index: 7, kind: input, shape index: {}]
  %s8 = inlined_call_operand.vmem [shape: f32[1,32], index: 8, kind: input, shape index: {}]
  %s9 = inlined_call_operand.vmem [shape: f32[32,64], index: 9, kind: input, shape index: {}]
  %s10 = inlined_call_operand.vmem [shape: f32[1,64], index: 10, kind: input, shape index: {}]
  %s11 = inlined_call_operand.vmem [shape: f32[64,32], index: 11, kind: input, shape index: {}]
  %s12 = inlined_call_operand.vmem [shape: f32[1,32], index: 12, kind: input, shape index: {}]
  %s13 = inlined_call_operand.vmem [shape: f32[1,32], index: 13, kind: input, shape index: {}]
  %s14 = inlined_call_operand.vmem [shape: f32[1,32], index: 14, kind: input, shape index: {}]
  %s15 = inlined_call_operand.hbm [shape: f32[16,32], index: 15, kind: output, shape index: {}]
  %s16 = sld [smem:[#allocation0]]
  $region70: #{cross_modality_encoder_layer.3} parent=0
    _
  %s18 = ssub.s32 1, %s16
  %s19 = scalar_select 0, %s18, %s16
  $region1: #{cross_modality_encoder_layer.3} parent=0
    #allocation2 [shape = 'u8[8192]{0}', space=vmem, size = 0x2000, scoped, tag = 'output window, operand 0, single buffered']
    #allocation3 [shape = 's32[1]{0}', space=sflag, size = 0x4, scoped, tag = 'scoped memory for cross_modality_encoder_layer.3']
    %20 = vsyncpa [#allocation3], 0
    // Predicated region
    $region2: #{cross_modality_encoder_layer.3} parent=1 // pred_check
      _
    $region3: #{cross_modality_encoder_layer.3} parent=1 // pred_check_branch
      %22 = sbr.rel (0) target = $region5
    $region4: #{cross_modality_encoder_layer.3} parent=1 // pred_region
      _
    $region5: #{cross_modality_encoder_layer.3} parent=1 // pred_fallthru
      _
    // Predicated region
    $region6: #{cross_modality_encoder_layer.3} parent=1 // pred_check
      _
    $region7: #{cross_modality_encoder_layer.3} parent=1 // pred_check_branch
      %24 = sbr.rel (0) target = $region9
    $region8: #{cross_modality_encoder_layer.3} parent=1 // pred_region
      _
    $region9: #{cross_modality_encoder_layer.3} parent=1 // pred_fallthru
      _
    // Predicated region
    $region10: #{cross_modality_encoder_layer.3} parent=1 // pred_check
      _
    $region11: #{cross_modality_encoder_layer.3} parent=1 // pred_check_branch
      %26 = sbr.rel (0) target = $region13
    $region12: #{cross_modality_encoder_layer.3} parent=1 // pred_region
      _
    $region13: #{cross_modality_encoder_layer.3} parent=1 // pred_fallthru
      _
    // Predicated region
    $region14: #{cross_modality_encoder_layer.3} parent=1 // pred_check
      _
    $region15: #{cross_modality_encoder_layer.3} parent=1 // pred_check_branch
      %28 = sbr.rel (0) target = $region17
    $region16: #{cross_modality_encoder_layer.3} parent=1 // pred_region
      _
    $region17: #{cross_modality_encoder_layer.3} parent=1 // pred_fallthru
      _
    // Predicated region
    $region18: #{cross_modality_encoder_layer.3} parent=1 // pred_check
      _
    $region19: #{cross_modality_encoder_layer.3} parent=1 // pred_check_branch
      %30 = sbr.rel (0) target = $region21
    $region20: #{cross_modality_encoder_layer.3} parent=1 // pred_region
      _
    $region21: #{cross_modality_encoder_layer.3} parent=1 // pred_fallthru
      _
    // Predicated region
    $region22: #{cross_modality_encoder_layer.3} parent=1 // pred_check
      _
    $region23: #{cross_modality_encoder_layer.3} parent=1 // pred_check_branch
      %32 = sbr.rel (0) target = $region25
    $region24: #{cross_modality_encoder_layer.3} parent=1 // pred_region
      _
    $region25: #{cross_modality_encoder_layer.3} parent=1 // pred_fallthru
      _
    // Predicated region
    $region26: #{cross_modality_encoder_layer.3} parent=1 // pred_check
      _
    $region27: #{cross_modality_encoder_layer.3} parent=1 // pred_check_branch
      %34 = sbr.rel (0) target = $region29
    $region28: #{cross_modality_encoder_layer.3} parent=1 // pred_region
      _
    $region29: #{cross_modality_encoder_layer.3} parent=1 // pred_fallthru
      _
    // Predicated region
    $region30: #{cross_modality_encoder_layer.3} parent=1 // pred_check
      _
    $region31: #{cross_modality_encoder_layer.3} parent=1 // pred_check_branch
      %36 = sbr.rel (0) target = $region33
    $region32: #{cross_modality_encoder_layer.3} parent=1 // pred_region
      _
    $region33: #{cross_modality_encoder_layer.3} parent=1 // pred_fallthru
      _
    // Predicated region
    $region34: #{cross_modality_encoder_layer.3} parent=1 // pred_check
      _
    $region35: #{cross_modality_encoder_layer.3} parent=1 // pred_check_branch
      %38 = sbr.rel (0) target = $region37
    $region36: #{cross_modality_encoder_layer.3} parent=1 // pred_region
      _
    $region37: #{cross_modality_encoder_layer.3} parent=1 // pred_fallthru
      _
    // Predicated region
    $region38: #{cross_modality_encoder_layer.3} parent=1 // pred_check
      _
    $region39: #{cross_modality_encoder_layer.3} parent=1 // pred_check_branch
      %40 = sbr.rel (0) target = $region41
    $region40: #{cross_modality_encoder_layer.3} parent=1 // pred_region
      _
    $region41: #{cross_modality_encoder_layer.3} parent=1 // pred_fallthru
      _
    // Predicated region
    $region42: #{cross_modality_encoder_layer.3} parent=1 // pred_check
      _
    $region43: #{cross_modality_encoder_layer.3} parent=1 // pred_check_branch
      %42 = sbr.rel (0) target = $region45
    $region44: #{cross_modality_encoder_layer.3} parent=1 // pred_region
      _
    $region45: #{cross_modality_encoder_layer.3} parent=1 // pred_fallthru
      _
    // Predicated region
    $region46: #{cross_modality_encoder_layer.3} parent=1 // pred_check
      _
    $region47: #{cross_modality_encoder_layer.3} parent=1 // pred_check_branch
      %44 = sbr.rel (0) target = $region49
    $region48: #{cross_modality_encoder_layer.3} parent=1 // pred_region
      _
    $region49: #{cross_modality_encoder_layer.3} parent=1 // pred_fallthru
      _
    // Predicated region
    $region50: #{cross_modality_encoder_layer.3} parent=1 // pred_check
      _
    $region51: #{cross_modality_encoder_layer.3} parent=1 // pred_check_branch
      %46 = sbr.rel (0) target = $region53
    $region52: #{cross_modality_encoder_layer.3} parent=1 // pred_region
      _
    $region53: #{cross_modality_encoder_layer.3} parent=1 // pred_fallthru
      _
    // Predicated region
    $region54: #{cross_modality_encoder_layer.3} parent=1 // pred_check
      _
    $region55: #{cross_modality_encoder_layer.3} parent=1 // pred_check_branch
      %48 = sbr.rel (0) target = $region57
    $region56: #{cross_modality_encoder_layer.3} parent=1 // pred_region
      _
    $region57: #{cross_modality_encoder_layer.3} parent=1 // pred_fallthru
      _
    // Predicated region
    $region58: #{cross_modality_encoder_layer.3} parent=1 // pred_check
      _
    $region59: #{cross_modality_encoder_layer.3} parent=1 // pred_check_branch
      %50 = sbr.rel (0) target = $region61
    $region60: #{cross_modality_encoder_layer.3} parent=1 // pred_region
      _
    $region61: #{cross_modality_encoder_layer.3} parent=1 // pred_fallthru
      _
    %v51 = vld [vmem:[%s0] sm:$0xff]
    %v52 = vld [vmem:[%s0 + $0x8] sm:$0xff]
    %v53 = vld [vmem:[%s1] sm:$0x1]
    %v54 = vld [vmem:[%s1 + $0x1] sm:$0x1]
    %v55 = vld [vmem:[%s2] sm:$0xff]
    %v56 = vld [vmem:[%s2 + $0x8] sm:$0xff]
    %v57 = vld [vmem:[%s3] sm:$0xff]
    %v58 = vld [vmem:[%s3 + $0x8] sm:$0xff]
    %v59 = vld [vmem:[%s3 + $0x10] sm:$0xff]
    %v60 = vld [vmem:[%s3 + $0x18] sm:$0xff]
    %v61 = vld [vmem:[%s4] sm:$0x1]
    %v63 = vlaneseq
    %v64 = vshrl.u32 %v63, 7
    %v65 = vsub.s32 0, %v64
    %v66 = vrot.slane %v61, %v65
    %vm68 = vcmask 261120
    %v70 = vsel %vm68, %v51, 0
    %v73 = vsel %vm68, %v52, 0
    %75 = vmatprep.subr.mxu0 0.0
    %76 = vmatpush1.msra.mxu0 0.0
    %77 = vmatprep.subr.mxu0 0.0
    %78 = vmatpush1.msra.mxu0 0.0
    %79 = vmatprep.subr.mxu0 0.0
    %80 = vmatpush1.msra.mxu0 0.0
    %81 = vmatprep.subr.mxu0 0.0
    %82 = vmatpush1.msra.mxu0 0.0
    %83 = vmatprep.subr.mxu0 0.0
    %84 = vmatpush1.msra.mxu0 0.0
    %85 = vmatprep.subr.mxu0 0.0
    %86 = vmatpush1.msra.mxu0 0.0
    %87 = vmatprep.subr.mxu0 0.0
    %88 = vmatpush1.msra.mxu0 0.0
    %89 = vmatprep.subr.mxu0 0.0
    %90 = vmatpush1.msra.mxu0 0.0
    %91 = vmatprep.subr.mxu0 0.0
    %92 = vmatpush1.msra.mxu0 0.0
    %93 = vmatprep.subr.mxu0 0.0
    %94 = vmatpush1.msra.mxu0 0.0
    %95 = vmatprep.subr.mxu0 0.0
    %96 = vmatpush1.msra.mxu0 0.0
    %97 = vmatprep.subr.mxu0 0.0
    %98 = vmatpush1.msra.mxu0 0.0
    %99 = vmatprep.subr.mxu0 0.0
    %100 = vmatpush1.msra.mxu0 %v60
    %101 = vmatprep.subr.mxu0 0.0
    %102 = vmatpush1.msra.mxu0 %v59
    %103 = vmatprep.subr.mxu0 0.0
    %104 = vmatpush1.msra.mxu0 %v58
    %105 = vmatprep.subr.mxu0 0.0
    %106 = vmatpush1.msra.mxu0 %v57
    %107 = vmatprep.subr.mxu0 0.0
    %108 = vmatpush2.msra.mxu0 0.0
    %109 = vmatprep.subr.mxu0 0.0
    %110 = vmatpush2.msra.mxu0 0.0
    %111 = vmatprep.subr.mxu0 0.0
    %112 = vmatpush2.msra.mxu0 0.0
    %113 = vmatprep.subr.mxu0 0.0
    %114 = vmatpush2.msra.mxu0 0.0
    %115 = vmatprep.subr.mxu0 0.0
    %116 = vmatpush2.msra.mxu0 0.0
    %117 = vmatprep.subr.mxu0 0.0
    %118 = vmatpush2.msra.mxu0 0.0
    %119 = vmatprep.subr.mxu0 0.0
    %120 = vmatpush2.msra.mxu0 0.0
    %121 = vmatprep.subr.mxu0 0.0
    %122 = vmatpush2.msra.mxu0 0.0
    %123 = vmatprep.subr.mxu0 0.0
    %124 = vmatpush2.msra.mxu0 0.0
    %125 = vmatprep.subr.mxu0 0.0
    %126 = vmatpush2.msra.mxu0 0.0
    %127 = vmatprep.subr.mxu0 0.0
    %128 = vmatpush2.msra.mxu0 0.0
    %129 = vmatprep.subr.mxu0 0.0
    %130 = vmatpush2.msra.mxu0 0.0
    %131 = vmatprep.subr.mxu0 0.0
    %132 = vmatpush2.msra.mxu0 0.0
    %133 = vmatprep.subr.mxu0 0.0
    %134 = vmatpush2.msra.mxu0 0.0
    %135 = vmatprep.subr.mxu0 0.0
    %136 = vmatpush2.msra.mxu0 0.0
    %137 = vmatprep.subr.mxu0 0.0
    %138 = vmatpush2.msra.mxu0 0.0
    %139 = vmatprep.mubr.f32.mxu0 0.0
    %140 = vmatmul.mubr.f32.gmra.mxu0 %v70
    %v141 = vpop.f32.mrf.mxu0
    %v142 = vadd.f32 %v66, %v141
    %v143 = vpop.f32.mrf.mxu0
    %144 = vmatprep.mubr.f32.mxu0 0.0
    %145 = vmatmul.mubr.f32.gmra.mxu0 %v73
    %v146 = vpop.f32.mrf.mxu0
    %v147 = vadd.f32 %v66, %v146
    %v148 = vpop.f32.mrf.mxu0
    %149 = vdwg.mxu0
    %151 = vrot.lane.b32.xlu0 %v142, 96
    %v152 = vpop.permute.xlu0 %151
    %vm153 = vcmask 64512
    %v154 = vsel %vm153, %v142, 0
    %v156 = vsel %vm153, %v152, 0
    %158 = vmatprep.subr.mxu0 0.0
    %159 = vmatpush1.xpose.msra.mxu0 0.0
    %160 = vmatprep.subr.mxu0 0.0
    %161 = vmatpush1.xpose.msra.mxu0 0.0
    %162 = vmatprep.subr.mxu0 0.0
    %163 = vmatpush1.xpose.msra.mxu0 0.0
    %164 = vmatprep.subr.mxu0 0.0
    %165 = vmatpush1.xpose.msra.mxu0 0.0
    %166 = vmatprep.subr.mxu0 0.0
    %167 = vmatpush1.xpose.msra.mxu0 0.0
    %168 = vmatprep.subr.mxu0 0.0
    %169 = vmatpush1.xpose.msra.mxu0 0.0
    %170 = vmatprep.subr.mxu0 0.0
    %171 = vmatpush1.xpose.msra.mxu0 0.0
    %172 = vmatprep.subr.mxu0 0.0
    %173 = vmatpush1.xpose.msra.mxu0 0.0
    %174 = vmatprep.subr.mxu0 0.0
    %175 = vmatpush1.xpose.msra.mxu0 0.0
    %176 = vmatprep.subr.mxu0 0.0
    %177 = vmatpush1.xpose.msra.mxu0 0.0
    %178 = vmatprep.subr.mxu0 0.0
    %179 = vmatpush1.xpose.msra.mxu0 0.0
    %180 = vmatprep.subr.mxu0 0.0
    %181 = vmatpush1.xpose.msra.mxu0 0.0
    %182 = vmatprep.subr.mxu0 0.0
    %183 = vmatpush1.xpose.msra.mxu0 0.0
    %184 = vmatprep.subr.mxu0 0.0
    %185 = vmatpush1.xpose.msra.mxu0 0.0
    %186 = vmatprep.subr.mxu0 0.0
    %187 = vmatpush1.xpose.msra.mxu0 0.0
    %188 = vmatprep.subr.mxu0 0.0
    %189 = vmatpush1.xpose.msra.mxu0 %v156
    %190 = vmatprep.subr.mxu0 0.0
    %191 = vmatpush2.xpose.msra.mxu0 0.0
    %192 = vmatprep.subr.mxu0 0.0
    %193 = vmatpush2.xpose.msra.mxu0 0.0
    %194 = vmatprep.subr.mxu0 0.0
    %195 = vmatpush2.xpose.msra.mxu0 0.0
    %196 = vmatprep.subr.mxu0 0.0
    %197 = vmatpush2.xpose.msra.mxu0 0.0
    %198 = vmatprep.subr.mxu0 0.0
    %199 = vmatpush2.xpose.msra.mxu0 0.0
    %200 = vmatprep.subr.mxu0 0.0
    %201 = vmatpush2.xpose.msra.mxu0 0.0
    %202 = vmatprep.subr.mxu0 0.0
    %203 = vmatpush2.xpose.msra.mxu0 0.0
    %204 = vmatprep.subr.mxu0 0.0
    %205 = vmatpush2.xpose.msra.mxu0 0.0
    %206 = vmatprep.subr.mxu0 0.0
    %207 = vmatpush2.xpose.msra.mxu0 0.0
    %208 = vmatprep.subr.mxu0 0.0
    %209 = vmatpush2.xpose.msra.mxu0 0.0
    %210 = vmatprep.subr.mxu0 0.0
    %211 = vmatpush2.xpose.msra.mxu0 0.0
    %212 = vmatprep.subr.mxu0 0.0
    %213 = vmatpush2.xpose.msra.mxu0 0.0
    %214 = vmatprep.subr.mxu0 0.0
    %215 = vmatpush2.xpose.msra.mxu0 0.0
    %216 = vmatprep.subr.mxu0 0.0
    %217 = vmatpush2.xpose.msra.mxu0 0.0
    %218 = vmatprep.subr.mxu0 0.0
    %219 = vmatpush2.xpose.msra.mxu0 0.0
    %220 = vmatprep.subr.mxu0 0.0
    %221 = vmatpush2.xpose.msra.mxu0 0.0
    %222 = vmatprep.mubr.f32.mxu0 0.0
    %223 = vmatmul.mubr.f32.gmra.mxu0 %v154
    %v224 = vpop.f32.mrf.mxu0
    %v225 = vadd.f32 0.0, %v224
    %v226 = vpop.f32.mrf.mxu0
    %227 = vdwg.mxu0
    %229 = vrot.lane.b32.xlu0 %v147, 96
    %v230 = vpop.permute.xlu0 %229
    %v231 = vsel %vm153, %v147, 0
    %v233 = vsel %vm153, %v230, 0
    %235 = vmatprep.subr.mxu0 0.0
    %236 = vmatpush1.xpose.msra.mxu0 0.0
    %237 = vmatprep.subr.mxu0 0.0
    %238 = vmatpush1.xpose.msra.mxu0 0.0
    %239 = vmatprep.subr.mxu0 0.0
    %240 = vmatpush1.xpose.msra.mxu0 0.0
    %241 = vmatprep.subr.mxu0 0.0
    %242 = vmatpush1.xpose.msra.mxu0 0.0
    %243 = vmatprep.subr.mxu0 0.0
    %244 = vmatpush1.xpose.msra.mxu0 0.0
    %245 = vmatprep.subr.mxu0 0.0
    %246 = vmatpush1.xpose.msra.mxu0 0.0
    %247 = vmatprep.subr.mxu0 0.0
    %248 = vmatpush1.xpose.msra.mxu0 0.0
    %249 = vmatprep.subr.mxu0 0.0
    %250 = vmatpush1.xpose.msra.mxu0 0.0
    %251 = vmatprep.subr.mxu0 0.0
    %252 = vmatpush1.xpose.msra.mxu0 0.0
    %253 = vmatprep.subr.mxu0 0.0
    %254 = vmatpush1.xpose.msra.mxu0 0.0
    %255 = vmatprep.subr.mxu0 0.0
    %256 = vmatpush1.xpose.msra.mxu0 0.0
    %257 = vmatprep.subr.mxu0 0.0
    %258 = vmatpush1.xpose.msra.mxu0 0.0
    %259 = vmatprep.subr.mxu0 0.0
    %260 = vmatpush1.xpose.msra.mxu0 0.0
    %261 = vmatprep.subr.mxu0 0.0
    %262 = vmatpush1.xpose.msra.mxu0 0.0
    %263 = vmatprep.subr.mxu0 0.0
    %264 = vmatpush1.xpose.msra.mxu0 0.0
    %265 = vmatprep.subr.mxu0 0.0
    %266 = vmatpush1.xpose.msra.mxu0 %v233
    %267 = vmatprep.subr.mxu0 0.0
    %268 = vmatpush2.xpose.msra.mxu0 0.0
    %269 = vmatprep.subr.mxu0 0.0
    %270 = vmatpush2.xpose.msra.mxu0 0.0
    %271 = vmatprep.subr.mxu0 0.0
    %272 = vmatpush2.xpose.msra.mxu0 0.0
    %273 = vmatprep.subr.mxu0 0.0
    %274 = vmatpush2.xpose.msra.mxu0 0.0
    %275 = vmatprep.subr.mxu0 0.0
    %276 = vmatpush2.xpose.msra.mxu0 0.0
    %277 = vmatprep.subr.mxu0 0.0
    %278 = vmatpush2.xpose.msra.mxu0 0.0
    %279 = vmatprep.subr.mxu0 0.0
    %280 = vmatpush2.xpose.msra.mxu0 0.0
    %281 = vmatprep.subr.mxu0 0.0
    %282 = vmatpush2.xpose.msra.mxu0 0.0
    %283 = vmatprep.subr.mxu0 0.0
    %284 = vmatpush2.xpose.msra.mxu0 0.0
    %285 = vmatprep.subr.mxu0 0.0
    %286 = vmatpush2.xpose.msra.mxu0 0.0
    %287 = vmatprep.subr.mxu0 0.0
    %288 = vmatpush2.xpose.msra.mxu0 0.0
    %289 = vmatprep.subr.mxu0 0.0
    %290 = vmatpush2.xpose.msra.mxu0 0.0
    %291 = vmatprep.subr.mxu0 0.0
    %292 = vmatpush2.xpose.msra.mxu0 0.0
    %293 = vmatprep.subr.mxu0 0.0
    %294 = vmatpush2.xpose.msra.mxu0 0.0
    %295 = vmatprep.subr.mxu0 0.0
    %296 = vmatpush2.xpose.msra.mxu0 0.0
    %297 = vmatprep.subr.mxu0 0.0
    %298 = vmatpush2.xpose.msra.mxu0 0.0
    %299 = vmatprep.mubr.f32.mxu0 0.0
    %300 = vmatmul.mubr.f32.gmra.mxu0 %v231
    %v301 = vpop.f32.mrf.mxu0
    %v302 = vadd.f32 0.0, %v301
    %v303 = vpop.f32.mrf.mxu0
    %304 = vdwg.mxu0
    %v305 = vmul.f32 %v225, 0.35355338
    %v306 = vmul.f32 %v302, 0.35355338
    %v309 = vlaneseq
    %v310 = vshrl.u32 %v309, 7
    %v311 = vsub.s32 0, %v310
    %v312 = vrot.slane %v53, %v311
    %v313 = vlaneseq
    %v314 = vshrl.u32 %v313, 7
    %v315 = vsub.s32 0, %v314
    %v316 = vrot.slane %v54, %v315
    %v319 = vadd.f32 %v305, %v312
    %v320 = vadd.f32 %v306, %v316
    %v321 = vsel %vm153, %v319, -inf
    %322 = vmax.xlane.f32.xlu0 %v321
    %v323 = vpop.xlane.xlu0 %322
    %v324 = vsel %vm153, %v320, -inf
    %325 = vmax.xlane.f32.xlu0 %v324
    %v326 = vpop.xlane.xlu0 %325
    %v327 = vsub.f32 %v319, %v323
    %v328 = vsub.f32 %v320, %v326
    %v329 = vmul.f32 %v327, 1.442695
    %v330 = vpow.pop %v329
    %v331 = vmul.f32 %v328, 1.442695
    %v332 = vpow.pop %v331
    %v333 = vsel %vm153, %v330, 0.0
    %334 = vadd.xlane.f32.xlu0 %v333
    %v335 = vpop.xlane.xlu0 %334
    %v336 = vsel %vm153, %v332, 0.0
    %337 = vadd.xlane.f32.xlu0 %v336
    %v338 = vpop.xlane.xlu0 %337
    %v339 = vrcp.pop %v335
    %v340 = vrcp.pop %v338
    %v341 = vmul.f32 %v330, %v339
    %v342 = vmul.f32 %v332, %v340
    %343 = vrot.lane.b32.xlu0 %v142, 64
    %v344 = vpop.permute.xlu0 %343
    %v347 = vsel %vm153, %v341, 0
    %349 = vmatprep.subr.mxu0 0.0
    %350 = vmatpush1.msra.mxu0 0.0
    %351 = vmatprep.subr.mxu0 0.0
    %352 = vmatpush1.msra.mxu0 0.0
    %353 = vmatprep.subr.mxu0 0.0
    %354 = vmatpush1.msra.mxu0 0.0
    %355 = vmatprep.subr.mxu0 0.0
    %356 = vmatpush1.msra.mxu0 0.0
    %357 = vmatprep.subr.mxu0 0.0
    %358 = vmatpush1.msra.mxu0 0.0
    %359 = vmatprep.subr.mxu0 0.0
    %360 = vmatpush1.msra.mxu0 0.0
    %361 = vmatprep.subr.mxu0 0.0
    %362 = vmatpush1.msra.mxu0 0.0
    %363 = vmatprep.subr.mxu0 0.0
    %364 = vmatpush1.msra.mxu0 0.0
    %365 = vmatprep.subr.mxu0 0.0
    %366 = vmatpush1.msra.mxu0 0.0
    %367 = vmatprep.subr.mxu0 0.0
    %368 = vmatpush1.msra.mxu0 0.0
    %369 = vmatprep.subr.mxu0 0.0
    %370 = vmatpush1.msra.mxu0 0.0
    %371 = vmatprep.subr.mxu0 0.0
    %372 = vmatpush1.msra.mxu0 0.0
    %373 = vmatprep.subr.mxu0 0.0
    %374 = vmatpush1.msra.mxu0 0.0
    %375 = vmatprep.subr.mxu0 0.0
    %376 = vmatpush1.msra.mxu0 0.0
    %377 = vmatprep.subr.mxu0 0.0
    %378 = vmatpush1.msra.mxu0 0.0
    %379 = vmatprep.subr.mxu0 0.0
    %380 = vmatpush1.msra.mxu0 %v344
    %381 = vmatprep.subr.mxu0 0.0
    %382 = vmatpush2.msra.mxu0 0.0
    %383 = vmatprep.subr.mxu0 0.0
    %384 = vmatpush2.msra.mxu0 0.0
    %385 = vmatprep.subr.mxu0 0.0
    %386 = vmatpush2.msra.mxu0 0.0
    %387 = vmatprep.subr.mxu0 0.0
    %388 = vmatpush2.msra.mxu0 0.0
    %389 = vmatprep.subr.mxu0 0.0
    %390 = vmatpush2.msra.mxu0 0.0
    %391 = vmatprep.subr.mxu0 0.0
    %392 = vmatpush2.msra.mxu0 0.0
    %393 = vmatprep.subr.mxu0 0.0
    %394 = vmatpush2.msra.mxu0 0.0
    %395 = vmatprep.subr.mxu0 0.0
    %396 = vmatpush2.msra.mxu0 0.0
    %397 = vmatprep.subr.mxu0 0.0
    %398 = vmatpush2.msra.mxu0 0.0
    %399 = vmatprep.subr.mxu0 0.0
    %400 = vmatpush2.msra.mxu0 0.0
    %401 = vmatprep.subr.mxu0 0.0
    %402 = vmatpush2.msra.mxu0 0.0
    %403 = vmatprep.subr.mxu0 0.0
    %404 = vmatpush2.msra.mxu0 0.0
    %405 = vmatprep.subr.mxu0 0.0
    %406 = vmatpush2.msra.mxu0 0.0
    %407 = vmatprep.subr.mxu0 0.0
    %408 = vmatpush2.msra.mxu0 0.0
    %409 = vmatprep.subr.mxu0 0.0
    %410 = vmatpush2.msra.mxu0 0.0
    %411 = vmatprep.subr.mxu0 0.0
    %412 = vmatpush2.msra.mxu0 0.0
    %413 = vmatprep.mubr.f32.mxu0 0.0
    %414 = vmatmul.mubr.f32.gmra.mxu0 %v347
    %v415 = vpop.f32.mrf.mxu0
    %v416 = vadd.f32 0.0, %v415
    %v417 = vpop.f32.mrf.mxu0
    %418 = vdwg.mxu0
    %419 = vrot.lane.b32.xlu0 %v147, 64
    %v420 = vpop.permute.xlu0 %419
    %v423 = vsel %vm153, %v342, 0
    %425 = vmatprep.subr.mxu0 0.0
    %426 = vmatpush1.msra.mxu0 0.0
    %427 = vmatprep.subr.mxu0 0.0
    %428 = vmatpush1.msra.mxu0 0.0
    %429 = vmatprep.subr.mxu0 0.0
    %430 = vmatpush1.msra.mxu0 0.0
    %431 = vmatprep.subr.mxu0 0.0
    %432 = vmatpush1.msra.mxu0 0.0
    %433 = vmatprep.subr.mxu0 0.0
    %434 = vmatpush1.msra.mxu0 0.0
    %435 = vmatprep.subr.mxu0 0.0
    %436 = vmatpush1.msra.mxu0 0.0
    %437 = vmatprep.subr.mxu0 0.0
    %438 = vmatpush1.msra.mxu0 0.0
    %439 = vmatprep.subr.mxu0 0.0
    %440 = vmatpush1.msra.mxu0 0.0
    %441 = vmatprep.subr.mxu0 0.0
    %442 = vmatpush1.msra.mxu0 0.0
    %443 = vmatprep.subr.mxu0 0.0
    %444 = vmatpush1.msra.mxu0 0.0
    %445 = vmatprep.subr.mxu0 0.0
    %446 = vmatpush1.msra.mxu0 0.0
    %447 = vmatprep.subr.mxu0 0.0
    %448 = vmatpush1.msra.mxu0 0.0
    %449 = vmatprep.subr.mxu0 0.0
    %450 = vmatpush1.msra.mxu0 0.0
    %451 = vmatprep.subr.mxu0 0.0
    %452 = vmatpush1.msra.mxu0 0.0
    %453 = vmatprep.subr.mxu0 0.0
    %454 = vmatpush1.msra.mxu0 0.0
    %455 = vmatprep.subr.mxu0 0.0
    %456 = vmatpush1.msra.mxu0 %v420
    %457 = vmatprep.subr.mxu0 0.0
    %458 = vmatpush2.msra.mxu0 0.0
    %459 = vmatprep.subr.mxu0 0.0
    %460 = vmatpush2.msra.mxu0 0.0
    %461 = vmatprep.subr.mxu0 0.0
    %462 = vmatpush2.msra.mxu0 0.0
    %463 = vmatprep.subr.mxu0 0.0
    %464 = vmatpush2.msra.mxu0 0.0
    %465 = vmatprep.subr.mxu0 0.0
    %466 = vmatpush2.msra.mxu0 0.0
    %467 = vmatprep.subr.mxu0 0.0
    %468 = vmatpush2.msra.mxu0 0.0
    %469 = vmatprep.subr.mxu0 0.0
    %470 = vmatpush2.msra.mxu0 0.0
    %471 = vmatprep.subr.mxu0 0.0
    %472 = vmatpush2.msra.mxu0 0.0
    %473 = vmatprep.subr.mxu0 0.0
    %474 = vmatpush2.msra.mxu0 0.0
    %475 = vmatprep.subr.mxu0 0.0
    %476 = vmatpush2.msra.mxu0 0.0
    %477 = vmatprep.subr.mxu0 0.0
    %478 = vmatpush2.msra.mxu0 0.0
    %479 = vmatprep.subr.mxu0 0.0
    %480 = vmatpush2.msra.mxu0 0.0
    %481 = vmatprep.subr.mxu0 0.0
    %482 = vmatpush2.msra.mxu0 0.0
    %483 = vmatprep.subr.mxu0 0.0
    %484 = vmatpush2.msra.mxu0 0.0
    %485 = vmatprep.subr.mxu0 0.0
    %486 = vmatpush2.msra.mxu0 0.0
    %487 = vmatprep.subr.mxu0 0.0
    %488 = vmatpush2.msra.mxu0 0.0
    %489 = vmatprep.mubr.f32.mxu0 0.0
    %490 = vmatmul.mubr.f32.gmra.mxu0 %v423
    %v491 = vpop.f32.mrf.mxu0
    %v492 = vadd.f32 0.0, %v491
    %v493 = vpop.f32.mrf.mxu0
    %494 = vdwg.mxu0
    %495 = vrot.lane.b32.xlu0 %v142, 120
    %v496 = vpop.permute.xlu0 %495
    %497 = vrot.lane.b32.xlu0 %v142, 88
    %v498 = vpop.permute.xlu0 %497
    %v499 = vsel %vm153, %v496, 0
    %v501 = vsel %vm153, %v498, 0
    %503 = vmatprep.subr.mxu0 0.0
    %504 = vmatpush1.xpose.msra.mxu0 0.0
    %505 = vmatprep.subr.mxu0 0.0
    %506 = vmatpush1.xpose.msra.mxu0 0.0
    %507 = vmatprep.subr.mxu0 0.0
    %508 = vmatpush1.xpose.msra.mxu0 0.0
    %509 = vmatprep.subr.mxu0 0.0
    %510 = vmatpush1.xpose.msra.mxu0 0.0
    %511 = vmatprep.subr.mxu0 0.0
    %512 = vmatpush1.xpose.msra.mxu0 0.0
    %513 = vmatprep.subr.mxu0 0.0
    %514 = vmatpush1.xpose.msra.mxu0 0.0
    %515 = vmatprep.subr.mxu0 0.0
    %516 = vmatpush1.xpose.msra.mxu0 0.0
    %517 = vmatprep.subr.mxu0 0.0
    %518 = vmatpush1.xpose.msra.mxu0 0.0
    %519 = vmatprep.subr.mxu0 0.0
    %520 = vmatpush1.xpose.msra.mxu0 0.0
    %521 = vmatprep.subr.mxu0 0.0
    %522 = vmatpush1.xpose.msra.mxu0 0.0
    %523 = vmatprep.subr.mxu0 0.0
    %524 = vmatpush1.xpose.msra.mxu0 0.0
    %525 = vmatprep.subr.mxu0 0.0
    %526 = vmatpush1.xpose.msra.mxu0 0.0
    %527 = vmatprep.subr.mxu0 0.0
    %528 = vmatpush1.xpose.msra.mxu0 0.0
    %529 = vmatprep.subr.mxu0 0.0
    %530 = vmatpush1.xpose.msra.mxu0 0.0
    %531 = vmatprep.subr.mxu0 0.0
    %532 = vmatpush1.xpose.msra.mxu0 0.0
    %533 = vmatprep.subr.mxu0 0.0
    %534 = vmatpush1.xpose.msra.mxu0 %v501
    %535 = vmatprep.subr.mxu0 0.0
    %536 = vmatpush2.xpose.msra.mxu0 0.0
    %537 = vmatprep.subr.mxu0 0.0
    %538 = vmatpush2.xpose.msra.mxu0 0.0
    %539 = vmatprep.subr.mxu0 0.0
    %540 = vmatpush2.xpose.msra.mxu0 0.0
    %541 = vmatprep.subr.mxu0 0.0
    %542 = vmatpush2.xpose.msra.mxu0 0.0
    %543 = vmatprep.subr.mxu0 0.0
    %544 = vmatpush2.xpose.msra.mxu0 0.0
    %545 = vmatprep.subr.mxu0 0.0
    %546 = vmatpush2.xpose.msra.mxu0 0.0
    %547 = vmatprep.subr.mxu0 0.0
    %548 = vmatpush2.xpose.msra.mxu0 0.0
    %549 = vmatprep.subr.mxu0 0.0
    %550 = vmatpush2.xpose.msra.mxu0 0.0
    %551 = vmatprep.subr.mxu0 0.0
    %552 = vmatpush2.xpose.msra.mxu0 0.0
    %553 = vmatprep.subr.mxu0 0.0
    %554 = vmatpush2.xpose.msra.mxu0 0.0
    %555 = vmatprep.subr.mxu0 0.0
    %556 = vmatpush2.xpose.msra.mxu0 0.0
    %557 = vmatprep.subr.mxu0 0.0
    %558 = vmatpush2.xpose.msra.mxu0 0.0
    %559 = vmatprep.subr.mxu0 0.0
    %560 = vmatpush2.xpose.msra.mxu0 0.0
    %561 = vmatprep.subr.mxu0 0.0
    %562 = vmatpush2.xpose.msra.mxu0 0.0
    %563 = vmatprep.subr.mxu0 0.0
    %564 = vmatpush2.xpose.msra.mxu0 0.0
    %565 = vmatprep.subr.mxu0 0.0
    %566 = vmatpush2.xpose.msra.mxu0 0.0
    %567 = vmatprep.mubr.f32.mxu0 0.0
    %568 = vmatmul.mubr.f32.gmra.mxu0 %v499
    %v569 = vpop.f32.mrf.mxu0
    %v570 = vadd.f32 0.0, %v569
    %v571 = vpop.f32.mrf.mxu0
    %572 = vdwg.mxu0
    %573 = vrot.lane.b32.xlu0 %v147, 120
    %v574 = vpop.permute.xlu0 %573
    %575 = vrot.lane.b32.xlu0 %v147, 88
    %v576 = vpop.permute.xlu0 %575
    %v577 = vsel %vm153, %v574, 0
    %v579 = vsel %vm153, %v576, 0
    %581 = vmatprep.subr.mxu0 0.0
    %582 = vmatpush1.xpose.msra.mxu0 0.0
    %583 = vmatprep.subr.mxu0 0.0
    %584 = vmatpush1.xpose.msra.mxu0 0.0
    %585 = vmatprep.subr.mxu0 0.0
    %586 = vmatpush1.xpose.msra.mxu0 0.0
    %587 = vmatprep.subr.mxu0 0.0
    %588 = vmatpush1.xpose.msra.mxu0 0.0
    %589 = vmatprep.subr.mxu0 0.0
    %590 = vmatpush1.xpose.msra.mxu0 0.0
    %591 = vmatprep.subr.mxu0 0.0
    %592 = vmatpush1.xpose.msra.mxu0 0.0
    %593 = vmatprep.subr.mxu0 0.0
    %594 = vmatpush1.xpose.msra.mxu0 0.0
    %595 = vmatprep.subr.mxu0 0.0
    %596 = vmatpush1.xpose.msra.mxu0 0.0
    %597 = vmatprep.subr.mxu0 0.0
    %598 = vmatpush1.xpose.msra.mxu0 0.0
    %599 = vmatprep.subr.mxu0 0.0
    %600 = vmatpush1.xpose.msra.mxu0 0.0
    %601 = vmatprep.subr.mxu0 0.0
    %602 = vmatpush1.xpose.msra.mxu0 0.0
    %603 = vmatprep.subr.mxu0 0.0
    %604 = vmatpush1.xpose.msra.mxu0 0.0
    %605 = vmatprep.subr.mxu0 0.0
    %606 = vmatpush1.xpose.msra.mxu0 0.0
    %607 = vmatprep.subr.mxu0 0.0
    %608 = vmatpush1.xpose.msra.mxu0 0.0
    %609 = vmatprep.subr.mxu0 0.0
    %610 = vmatpush1.xpose.msra.mxu0 0.0
    %611 = vmatprep.subr.mxu0 0.0
    %612 = vmatpush1.xpose.msra.mxu0 %v579
    %613 = vmatprep.subr.mxu0 0.0
    %614 = vmatpush2.xpose.msra.mxu0 0.0
    %615 = vmatprep.subr.mxu0 0.0
    %616 = vmatpush2.xpose.msra.mxu0 0.0
    %617 = vmatprep.subr.mxu0 0.0
    %618 = vmatpush2.xpose.msra.mxu0 0.0
    %619 = vmatprep.subr.mxu0 0.0
    %620 = vmatpush2.xpose.msra.mxu0 0.0
    %621 = vmatprep.subr.mxu0 0.0
    %622 = vmatpush2.xpose.msra.mxu0 0.0
    %623 = vmatprep.subr.mxu0 0.0
    %624 = vmatpush2.xpose.msra.mxu0 0.0
    %625 = vmatprep.subr.mxu0 0.0
    %626 = vmatpush2.xpose.msra.mxu0 0.0
    %627 = vmatprep.subr.mxu0 0.0
    %628 = vmatpush2.xpose.msra.mxu0 0.0
    %629 = vmatprep.subr.mxu0 0.0
    %630 = vmatpush2.xpose.msra.mxu0 0.0
    %631 = vmatprep.subr.mxu0 0.0
    %632 = vmatpush2.xpose.msra.mxu0 0.0
    %633 = vmatprep.subr.mxu0 0.0
    %634 = vmatpush2.xpose.msra.mxu0 0.0
    %635 = vmatprep.subr.mxu0 0.0
    %636 = vmatpush2.xpose.msra.mxu0 0.0
    %637 = vmatprep.subr.mxu0 0.0
    %638 = vmatpush2.xpose.msra.mxu0 0.0
    %639 = vmatprep.subr.mxu0 0.0
    %640 = vmatpush2.xpose.msra.mxu0 0.0
    %641 = vmatprep.subr.mxu0 0.0
    %642 = vmatpush2.xpose.msra.mxu0 0.0
    %643 = vmatprep.subr.mxu0 0.0
    %644 = vmatpush2.xpose.msra.mxu0 0.0
    %645 = vmatprep.mubr.f32.mxu0 0.0
    %646 = vmatmul.mubr.f32.gmra.mxu0 %v577
    %v647 = vpop.f32.mrf.mxu0
    %v648 = vadd.f32 0.0, %v647
    %v649 = vpop.f32.mrf.mxu0
    %650 = vdwg.mxu0
    %v651 = vmul.f32 %v570, 0.35355338
    %v652 = vmul.f32 %v648, 0.35355338
    %v653 = vadd.f32 %v651, %v312
    %v654 = vadd.f32 %v652, %v316
    %v655 = vsel %vm153, %v653, -inf
    %656 = vmax.xlane.f32.xlu0 %v655
    %v657 = vpop.xlane.xlu0 %656
    %v658 = vsel %vm153, %v654, -inf
    %659 = vmax.xlane.f32.xlu0 %v658
    %v660 = vpop.xlane.xlu0 %659
    %v661 = vsub.f32 %v653, %v657
    %v662 = vsub.f32 %v654, %v660
    %v663 = vmul.f32 %v661, 1.442695
    %v664 = vpow.pop %v663
    %v665 = vmul.f32 %v662, 1.442695
    %v666 = vpow.pop %v665
    %v667 = vsel %vm153, %v664, 0.0
    %668 = vadd.xlane.f32.xlu0 %v667
    %v669 = vpop.xlane.xlu0 %668
    %v670 = vsel %vm153, %v666, 0.0
    %671 = vadd.xlane.f32.xlu0 %v670
    %v672 = vpop.xlane.xlu0 %671
    %v673 = vrcp.pop %v669
    %v674 = vrcp.pop %v672
    %v675 = vmul.f32 %v664, %v673
    %v676 = vmul.f32 %v666, %v674
    %677 = vrot.lane.b32.xlu0 %v142, 56
    %v678 = vpop.permute.xlu0 %677
    %v681 = vsel %vm153, %v675, 0
    %683 = vmatprep.subr.mxu0 0.0
    %684 = vmatpush1.msra.mxu0 0.0
    %685 = vmatprep.subr.mxu0 0.0
    %686 = vmatpush1.msra.mxu0 0.0
    %687 = vmatprep.subr.mxu0 0.0
    %688 = vmatpush1.msra.mxu0 0.0
    %689 = vmatprep.subr.mxu0 0.0
    %690 = vmatpush1.msra.mxu0 0.0
    %691 = vmatprep.subr.mxu0 0.0
    %692 = vmatpush1.msra.mxu0 0.0
    %693 = vmatprep.subr.mxu0 0.0
    %694 = vmatpush1.msra.mxu0 0.0
    %695 = vmatprep.subr.mxu0 0.0
    %696 = vmatpush1.msra.mxu0 0.0
    %697 = vmatprep.subr.mxu0 0.0
    %698 = vmatpush1.msra.mxu0 0.0
    %699 = vmatprep.subr.mxu0 0.0
    %700 = vmatpush1.msra.mxu0 0.0
    %701 = vmatprep.subr.mxu0 0.0
    %702 = vmatpush1.msra.mxu0 0.0
    %703 = vmatprep.subr.mxu0 0.0
    %704 = vmatpush1.msra.mxu0 0.0
    %705 = vmatprep.subr.mxu0 0.0
    %706 = vmatpush1.msra.mxu0 0.0
    %707 = vmatprep.subr.mxu0 0.0
    %708 = vmatpush1.msra.mxu0 0.0
    %709 = vmatprep.subr.mxu0 0.0
    %710 = vmatpush1.msra.mxu0 0.0
    %711 = vmatprep.subr.mxu0 0.0
    %712 = vmatpush1.msra.mxu0 0.0
    %713 = vmatprep.subr.mxu0 0.0
    %714 = vmatpush1.msra.mxu0 %v678
    %715 = vmatprep.subr.mxu0 0.0
    %716 = vmatpush2.msra.mxu0 0.0
    %717 = vmatprep.subr.mxu0 0.0
    %718 = vmatpush2.msra.mxu0 0.0
    %719 = vmatprep.subr.mxu0 0.0
    %720 = vmatpush2.msra.mxu0 0.0
    %721 = vmatprep.subr.mxu0 0.0
    %722 = vmatpush2.msra.mxu0 0.0
    %723 = vmatprep.subr.mxu0 0.0
    %724 = vmatpush2.msra.mxu0 0.0
    %725 = vmatprep.subr.mxu0 0.0
    %726 = vmatpush2.msra.mxu0 0.0
    %727 = vmatprep.subr.mxu0 0.0
    %728 = vmatpush2.msra.mxu0 0.0
    %729 = vmatprep.subr.mxu0 0.0
    %730 = vmatpush2.msra.mxu0 0.0
    %731 = vmatprep.subr.mxu0 0.0
    %732 = vmatpush2.msra.mxu0 0.0
    %733 = vmatprep.subr.mxu0 0.0
    %734 = vmatpush2.msra.mxu0 0.0
    %735 = vmatprep.subr.mxu0 0.0
    %736 = vmatpush2.msra.mxu0 0.0
    %737 = vmatprep.subr.mxu0 0.0
    %738 = vmatpush2.msra.mxu0 0.0
    %739 = vmatprep.subr.mxu0 0.0
    %740 = vmatpush2.msra.mxu0 0.0
    %741 = vmatprep.subr.mxu0 0.0
    %742 = vmatpush2.msra.mxu0 0.0
    %743 = vmatprep.subr.mxu0 0.0
    %744 = vmatpush2.msra.mxu0 0.0
    %745 = vmatprep.subr.mxu0 0.0
    %746 = vmatpush2.msra.mxu0 0.0
    %747 = vmatprep.mubr.f32.mxu0 0.0
    %748 = vmatmul.mubr.f32.gmra.mxu0 %v681
    %v749 = vpop.f32.mrf.mxu0
    %v750 = vadd.f32 0.0, %v749
    %v751 = vpop.f32.mrf.mxu0
    %752 = vdwg.mxu0
    %753 = vrot.lane.b32.xlu0 %v147, 56
    %v754 = vpop.permute.xlu0 %753
    %v757 = vsel %vm153, %v676, 0
    %759 = vmatprep.subr.mxu0 0.0
    %760 = vmatpush1.msra.mxu0 0.0
    %761 = vmatprep.subr.mxu0 0.0
    %762 = vmatpush1.msra.mxu0 0.0
    %763 = vmatprep.subr.mxu0 0.0
    %764 = vmatpush1.msra.mxu0 0.0
    %765 = vmatprep.subr.mxu0 0.0
    %766 = vmatpush1.msra.mxu0 0.0
    %767 = vmatprep.subr.mxu0 0.0
    %768 = vmatpush1.msra.mxu0 0.0
    %769 = vmatprep.subr.mxu0 0.0
    %770 = vmatpush1.msra.mxu0 0.0
    %771 = vmatprep.subr.mxu0 0.0
    %772 = vmatpush1.msra.mxu0 0.0
    %773 = vmatprep.subr.mxu0 0.0
    %774 = vmatpush1.msra.mxu0 0.0
    %775 = vmatprep.subr.mxu0 0.0
    %776 = vmatpush1.msra.mxu0 0.0
    %777 = vmatprep.subr.mxu0 0.0
    %778 = vmatpush1.msra.mxu0 0.0
    %779 = vmatprep.subr.mxu0 0.0
    %780 = vmatpush1.msra.mxu0 0.0
    %781 = vmatprep.subr.mxu0 0.0
    %782 = vmatpush1.msra.mxu0 0.0
    %783 = vmatprep.subr.mxu0 0.0
    %784 = vmatpush1.msra.mxu0 0.0
    %785 = vmatprep.subr.mxu0 0.0
    %786 = vmatpush1.msra.mxu0 0.0
    %787 = vmatprep.subr.mxu0 0.0
    %788 = vmatpush1.msra.mxu0 0.0
    %789 = vmatprep.subr.mxu0 0.0
    %790 = vmatpush1.msra.mxu0 %v754
    %791 = vmatprep.subr.mxu0 0.0
    %792 = vmatpush2.msra.mxu0 0.0
    %793 = vmatprep.subr.mxu0 0.0
    %794 = vmatpush2.msra.mxu0 0.0
    %795 = vmatprep.subr.mxu0 0.0
    %796 = vmatpush2.msra.mxu0 0.0
    %797 = vmatprep.subr.mxu0 0.0
    %798 = vmatpush2.msra.mxu0 0.0
    %799 = vmatprep.subr.mxu0 0.0
    %800 = vmatpush2.msra.mxu0 0.0
    %801 = vmatprep.subr.mxu0 0.0
    %802 = vmatpush2.msra.mxu0 0.0
    %803 = vmatprep.subr.mxu0 0.0
    %804 = vmatpush2.msra.mxu0 0.0
    %805 = vmatprep.subr.mxu0 0.0
    %806 = vmatpush2.msra.mxu0 0.0
    %807 = vmatprep.subr.mxu0 0.0
    %808 = vmatpush2.msra.mxu0 0.0
    %809 = vmatprep.subr.mxu0 0.0
    %810 = vmatpush2.msra.mxu0 0.0
    %811 = vmatprep.subr.mxu0 0.0
    %812 = vmatpush2.msra.mxu0 0.0
    %813 = vmatprep.subr.mxu0 0.0
    %814 = vmatpush2.msra.mxu0 0.0
    %815 = vmatprep.subr.mxu0 0.0
    %816 = vmatpush2.msra.mxu0 0.0
    %817 = vmatprep.subr.mxu0 0.0
    %818 = vmatpush2.msra.mxu0 0.0
    %819 = vmatprep.subr.mxu0 0.0
    %820 = vmatpush2.msra.mxu0 0.0
    %821 = vmatprep.subr.mxu0 0.0
    %822 = vmatpush2.msra.mxu0 0.0
    %823 = vmatprep.mubr.f32.mxu0 0.0
    %824 = vmatmul.mubr.f32.gmra.mxu0 %v757
    %v825 = vpop.f32.mrf.mxu0
    %v826 = vadd.f32 0.0, %v825
    %v827 = vpop.f32.mrf.mxu0
    %828 = vdwg.mxu0
    %829 = vrot.lane.b32.xlu0 %v142, 112
    %v830 = vpop.permute.xlu0 %829
    %831 = vrot.lane.b32.xlu0 %v142, 80
    %v832 = vpop.permute.xlu0 %831
    %v833 = vsel %vm153, %v830, 0
    %v835 = vsel %vm153, %v832, 0
    %837 = vmatprep.subr.mxu0 0.0
    %838 = vmatpush1.xpose.msra.mxu0 0.0
    %839 = vmatprep.subr.mxu0 0.0
    %840 = vmatpush1.xpose.msra.mxu0 0.0
    %841 = vmatprep.subr.mxu0 0.0
    %842 = vmatpush1.xpose.msra.mxu0 0.0
    %843 = vmatprep.subr.mxu0 0.0
    %844 = vmatpush1.xpose.msra.mxu0 0.0
    %845 = vmatprep.subr.mxu0 0.0
    %846 = vmatpush1.xpose.msra.mxu0 0.0
    %847 = vmatprep.subr.mxu0 0.0
    %848 = vmatpush1.xpose.msra.mxu0 0.0
    %849 = vmatprep.subr.mxu0 0.0
    %850 = vmatpush1.xpose.msra.mxu0 0.0
    %851 = vmatprep.subr.mxu0 0.0
    %852 = vmatpush1.xpose.msra.mxu0 0.0
    %853 = vmatprep.subr.mxu0 0.0
    %854 = vmatpush1.xpose.msra.mxu0 0.0
    %855 = vmatprep.subr.mxu0 0.0
    %856 = vmatpush1.xpose.msra.mxu0 0.0
    %857 = vmatprep.subr.mxu0 0.0
    %858 = vmatpush1.xpose.msra.mxu0 0.0
    %859 = vmatprep.subr.mxu0 0.0
    %860 = vmatpush1.xpose.msra.mxu0 0.0
    %861 = vmatprep.subr.mxu0 0.0
    %862 = vmatpush1.xpose.msra.mxu0 0.0
    %863 = vmatprep.subr.mxu0 0.0
    %864 = vmatpush1.xpose.msra.mxu0 0.0
    %865 = vmatprep.subr.mxu0 0.0
    %866 = vmatpush1.xpose.msra.mxu0 0.0
    %867 = vmatprep.subr.mxu0 0.0
    %868 = vmatpush1.xpose.msra.mxu0 %v835
    %869 = vmatprep.subr.mxu0 0.0
    %870 = vmatpush2.xpose.msra.mxu0 0.0
    %871 = vmatprep.subr.mxu0 0.0
    %872 = vmatpush2.xpose.msra.mxu0 0.0
    %873 = vmatprep.subr.mxu0 0.0
    %874 = vmatpush2.xpose.msra.mxu0 0.0
    %875 = vmatprep.subr.mxu0 0.0
    %876 = vmatpush2.xpose.msra.mxu0 0.0
    %877 = vmatprep.subr.mxu0 0.0
    %878 = vmatpush2.xpose.msra.mxu0 0.0
    %879 = vmatprep.subr.mxu0 0.0
    %880 = vmatpush2.xpose.msra.mxu0 0.0
    %881 = vmatprep.subr.mxu0 0.0
    %882 = vmatpush2.xpose.msra.mxu0 0.0
    %883 = vmatprep.subr.mxu0 0.0
    %884 = vmatpush2.xpose.msra.mxu0 0.0
    %885 = vmatprep.subr.mxu0 0.0
    %886 = vmatpush2.xpose.msra.mxu0 0.0
    %887 = vmatprep.subr.mxu0 0.0
    %888 = vmatpush2.xpose.msra.mxu0 0.0
    %889 = vmatprep.subr.mxu0 0.0
    %890 = vmatpush2.xpose.msra.mxu0 0.0
    %891 = vmatprep.subr.mxu0 0.0
    %892 = vmatpush2.xpose.msra.mxu0 0.0
    %893 = vmatprep.subr.mxu0 0.0
    %894 = vmatpush2.xpose.msra.mxu0 0.0
    %895 = vmatprep.subr.mxu0 0.0
    %896 = vmatpush2.xpose.msra.mxu0 0.0
    %897 = vmatprep.subr.mxu0 0.0
    %898 = vmatpush2.xpose.msra.mxu0 0.0
    %899 = vmatprep.subr.mxu0 0.0
    %900 = vmatpush2.xpose.msra.mxu0 0.0
    %901 = vmatprep.mubr.f32.mxu0 0.0
    %902 = vmatmul.mubr.f32.gmra.mxu0 %v833
    %v903 = vpop.f32.mrf.mxu0
    %v904 = vadd.f32 0.0, %v903
    %v905 = vpop.f32.mrf.mxu0
    %906 = vdwg.mxu0
    %907 = vrot.lane.b32.xlu0 %v147, 112
    %v908 = vpop.permute.xlu0 %907
    %909 = vrot.lane.b32.xlu0 %v147, 80
    %v910 = vpop.permute.xlu0 %909
    %v911 = vsel %vm153, %v908, 0
    %v913 = vsel %vm153, %v910, 0
    %915 = vmatprep.subr.mxu0 0.0
    %916 = vmatpush1.xpose.msra.mxu0 0.0
    %917 = vmatprep.subr.mxu0 0.0
    %918 = vmatpush1.xpose.msra.mxu0 0.0
    %919 = vmatprep.subr.mxu0 0.0
    %920 = vmatpush1.xpose.msra.mxu0 0.0
    %921 = vmatprep.subr.mxu0 0.0
    %922 = vmatpush1.xpose.msra.mxu0 0.0
    %923 = vmatprep.subr.mxu0 0.0
    %924 = vmatpush1.xpose.msra.mxu0 0.0
    %925 = vmatprep.subr.mxu0 0.0
    %926 = vmatpush1.xpose.msra.mxu0 0.0
    %927 = vmatprep.subr.mxu0 0.0
    %928 = vmatpush1.xpose.msra.mxu0 0.0
    %929 = vmatprep.subr.mxu0 0.0
    %930 = vmatpush1.xpose.msra.mxu0 0.0
    %931 = vmatprep.subr.mxu0 0.0
    %932 = vmatpush1.xpose.msra.mxu0 0.0
    %933 = vmatprep.subr.mxu0 0.0
    %934 = vmatpush1.xpose.msra.mxu0 0.0
    %935 = vmatprep.subr.mxu0 0.0
    %936 = vmatpush1.xpose.msra.mxu0 0.0
    %937 = vmatprep.subr.mxu0 0.0
    %938 = vmatpush1.xpose.msra.mxu0 0.0
    %939 = vmatprep.subr.mxu0 0.0
    %940 = vmatpush1.xpose.msra.mxu0 0.0
    %941 = vmatprep.subr.mxu0 0.0
    %942 = vmatpush1.xpose.msra.mxu0 0.0
    %943 = vmatprep.subr.mxu0 0.0
    %944 = vmatpush1.xpose.msra.mxu0 0.0
    %945 = vmatprep.subr.mxu0 0.0
    %946 = vmatpush1.xpose.msra.mxu0 %v913
    %947 = vmatprep.subr.mxu0 0.0
    %948 = vmatpush2.xpose.msra.mxu0 0.0
    %949 = vmatprep.subr.mxu0 0.0
    %950 = vmatpush2.xpose.msra.mxu0 0.0
    %951 = vmatprep.subr.mxu0 0.0
    %952 = vmatpush2.xpose.msra.mxu0 0.0
    %953 = vmatprep.subr.mxu0 0.0
    %954 = vmatpush2.xpose.msra.mxu0 0.0
    %955 = vmatprep.subr.mxu0 0.0
    %956 = vmatpush2.xpose.msra.mxu0 0.0
    %957 = vmatprep.subr.mxu0 0.0
    %958 = vmatpush2.xpose.msra.mxu0 0.0
    %959 = vmatprep.subr.mxu0 0.0
    %960 = vmatpush2.xpose.msra.mxu0 0.0
    %961 = vmatprep.subr.mxu0 0.0
    %962 = vmatpush2.xpose.msra.mxu0 0.0
    %963 = vmatprep.subr.mxu0 0.0
    %964 = vmatpush2.xpose.msra.mxu0 0.0
    %965 = vmatprep.subr.mxu0 0.0
    %966 = vmatpush2.xpose.msra.mxu0 0.0
    %967 = vmatprep.subr.mxu0 0.0
    %968 = vmatpush2.xpose.msra.mxu0 0.0
    %969 = vmatprep.subr.mxu0 0.0
    %970 = vmatpush2.xpose.msra.mxu0 0.0
    %971 = vmatprep.subr.mxu0 0.0
    %972 = vmatpush2.xpose.msra.mxu0 0.0
    %973 = vmatprep.subr.mxu0 0.0
    %974 = vmatpush2.xpose.msra.mxu0 0.0
    %975 = vmatprep.subr.mxu0 0.0
    %976 = vmatpush2.xpose.msra.mxu0 0.0
    %977 = vmatprep.subr.mxu0 0.0
    %978 = vmatpush2.xpose.msra.mxu0 0.0
    %979 = vmatprep.mubr.f32.mxu0 0.0
    %980 = vmatmul.mubr.f32.gmra.mxu0 %v911
    %v981 = vpop.f32.mrf.mxu0
    %v982 = vadd.f32 0.0, %v981
    %v983 = vpop.f32.mrf.mxu0
    %984 = vdwg.mxu0
    %v985 = vmul.f32 %v904, 0.35355338
    %v986 = vmul.f32 %v982, 0.35355338
    %v987 = vadd.f32 %v985, %v312
    %v988 = vadd.f32 %v986, %v316
    %v989 = vsel %vm153, %v987, -inf
    %990 = vmax.xlane.f32.xlu0 %v989
    %v991 = vpop.xlane.xlu0 %990
    %v992 = vsel %vm153, %v988, -inf
    %993 = vmax.xlane.f32.xlu0 %v992
    %v994 = vpop.xlane.xlu0 %993
    %v995 = vsub.f32 %v987, %v991
    %v996 = vsub.f32 %v988, %v994
    %v997 = vmul.f32 %v995, 1.442695
    %v998 = vpow.pop %v997
    %v999 = vmul.f32 %v996, 1.442695
    %v1000 = vpow.pop %v999
    %v1001 = vsel %vm153, %v998, 0.0
    %1002 = vadd.xlane.f32.xlu0 %v1001
    %v1003 = vpop.xlane.xlu0 %1002
    %v1004 = vsel %vm153, %v1000, 0.0
    %1005 = vadd.xlane.f32.xlu0 %v1004
    %v1006 = vpop.xlane.xlu0 %1005
    %v1007 = vrcp.pop %v1003
    %v1008 = vrcp.pop %v1006
    %v1009 = vmul.f32 %v998, %v1007
    %v1010 = vmul.f32 %v1000, %v1008
    %1011 = vrot.lane.b32.xlu0 %v142, 48
    %v1012 = vpop.permute.xlu0 %1011
    %v1015 = vsel %vm153, %v1009, 0
    %1017 = vmatprep.subr.mxu0 0.0
    %1018 = vmatpush1.msra.mxu0 0.0
    %1019 = vmatprep.subr.mxu0 0.0
    %1020 = vmatpush1.msra.mxu0 0.0
    %1021 = vmatprep.subr.mxu0 0.0
    %1022 = vmatpush1.msra.mxu0 0.0
    %1023 = vmatprep.subr.mxu0 0.0
    %1024 = vmatpush1.msra.mxu0 0.0
    %1025 = vmatprep.subr.mxu0 0.0
    %1026 = vmatpush1.msra.mxu0 0.0
    %1027 = vmatprep.subr.mxu0 0.0
    %1028 = vmatpush1.msra.mxu0 0.0
    %1029 = vmatprep.subr.mxu0 0.0
    %1030 = vmatpush1.msra.mxu0 0.0
    %1031 = vmatprep.subr.mxu0 0.0
    %1032 = vmatpush1.msra.mxu0 0.0
    %1033 = vmatprep.subr.mxu0 0.0
    %1034 = vmatpush1.msra.mxu0 0.0
    %1035 = vmatprep.subr.mxu0 0.0
    %1036 = vmatpush1.msra.mxu0 0.0
    %1037 = vmatprep.subr.mxu0 0.0
    %1038 = vmatpush1.msra.mxu0 0.0
    %1039 = vmatprep.subr.mxu0 0.0
    %1040 = vmatpush1.msra.mxu0 0.0
    %1041 = vmatprep.subr.mxu0 0.0
    %1042 = vmatpush1.msra.mxu0 0.0
    %1043 = vmatprep.subr.mxu0 0.0
    %1044 = vmatpush1.msra.mxu0 0.0
    %1045 = vmatprep.subr.mxu0 0.0
    %1046 = vmatpush1.msra.mxu0 0.0
    %1047 = vmatprep.subr.mxu0 0.0
    %1048 = vmatpush1.msra.mxu0 %v1012
    %1049 = vmatprep.subr.mxu0 0.0
    %1050 = vmatpush2.msra.mxu0 0.0
    %1051 = vmatprep.subr.mxu0 0.0
    %1052 = vmatpush2.msra.mxu0 0.0
    %1053 = vmatprep.subr.mxu0 0.0
    %1054 = vmatpush2.msra.mxu0 0.0
    %1055 = vmatprep.subr.mxu0 0.0
    %1056 = vmatpush2.msra.mxu0 0.0
    %1057 = vmatprep.subr.mxu0 0.0
    %1058 = vmatpush2.msra.mxu0 0.0
    %1059 = vmatprep.subr.mxu0 0.0
    %1060 = vmatpush2.msra.mxu0 0.0
    %1061 = vmatprep.subr.mxu0 0.0
    %1062 = vmatpush2.msra.mxu0 0.0
    %1063 = vmatprep.subr.mxu0 0.0
    %1064 = vmatpush2.msra.mxu0 0.0
    %1065 = vmatprep.subr.mxu0 0.0
    %1066 = vmatpush2.msra.mxu0 0.0
    %1067 = vmatprep.subr.mxu0 0.0
    %1068 = vmatpush2.msra.mxu0 0.0
    %1069 = vmatprep.subr.mxu0 0.0
    %1070 = vmatpush2.msra.mxu0 0.0
    %1071 = vmatprep.subr.mxu0 0.0
    %1072 = vmatpush2.msra.mxu0 0.0
    %1073 = vmatprep.subr.mxu0 0.0
    %1074 = vmatpush2.msra.mxu0 0.0
    %1075 = vmatprep.subr.mxu0 0.0
    %1076 = vmatpush2.msra.mxu0 0.0
    %1077 = vmatprep.subr.mxu0 0.0
    %1078 = vmatpush2.msra.mxu0 0.0
    %1079 = vmatprep.subr.mxu0 0.0
    %1080 = vmatpush2.msra.mxu0 0.0
    %1081 = vmatprep.mubr.f32.mxu0 0.0
    %1082 = vmatmul.mubr.f32.gmra.mxu0 %v1015
    %v1083 = vpop.f32.mrf.mxu0
    %v1084 = vadd.f32 0.0, %v1083
    %v1085 = vpop.f32.mrf.mxu0
    %1086 = vdwg.mxu0
    %1087 = vrot.lane.b32.xlu0 %v147, 48
    %v1088 = vpop.permute.xlu0 %1087
    %v1091 = vsel %vm153, %v1010, 0
    %1093 = vmatprep.subr.mxu0 0.0
    %1094 = vmatpush1.msra.mxu0 0.0
    %1095 = vmatprep.subr.mxu0 0.0
    %1096 = vmatpush1.msra.mxu0 0.0
    %1097 = vmatprep.subr.mxu0 0.0
    %1098 = vmatpush1.msra.mxu0 0.0
    %1099 = vmatprep.subr.mxu0 0.0
    %1100 = vmatpush1.msra.mxu0 0.0
    %1101 = vmatprep.subr.mxu0 0.0
    %1102 = vmatpush1.msra.mxu0 0.0
    %1103 = vmatprep.subr.mxu0 0.0
    %1104 = vmatpush1.msra.mxu0 0.0
    %1105 = vmatprep.subr.mxu0 0.0
    %1106 = vmatpush1.msra.mxu0 0.0
    %1107 = vmatprep.subr.mxu0 0.0
    %1108 = vmatpush1.msra.mxu0 0.0
    %1109 = vmatprep.subr.mxu0 0.0
    %1110 = vmatpush1.msra.mxu0 0.0
    %1111 = vmatprep.subr.mxu0 0.0
    %1112 = vmatpush1.msra.mxu0 0.0
    %1113 = vmatprep.subr.mxu0 0.0
    %1114 = vmatpush1.msra.mxu0 0.0
    %1115 = vmatprep.subr.mxu0 0.0
    %1116 = vmatpush1.msra.mxu0 0.0
    %1117 = vmatprep.subr.mxu0 0.0
    %1118 = vmatpush1.msra.mxu0 0.0
    %1119 = vmatprep.subr.mxu0 0.0
    %1120 = vmatpush1.msra.mxu0 0.0
    %1121 = vmatprep.subr.mxu0 0.0
    %1122 = vmatpush1.msra.mxu0 0.0
    %1123 = vmatprep.subr.mxu0 0.0
    %1124 = vmatpush1.msra.mxu0 %v1088
    %1125 = vmatprep.subr.mxu0 0.0
    %1126 = vmatpush2.msra.mxu0 0.0
    %1127 = vmatprep.subr.mxu0 0.0
    %1128 = vmatpush2.msra.mxu0 0.0
    %1129 = vmatprep.subr.mxu0 0.0
    %1130 = vmatpush2.msra.mxu0 0.0
    %1131 = vmatprep.subr.mxu0 0.0
    %1132 = vmatpush2.msra.mxu0 0.0
    %1133 = vmatprep.subr.mxu0 0.0
    %1134 = vmatpush2.msra.mxu0 0.0
    %1135 = vmatprep.subr.mxu0 0.0
    %1136 = vmatpush2.msra.mxu0 0.0
    %1137 = vmatprep.subr.mxu0 0.0
    %1138 = vmatpush2.msra.mxu0 0.0
    %1139 = vmatprep.subr.mxu0 0.0
    %1140 = vmatpush2.msra.mxu0 0.0
    %1141 = vmatprep.subr.mxu0 0.0
    %1142 = vmatpush2.msra.mxu0 0.0
    %1143 = vmatprep.subr.mxu0 0.0
    %1144 = vmatpush2.msra.mxu0 0.0
    %1145 = vmatprep.subr.mxu0 0.0
    %1146 = vmatpush2.msra.mxu0 0.0
    %1147 = vmatprep.subr.mxu0 0.0
    %1148 = vmatpush2.msra.mxu0 0.0
    %1149 = vmatprep.subr.mxu0 0.0
    %1150 = vmatpush2.msra.mxu0 0.0
    %1151 = vmatprep.subr.mxu0 0.0
    %1152 = vmatpush2.msra.mxu0 0.0
    %1153 = vmatprep.subr.mxu0 0.0
    %1154 = vmatpush2.msra.mxu0 0.0
    %1155 = vmatprep.subr.mxu0 0.0
    %1156 = vmatpush2.msra.mxu0 0.0
    %1157 = vmatprep.mubr.f32.mxu0 0.0
    %1158 = vmatmul.mubr.f32.gmra.mxu0 %v1091
    %v1159 = vpop.f32.mrf.mxu0
    %v1160 = vadd.f32 0.0, %v1159
    %v1161 = vpop.f32.mrf.mxu0
    %1162 = vdwg.mxu0
    %1163 = vrot.lane.b32.xlu0 %v142, 104
    %v1164 = vpop.permute.xlu0 %1163
    %1165 = vrot.lane.b32.xlu0 %v142, 72
    %v1166 = vpop.permute.xlu0 %1165
    %v1167 = vsel %vm153, %v1164, 0
    %v1169 = vsel %vm153, %v1166, 0
    %1171 = vmatprep.subr.mxu0 0.0
    %1172 = vmatpush1.xpose.msra.mxu0 0.0
    %1173 = vmatprep.subr.mxu0 0.0
    %1174 = vmatpush1.xpose.msra.mxu0 0.0
    %1175 = vmatprep.subr.mxu0 0.0
    %1176 = vmatpush1.xpose.msra.mxu0 0.0
    %1177 = vmatprep.subr.mxu0 0.0
    %1178 = vmatpush1.xpose.msra.mxu0 0.0
    %1179 = vmatprep.subr.mxu0 0.0
    %1180 = vmatpush1.xpose.msra.mxu0 0.0
    %1181 = vmatprep.subr.mxu0 0.0
    %1182 = vmatpush1.xpose.msra.mxu0 0.0
    %1183 = vmatprep.subr.mxu0 0.0
    %1184 = vmatpush1.xpose.msra.mxu0 0.0
    %1185 = vmatprep.subr.mxu0 0.0
    %1186 = vmatpush1.xpose.msra.mxu0 0.0
    %1187 = vmatprep.subr.mxu0 0.0
    %1188 = vmatpush1.xpose.msra.mxu0 0.0
    %1189 = vmatprep.subr.mxu0 0.0
    %1190 = vmatpush1.xpose.msra.mxu0 0.0
    %1191 = vmatprep.subr.mxu0 0.0
    %1192 = vmatpush1.xpose.msra.mxu0 0.0
    %1193 = vmatprep.subr.mxu0 0.0
    %1194 = vmatpush1.xpose.msra.mxu0 0.0
    %1195 = vmatprep.subr.mxu0 0.0
    %1196 = vmatpush1.xpose.msra.mxu0 0.0
    %1197 = vmatprep.subr.mxu0 0.0
    %1198 = vmatpush1.xpose.msra.mxu0 0.0
    %1199 = vmatprep.subr.mxu0 0.0
    %1200 = vmatpush1.xpose.msra.mxu0 0.0
    %1201 = vmatprep.subr.mxu0 0.0
    %1202 = vmatpush1.xpose.msra.mxu0 %v1169
    %1203 = vmatprep.subr.mxu0 0.0
    %1204 = vmatpush2.xpose.msra.mxu0 0.0
    %1205 = vmatprep.subr.mxu0 0.0
    %1206 = vmatpush2.xpose.msra.mxu0 0.0
    %1207 = vmatprep.subr.mxu0 0.0
    %1208 = vmatpush2.xpose.msra.mxu0 0.0
    %1209 = vmatprep.subr.mxu0 0.0
    %1210 = vmatpush2.xpose.msra.mxu0 0.0
    %1211 = vmatprep.subr.mxu0 0.0
    %1212 = vmatpush2.xpose.msra.mxu0 0.0
    %1213 = vmatprep.subr.mxu0 0.0
    %1214 = vmatpush2.xpose.msra.mxu0 0.0
    %1215 = vmatprep.subr.mxu0 0.0
    %1216 = vmatpush2.xpose.msra.mxu0 0.0
    %1217 = vmatprep.subr.mxu0 0.0
    %1218 = vmatpush2.xpose.msra.mxu0 0.0
    %1219 = vmatprep.subr.mxu0 0.0
    %1220 = vmatpush2.xpose.msra.mxu0 0.0
    %1221 = vmatprep.subr.mxu0 0.0
    %1222 = vmatpush2.xpose.msra.mxu0 0.0
    %1223 = vmatprep.subr.mxu0 0.0
    %1224 = vmatpush2.xpose.msra.mxu0 0.0
    %1225 = vmatprep.subr.mxu0 0.0
    %1226 = vmatpush2.xpose.msra.mxu0 0.0
    %1227 = vmatprep.subr.mxu0 0.0
    %1228 = vmatpush2.xpose.msra.mxu0 0.0
    %1229 = vmatprep.subr.mxu0 0.0
    %1230 = vmatpush2.xpose.msra.mxu0 0.0
    %1231 = vmatprep.subr.mxu0 0.0
    %1232 = vmatpush2.xpose.msra.mxu0 0.0
    %1233 = vmatprep.subr.mxu0 0.0
    %1234 = vmatpush2.xpose.msra.mxu0 0.0
    %1235 = vmatprep.mubr.f32.mxu0 0.0
    %1236 = vmatmul.mubr.f32.gmra.mxu0 %v1167
    %v1237 = vpop.f32.mrf.mxu0
    %v1238 = vadd.f32 0.0, %v1237
    %v1239 = vpop.f32.mrf.mxu0
    %1240 = vdwg.mxu0
    %1241 = vrot.lane.b32.xlu0 %v147, 104
    %v1242 = vpop.permute.xlu0 %1241
    %1243 = vrot.lane.b32.xlu0 %v147, 72
    %v1244 = vpop.permute.xlu0 %1243
    %v1245 = vsel %vm153, %v1242, 0
    %v1247 = vsel %vm153, %v1244, 0
    %1249 = vmatprep.subr.mxu0 0.0
    %1250 = vmatpush1.xpose.msra.mxu0 0.0
    %1251 = vmatprep.subr.mxu0 0.0
    %1252 = vmatpush1.xpose.msra.mxu0 0.0
    %1253 = vmatprep.subr.mxu0 0.0
    %1254 = vmatpush1.xpose.msra.mxu0 0.0
    %1255 = vmatprep.subr.mxu0 0.0
    %1256 = vmatpush1.xpose.msra.mxu0 0.0
    %1257 = vmatprep.subr.mxu0 0.0
    %1258 = vmatpush1.xpose.msra.mxu0 0.0
    %1259 = vmatprep.subr.mxu0 0.0
    %1260 = vmatpush1.xpose.msra.mxu0 0.0
    %1261 = vmatprep.subr.mxu0 0.0
    %1262 = vmatpush1.xpose.msra.mxu0 0.0
    %1263 = vmatprep.subr.mxu0 0.0
    %1264 = vmatpush1.xpose.msra.mxu0 0.0
    %1265 = vmatprep.subr.mxu0 0.0
    %1266 = vmatpush1.xpose.msra.mxu0 0.0
    %1267 = vmatprep.subr.mxu0 0.0
    %1268 = vmatpush1.xpose.msra.mxu0 0.0
    %1269 = vmatprep.subr.mxu0 0.0
    %1270 = vmatpush1.xpose.msra.mxu0 0.0
    %1271 = vmatprep.subr.mxu0 0.0
    %1272 = vmatpush1.xpose.msra.mxu0 0.0
    %1273 = vmatprep.subr.mxu0 0.0
    %1274 = vmatpush1.xpose.msra.mxu0 0.0
    %1275 = vmatprep.subr.mxu0 0.0
    %1276 = vmatpush1.xpose.msra.mxu0 0.0
    %1277 = vmatprep.subr.mxu0 0.0
    %1278 = vmatpush1.xpose.msra.mxu0 0.0
    %1279 = vmatprep.subr.mxu0 0.0
    %1280 = vmatpush1.xpose.msra.mxu0 %v1247
    %1281 = vmatprep.subr.mxu0 0.0
    %1282 = vmatpush2.xpose.msra.mxu0 0.0
    %1283 = vmatprep.subr.mxu0 0.0
    %1284 = vmatpush2.xpose.msra.mxu0 0.0
    %1285 = vmatprep.subr.mxu0 0.0
    %1286 = vmatpush2.xpose.msra.mxu0 0.0
    %1287 = vmatprep.subr.mxu0 0.0
    %1288 = vmatpush2.xpose.msra.mxu0 0.0
    %1289 = vmatprep.subr.mxu0 0.0
    %1290 = vmatpush2.xpose.msra.mxu0 0.0
    %1291 = vmatprep.subr.mxu0 0.0
    %1292 = vmatpush2.xpose.msra.mxu0 0.0
    %1293 = vmatprep.subr.mxu0 0.0
    %1294 = vmatpush2.xpose.msra.mxu0 0.0
    %1295 = vmatprep.subr.mxu0 0.0
    %1296 = vmatpush2.xpose.msra.mxu0 0.0
    %1297 = vmatprep.subr.mxu0 0.0
    %1298 = vmatpush2.xpose.msra.mxu0 0.0
    %1299 = vmatprep.subr.mxu0 0.0
    %1300 = vmatpush2.xpose.msra.mxu0 0.0
    %1301 = vmatprep.subr.mxu0 0.0
    %1302 = vmatpush2.xpose.msra.mxu0 0.0
    %1303 = vmatprep.subr.mxu0 0.0
    %1304 = vmatpush2.xpose.msra.mxu0 0.0
    %1305 = vmatprep.subr.mxu0 0.0
    %1306 = vmatpush2.xpose.msra.mxu0 0.0
    %1307 = vmatprep.subr.mxu0 0.0
    %1308 = vmatpush2.xpose.msra.mxu0 0.0
    %1309 = vmatprep.subr.mxu0 0.0
    %1310 = vmatpush2.xpose.msra.mxu0 0.0
    %1311 = vmatprep.subr.mxu0 0.0
    %1312 = vmatpush2.xpose.msra.mxu0 0.0
    %1313 = vmatprep.mubr.f32.mxu0 0.0
    %1314 = vmatmul.mubr.f32.gmra.mxu0 %v1245
    %v1315 = vpop.f32.mrf.mxu0
    %v1316 = vadd.f32 0.0, %v1315
    %v1317 = vpop.f32.mrf.mxu0
    %1318 = vdwg.mxu0
    %v1319 = vmul.f32 %v1238, 0.35355338
    %v1320 = vmul.f32 %v1316, 0.35355338
    %v1321 = vadd.f32 %v1319, %v312
    %v1322 = vadd.f32 %v1320, %v316
    %v1323 = vsel %vm153, %v1321, -inf
    %1324 = vmax.xlane.f32.xlu0 %v1323
    %v1325 = vpop.xlane.xlu0 %1324
    %v1326 = vsel %vm153, %v1322, -inf
    %1327 = vmax.xlane.f32.xlu0 %v1326
    %v1328 = vpop.xlane.xlu0 %1327
    %v1329 = vsub.f32 %v1321, %v1325
    %v1330 = vsub.f32 %v1322, %v1328
    %v1331 = vmul.f32 %v1329, 1.442695
    %v1332 = vpow.pop %v1331
    %v1333 = vmul.f32 %v1330, 1.442695
    %v1334 = vpow.pop %v1333
    %v1335 = vsel %vm153, %v1332, 0.0
    %1336 = vadd.xlane.f32.xlu0 %v1335
    %v1337 = vpop.xlane.xlu0 %1336
    %v1338 = vsel %vm153, %v1334, 0.0
    %1339 = vadd.xlane.f32.xlu0 %v1338
    %v1340 = vpop.xlane.xlu0 %1339
    %v1341 = vrcp.pop %v1337
    %v1342 = vrcp.pop %v1340
    %v1343 = vmul.f32 %v1332, %v1341
    %v1344 = vmul.f32 %v1334, %v1342
    %1345 = vrot.lane.b32.xlu0 %v142, 40
    %v1346 = vpop.permute.xlu0 %1345
    %v1349 = vsel %vm153, %v1343, 0
    %1351 = vmatprep.subr.mxu0 0.0
    %1352 = vmatpush1.msra.mxu0 0.0
    %1353 = vmatprep.subr.mxu0 0.0
    %1354 = vmatpush1.msra.mxu0 0.0
    %1355 = vmatprep.subr.mxu0 0.0
    %1356 = vmatpush1.msra.mxu0 0.0
    %1357 = vmatprep.subr.mxu0 0.0
    %1358 = vmatpush1.msra.mxu0 0.0
    %1359 = vmatprep.subr.mxu0 0.0
    %1360 = vmatpush1.msra.mxu0 0.0
    %1361 = vmatprep.subr.mxu0 0.0
    %1362 = vmatpush1.msra.mxu0 0.0
    %1363 = vmatprep.subr.mxu0 0.0
    %1364 = vmatpush1.msra.mxu0 0.0
    %1365 = vmatprep.subr.mxu0 0.0
    %1366 = vmatpush1.msra.mxu0 0.0
    %1367 = vmatprep.subr.mxu0 0.0
    %1368 = vmatpush1.msra.mxu0 0.0
    %1369 = vmatprep.subr.mxu0 0.0
    %1370 = vmatpush1.msra.mxu0 0.0
    %1371 = vmatprep.subr.mxu0 0.0
    %1372 = vmatpush1.msra.mxu0 0.0
    %1373 = vmatprep.subr.mxu0 0.0
    %1374 = vmatpush1.msra.mxu0 0.0
    %1375 = vmatprep.subr.mxu0 0.0
    %1376 = vmatpush1.msra.mxu0 0.0
    %1377 = vmatprep.subr.mxu0 0.0
    %1378 = vmatpush1.msra.mxu0 0.0
    %1379 = vmatprep.subr.mxu0 0.0
    %1380 = vmatpush1.msra.mxu0 0.0
    %1381 = vmatprep.subr.mxu0 0.0
    %1382 = vmatpush1.msra.mxu0 %v1346
    %1383 = vmatprep.subr.mxu0 0.0
    %1384 = vmatpush2.msra.mxu0 0.0
    %1385 = vmatprep.subr.mxu0 0.0
    %1386 = vmatpush2.msra.mxu0 0.0
    %1387 = vmatprep.subr.mxu0 0.0
    %1388 = vmatpush2.msra.mxu0 0.0
    %1389 = vmatprep.subr.mxu0 0.0
    %1390 = vmatpush2.msra.mxu0 0.0
    %1391 = vmatprep.subr.mxu0 0.0
    %1392 = vmatpush2.msra.mxu0 0.0
    %1393 = vmatprep.subr.mxu0 0.0
    %1394 = vmatpush2.msra.mxu0 0.0
    %1395 = vmatprep.subr.mxu0 0.0
    %1396 = vmatpush2.msra.mxu0 0.0
    %1397 = vmatprep.subr.mxu0 0.0
    %1398 = vmatpush2.msra.mxu0 0.0
    %1399 = vmatprep.subr.mxu0 0.0
    %1400 = vmatpush2.msra.mxu0 0.0
    %1401 = vmatprep.subr.mxu0 0.0
    %1402 = vmatpush2.msra.mxu0 0.0
    %1403 = vmatprep.subr.mxu0 0.0
    %1404 = vmatpush2.msra.mxu0 0.0
    %1405 = vmatprep.subr.mxu0 0.0
    %1406 = vmatpush2.msra.mxu0 0.0
    %1407 = vmatprep.subr.mxu0 0.0
    %1408 = vmatpush2.msra.mxu0 0.0
    %1409 = vmatprep.subr.mxu0 0.0
    %1410 = vmatpush2.msra.mxu0 0.0
    %1411 = vmatprep.subr.mxu0 0.0
    %1412 = vmatpush2.msra.mxu0 0.0
    %1413 = vmatprep.subr.mxu0 0.0
    %1414 = vmatpush2.msra.mxu0 0.0
    %1415 = vmatprep.mubr.f32.mxu0 0.0
    %1416 = vmatmul.mubr.f32.gmra.mxu0 %v1349
    %v1417 = vpop.f32.mrf.mxu0
    %v1418 = vadd.f32 0.0, %v1417
    %v1419 = vpop.f32.mrf.mxu0
    %1420 = vdwg.mxu0
    %1421 = vrot.lane.b32.xlu0 %v147, 40
    %v1422 = vpop.permute.xlu0 %1421
    %v1425 = vsel %vm153, %v1344, 0
    %1427 = vmatprep.subr.mxu0 0.0
    %1428 = vmatpush1.msra.mxu0 0.0
    %1429 = vmatprep.subr.mxu0 0.0
    %1430 = vmatpush1.msra.mxu0 0.0
    %1431 = vmatprep.subr.mxu0 0.0
    %1432 = vmatpush1.msra.mxu0 0.0
    %1433 = vmatprep.subr.mxu0 0.0
    %1434 = vmatpush1.msra.mxu0 0.0
    %1435 = vmatprep.subr.mxu0 0.0
    %1436 = vmatpush1.msra.mxu0 0.0
    %1437 = vmatprep.subr.mxu0 0.0
    %1438 = vmatpush1.msra.mxu0 0.0
    %1439 = vmatprep.subr.mxu0 0.0
    %1440 = vmatpush1.msra.mxu0 0.0
    %1441 = vmatprep.subr.mxu0 0.0
    %1442 = vmatpush1.msra.mxu0 0.0
    %1443 = vmatprep.subr.mxu0 0.0
    %1444 = vmatpush1.msra.mxu0 0.0
    %1445 = vmatprep.subr.mxu0 0.0
    %1446 = vmatpush1.msra.mxu0 0.0
    %1447 = vmatprep.subr.mxu0 0.0
    %1448 = vmatpush1.msra.mxu0 0.0
    %1449 = vmatprep.subr.mxu0 0.0
    %1450 = vmatpush1.msra.mxu0 0.0
    %1451 = vmatprep.subr.mxu0 0.0
    %1452 = vmatpush1.msra.mxu0 0.0
    %1453 = vmatprep.subr.mxu0 0.0
    %1454 = vmatpush1.msra.mxu0 0.0
    %1455 = vmatprep.subr.mxu0 0.0
    %1456 = vmatpush1.msra.mxu0 0.0
    %1457 = vmatprep.subr.mxu0 0.0
    %1458 = vmatpush1.msra.mxu0 %v1422
    %1459 = vmatprep.subr.mxu0 0.0
    %1460 = vmatpush2.msra.mxu0 0.0
    %1461 = vmatprep.subr.mxu0 0.0
    %1462 = vmatpush2.msra.mxu0 0.0
    %1463 = vmatprep.subr.mxu0 0.0
    %1464 = vmatpush2.msra.mxu0 0.0
    %1465 = vmatprep.subr.mxu0 0.0
    %1466 = vmatpush2.msra.mxu0 0.0
    %1467 = vmatprep.subr.mxu0 0.0
    %1468 = vmatpush2.msra.mxu0 0.0
    %1469 = vmatprep.subr.mxu0 0.0
    %1470 = vmatpush2.msra.mxu0 0.0
    %1471 = vmatprep.subr.mxu0 0.0
    %1472 = vmatpush2.msra.mxu0 0.0
    %1473 = vmatprep.subr.mxu0 0.0
    %1474 = vmatpush2.msra.mxu0 0.0
    %1475 = vmatprep.subr.mxu0 0.0
    %1476 = vmatpush2.msra.mxu0 0.0
    %1477 = vmatprep.subr.mxu0 0.0
    %1478 = vmatpush2.msra.mxu0 0.0
    %1479 = vmatprep.subr.mxu0 0.0
    %1480 = vmatpush2.msra.mxu0 0.0
    %1481 = vmatprep.subr.mxu0 0.0
    %1482 = vmatpush2.msra.mxu0 0.0
    %1483 = vmatprep.subr.mxu0 0.0
    %1484 = vmatpush2.msra.mxu0 0.0
    %1485 = vmatprep.subr.mxu0 0.0
    %1486 = vmatpush2.msra.mxu0 0.0
    %1487 = vmatprep.subr.mxu0 0.0
    %1488 = vmatpush2.msra.mxu0 0.0
    %1489 = vmatprep.subr.mxu0 0.0
    %1490 = vmatpush2.msra.mxu0 0.0
    %1491 = vmatprep.mubr.f32.mxu0 0.0
    %1492 = vmatmul.mubr.f32.gmra.mxu0 %v1425
    %v1493 = vpop.f32.mrf.mxu0
    %v1494 = vadd.f32 0.0, %v1493
    %v1495 = vpop.f32.mrf.mxu0
    %1496 = vdwg.mxu0
    %1499 = vrot.lane.b32.xlu0 %v750, 8
    %v1500 = vpop.permute.xlu0 %1499
    %1501 = vrot.lane.b32.xlu0 %v826, 8
    %v1502 = vpop.permute.xlu0 %1501
    %1507 = vrot.lane.b32.xlu0 %v1084, 16
    %v1508 = vpop.permute.xlu0 %1507
    %1509 = vrot.lane.b32.xlu0 %v1160, 16
    %v1510 = vpop.permute.xlu0 %1509
    %1515 = vrot.lane.b32.xlu0 %v1418, 24
    %v1516 = vpop.permute.xlu0 %1515
    %1517 = vrot.lane.b32.xlu0 %v1494, 24
    %v1518 = vpop.permute.xlu0 %1517
    %v1521 = vsel %vm153, %v416, %v1500
    %v1522 = vsel %vm153, %v492, %v1502
    %vm1523 = vcmask 130048
    %v1524 = vsel %vm1523, %v1521, %v1508
    %v1525 = vsel %vm1523, %v1522, %v1510
    %vm1526 = vcmask 195584
    %v1527 = vsel %vm1526, %v1524, %v1516
    %v1528 = vsel %vm1526, %v1525, %v1518
    %v1529 = vld [vmem:[%s5] sm:$0xff]
    %v1530 = vld [vmem:[%s5 + $0x8] sm:$0xff]
    %v1531 = vld [vmem:[%s5 + $0x10] sm:$0xff]
    %v1532 = vld [vmem:[%s5 + $0x18] sm:$0xff]
    %v1533 = vld [vmem:[%s6] sm:$0x1]
    %v1535 = vlaneseq
    %v1536 = vshrl.u32 %v1535, 7
    %v1537 = vsub.s32 0, %v1536
    %v1538 = vrot.slane %v1533, %v1537
    %v1541 = vsel %vm68, %v1527, 0
    %v1544 = vsel %vm68, %v1528, 0
    %1546 = vmatprep.subr.mxu0 0.0
    %1547 = vmatpush1.msra.mxu0 0.0
    %1548 = vmatprep.subr.mxu0 0.0
    %1549 = vmatpush1.msra.mxu0 0.0
    %1550 = vmatprep.subr.mxu0 0.0
    %1551 = vmatpush1.msra.mxu0 0.0
    %1552 = vmatprep.subr.mxu0 0.0
    %1553 = vmatpush1.msra.mxu0 0.0
    %1554 = vmatprep.subr.mxu0 0.0
    %1555 = vmatpush1.msra.mxu0 0.0
    %1556 = vmatprep.subr.mxu0 0.0
    %1557 = vmatpush1.msra.mxu0 0.0
    %1558 = vmatprep.subr.mxu0 0.0
    %1559 = vmatpush1.msra.mxu0 0.0
    %1560 = vmatprep.subr.mxu0 0.0
    %1561 = vmatpush1.msra.mxu0 0.0
    %1562 = vmatprep.subr.mxu0 0.0
    %1563 = vmatpush1.msra.mxu0 0.0
    %1564 = vmatprep.subr.mxu0 0.0
    %1565 = vmatpush1.msra.mxu0 0.0
    %1566 = vmatprep.subr.mxu0 0.0
    %1567 = vmatpush1.msra.mxu0 0.0
    %1568 = vmatprep.subr.mxu0 0.0
    %1569 = vmatpush1.msra.mxu0 0.0
    %1570 = vmatprep.subr.mxu0 0.0
    %1571 = vmatpush1.msra.mxu0 %v1532
    %1572 = vmatprep.subr.mxu0 0.0
    %1573 = vmatpush1.msra.mxu0 %v1531
    %1574 = vmatprep.subr.mxu0 0.0
    %1575 = vmatpush1.msra.mxu0 %v1530
    %1576 = vmatprep.subr.mxu0 0.0
    %1577 = vmatpush1.msra.mxu0 %v1529
    %1578 = vmatprep.subr.mxu0 0.0
    %1579 = vmatpush2.msra.mxu0 0.0
    %1580 = vmatprep.subr.mxu0 0.0
    %1581 = vmatpush2.msra.mxu0 0.0
    %1582 = vmatprep.subr.mxu0 0.0
    %1583 = vmatpush2.msra.mxu0 0.0
    %1584 = vmatprep.subr.mxu0 0.0
    %1585 = vmatpush2.msra.mxu0 0.0
    %1586 = vmatprep.subr.mxu0 0.0
    %1587 = vmatpush2.msra.mxu0 0.0
    %1588 = vmatprep.subr.mxu0 0.0
    %1589 = vmatpush2.msra.mxu0 0.0
    %1590 = vmatprep.subr.mxu0 0.0
    %1591 = vmatpush2.msra.mxu0 0.0
    %1592 = vmatprep.subr.mxu0 0.0
    %1593 = vmatpush2.msra.mxu0 0.0
    %1594 = vmatprep.subr.mxu0 0.0
    %1595 = vmatpush2.msra.mxu0 0.0
    %1596 = vmatprep.subr.mxu0 0.0
    %1597 = vmatpush2.msra.mxu0 0.0
    %1598 = vmatprep.subr.mxu0 0.0
    %1599 = vmatpush2.msra.mxu0 0.0
    %1600 = vmatprep.subr.mxu0 0.0
    %1601 = vmatpush2.msra.mxu0 0.0
    %1602 = vmatprep.subr.mxu0 0.0
    %1603 = vmatpush2.msra.mxu0 0.0
    %1604 = vmatprep.subr.mxu0 0.0
    %1605 = vmatpush2.msra.mxu0 0.0
    %1606 = vmatprep.subr.mxu0 0.0
    %1607 = vmatpush2.msra.mxu0 0.0
    %1608 = vmatprep.subr.mxu0 0.0
    %1609 = vmatpush2.msra.mxu0 0.0
    %1610 = vmatprep.mubr.f32.mxu0 0.0
    %1611 = vmatmul.mubr.f32.gmra.mxu0 %v1541
    %v1612 = vpop.f32.mrf.mxu0
    %v1613 = vadd.f32 %v1538, %v1612
    %v1614 = vpop.f32.mrf.mxu0
    %1615 = vmatprep.mubr.f32.mxu0 0.0
    %1616 = vmatmul.mubr.f32.gmra.mxu0 %v1544
    %v1617 = vpop.f32.mrf.mxu0
    %v1618 = vadd.f32 %v1538, %v1617
    %v1619 = vpop.f32.mrf.mxu0
    %1620 = vdwg.mxu0
    %v1621 = vadd.f32 %v51, %v1613
    %v1622 = vadd.f32 %v52, %v1618
    %v1623 = vsel %vm68, %v1621, 0.0
    %1624 = vadd.xlane.f32.xlu0 %v1623
    %v1625 = vpop.xlane.xlu0 %1624
    %v1626 = vsel %vm68, %v1622, 0.0
    %1627 = vadd.xlane.f32.xlu0 %v1626
    %v1628 = vpop.xlane.xlu0 %1627
    %v1629 = vrcp.pop 32.0
    %v1630 = vmul.f32 %v1625, %v1629
    %v1631 = vmul.f32 %v1628, %v1629
    %v1632 = vmul.f32 %v1621, %v1621
    %v1633 = vmul.f32 %v1622, %v1622
    %v1634 = vsel %vm68, %v1632, 0.0
    %1635 = vadd.xlane.f32.xlu0 %v1634
    %v1636 = vpop.xlane.xlu0 %1635
    %v1637 = vsel %vm68, %v1633, 0.0
    %1638 = vadd.xlane.f32.xlu0 %v1637
    %v1639 = vpop.xlane.xlu0 %1638
    %v1640 = vmul.f32 %v1636, %v1629
    %v1641 = vmul.f32 %v1639, %v1629
    %v1642 = vmul.f32 %v1630, %v1630
    %v1643 = vmul.f32 %v1631, %v1631
    %v1644 = vsub.f32 %v1640, %v1642
    %v1645 = vsub.f32 %v1641, %v1643
    %v1646 = vsub.f32 %v1621, %v1630
    %v1647 = vsub.f32 %v1622, %v1631
    %v1648 = vadd.f32 %v1644, 1e-05
    %v1649 = vadd.f32 %v1645, 1e-05
    %v1650 = vrsqrt.pop %v1648
    %v1651 = vrsqrt.pop %v1649
    %v1652 = vmul.f32 %v1646, %v1650
    %v1653 = vmul.f32 %v1647, %v1651
    %v1654 = vld [vmem:[%s7] sm:$0x1]
    %v1656 = vlaneseq
    %v1657 = vshrl.u32 %v1656, 7
    %v1658 = vsub.s32 0, %v1657
    %v1659 = vrot.slane %v1654, %v1658
    %v1661 = vmul.f32 %v1652, %v1659
    %v1662 = vmul.f32 %v1653, %v1659
    %v1663 = vld [vmem:[%s8] sm:$0x1]
    %v1665 = vlaneseq
    %v1666 = vshrl.u32 %v1665, 7
    %v1667 = vsub.s32 0, %v1666
    %v1668 = vrot.slane %v1663, %v1667
    %v1670 = vadd.f32 %v1661, %v1668
    %v1671 = vadd.f32 %v1662, %v1668
    %vm1672 = vcmp.gt.f32.partialorder %v55, 0.5
    %vm1673 = vcmp.gt.f32.partialorder %v56, 0.5
    %v1674 = vsel %vm1672, 1, 0
    %v1675 = vsel %vm1673, 1, 0
    %1676 = vset.pattern.permute.xlu0 0
    %1677 = vperm.xlu0 %1676, %v1674
    %v1678 = vpop.permute.xlu0 %1677
    %1679 = vset.pattern.permute.xlu0 0
    %1680 = vperm.xlu0 %1679, %v1675
    %v1681 = vpop.permute.xlu0 %1680
    %vm1682 = vcmp.eq.s32.totalorder %v1678, 1
    %vm1683 = vcmp.eq.s32.totalorder %v1681, 1
    %v1684 = vsel %vm1682, 0.0, %v1670
    %v1685 = vsel %vm1683, 0.0, %v1671
    %v1686 = vld [vmem:[%s9] sm:$0xff]
    %v1687 = vld [vmem:[%s9 + $0x8] sm:$0xff]
    %v1688 = vld [vmem:[%s9 + $0x10] sm:$0xff]
    %v1689 = vld [vmem:[%s9 + $0x18] sm:$0xff]
    %v1690 = vld [vmem:[%s10] sm:$0x1]
    %v1692 = vlaneseq
    %v1693 = vshrl.u32 %v1692, 7
    %v1694 = vsub.s32 0, %v1693
    %v1695 = vrot.slane %v1690, %v1694
    %v1698 = vsel %vm68, %v1684, 0
    %v1701 = vsel %vm68, %v1685, 0
    %1703 = vmatprep.subr.mxu0 0.0
    %1704 = vmatpush1.msra.mxu0 0.0
    %1705 = vmatprep.subr.mxu0 0.0
    %1706 = vmatpush1.msra.mxu0 0.0
    %1707 = vmatprep.subr.mxu0 0.0
    %1708 = vmatpush1.msra.mxu0 0.0
    %1709 = vmatprep.subr.mxu0 0.0
    %1710 = vmatpush1.msra.mxu0 0.0
    %1711 = vmatprep.subr.mxu0 0.0
    %1712 = vmatpush1.msra.mxu0 0.0
    %1713 = vmatprep.subr.mxu0 0.0
    %1714 = vmatpush1.msra.mxu0 0.0
    %1715 = vmatprep.subr.mxu0 0.0
    %1716 = vmatpush1.msra.mxu0 0.0
    %1717 = vmatprep.subr.mxu0 0.0
    %1718 = vmatpush1.msra.mxu0 0.0
    %1719 = vmatprep.subr.mxu0 0.0
    %1720 = vmatpush1.msra.mxu0 0.0
    %1721 = vmatprep.subr.mxu0 0.0
    %1722 = vmatpush1.msra.mxu0 0.0
    %1723 = vmatprep.subr.mxu0 0.0
    %1724 = vmatpush1.msra.mxu0 0.0
    %1725 = vmatprep.subr.mxu0 0.0
    %1726 = vmatpush1.msra.mxu0 0.0
    %1727 = vmatprep.subr.mxu0 0.0
    %1728 = vmatpush1.msra.mxu0 %v1689
    %1729 = vmatprep.subr.mxu0 0.0
    %1730 = vmatpush1.msra.mxu0 %v1688
    %1731 = vmatprep.subr.mxu0 0.0
    %1732 = vmatpush1.msra.mxu0 %v1687
    %1733 = vmatprep.subr.mxu0 0.0
    %1734 = vmatpush1.msra.mxu0 %v1686
    %1735 = vmatprep.subr.mxu0 0.0
    %1736 = vmatpush2.msra.mxu0 0.0
    %1737 = vmatprep.subr.mxu0 0.0
    %1738 = vmatpush2.msra.mxu0 0.0
    %1739 = vmatprep.subr.mxu0 0.0
    %1740 = vmatpush2.msra.mxu0 0.0
    %1741 = vmatprep.subr.mxu0 0.0
    %1742 = vmatpush2.msra.mxu0 0.0
    %1743 = vmatprep.subr.mxu0 0.0
    %1744 = vmatpush2.msra.mxu0 0.0
    %1745 = vmatprep.subr.mxu0 0.0
    %1746 = vmatpush2.msra.mxu0 0.0
    %1747 = vmatprep.subr.mxu0 0.0
    %1748 = vmatpush2.msra.mxu0 0.0
    %1749 = vmatprep.subr.mxu0 0.0
    %1750 = vmatpush2.msra.mxu0 0.0
    %1751 = vmatprep.subr.mxu0 0.0
    %1752 = vmatpush2.msra.mxu0 0.0
    %1753 = vmatprep.subr.mxu0 0.0
    %1754 = vmatpush2.msra.mxu0 0.0
    %1755 = vmatprep.subr.mxu0 0.0
    %1756 = vmatpush2.msra.mxu0 0.0
    %1757 = vmatprep.subr.mxu0 0.0
    %1758 = vmatpush2.msra.mxu0 0.0
    %1759 = vmatprep.subr.mxu0 0.0
    %1760 = vmatpush2.msra.mxu0 0.0
    %1761 = vmatprep.subr.mxu0 0.0
    %1762 = vmatpush2.msra.mxu0 0.0
    %1763 = vmatprep.subr.mxu0 0.0
    %1764 = vmatpush2.msra.mxu0 0.0
    %1765 = vmatprep.subr.mxu0 0.0
    %1766 = vmatpush2.msra.mxu0 0.0
    %1767 = vmatprep.mubr.f32.mxu0 0.0
    %1768 = vmatmul.mubr.f32.gmra.mxu0 %v1698
    %v1769 = vpop.f32.mrf.mxu0
    %v1770 = vadd.f32 %v1695, %v1769
    %v1771 = vpop.f32.mrf.mxu0
    %1772 = vmatprep.mubr.f32.mxu0 0.0
    %1773 = vmatmul.mubr.f32.gmra.mxu0 %v1701
    %v1774 = vpop.f32.mrf.mxu0
    %v1775 = vadd.f32 %v1695, %v1774
    %v1776 = vpop.f32.mrf.mxu0
    %1777 = vdwg.mxu0
    %v1778 = vmax.f32 %v1770, 0.0
    %v1779 = vmax.f32 %v1775, 0.0
    %v1780 = vld [vmem:[%s11] sm:$0xff]
    %v1781 = vld [vmem:[%s11 + $0x8] sm:$0xff]
    %v1782 = vld [vmem:[%s11 + $0x10] sm:$0xff]
    %v1783 = vld [vmem:[%s11 + $0x18] sm:$0xff]
    %v1784 = vld [vmem:[%s11 + $0x20] sm:$0xff]
    %v1785 = vld [vmem:[%s11 + $0x28] sm:$0xff]
    %v1786 = vld [vmem:[%s11 + $0x30] sm:$0xff]
    %v1787 = vld [vmem:[%s11 + $0x38] sm:$0xff]
    %v1788 = vld [vmem:[%s12] sm:$0x1]
    %v1790 = vlaneseq
    %v1791 = vshrl.u32 %v1790, 7
    %v1792 = vsub.s32 0, %v1791
    %v1793 = vrot.slane %v1788, %v1792
    %vm1795 = vcmask 523264
    %v1797 = vsel %vm1795, %v1778, 0
    %v1800 = vsel %vm1795, %v1779, 0
    %1802 = vmatprep.subr.mxu0 0.0
    %1803 = vmatpush1.msra.mxu0 0.0
    %1804 = vmatprep.subr.mxu0 0.0
    %1805 = vmatpush1.msra.mxu0 0.0
    %1806 = vmatprep.subr.mxu0 0.0
    %1807 = vmatpush1.msra.mxu0 0.0
    %1808 = vmatprep.subr.mxu0 0.0
    %1809 = vmatpush1.msra.mxu0 0.0
    %1810 = vmatprep.subr.mxu0 0.0
    %1811 = vmatpush1.msra.mxu0 0.0
    %1812 = vmatprep.subr.mxu0 0.0
    %1813 = vmatpush1.msra.mxu0 0.0
    %1814 = vmatprep.subr.mxu0 0.0
    %1815 = vmatpush1.msra.mxu0 0.0
    %1816 = vmatprep.subr.mxu0 0.0
    %1817 = vmatpush1.msra.mxu0 0.0
    %1818 = vmatprep.subr.mxu0 0.0
    %1819 = vmatpush1.msra.mxu0 %v1787
    %1820 = vmatprep.subr.mxu0 0.0
    %1821 = vmatpush1.msra.mxu0 %v1786
    %1822 = vmatprep.subr.mxu0 0.0
    %1823 = vmatpush1.msra.mxu0 %v1785
    %1824 = vmatprep.subr.mxu0 0.0
    %1825 = vmatpush1.msra.mxu0 %v1784
    %1826 = vmatprep.subr.mxu0 0.0
    %1827 = vmatpush1.msra.mxu0 %v1783
    %1828 = vmatprep.subr.mxu0 0.0
    %1829 = vmatpush1.msra.mxu0 %v1782
    %1830 = vmatprep.subr.mxu0 0.0
    %1831 = vmatpush1.msra.mxu0 %v1781
    %1832 = vmatprep.subr.mxu0 0.0
    %1833 = vmatpush1.msra.mxu0 %v1780
    %1834 = vmatprep.subr.mxu0 0.0
    %1835 = vmatpush2.msra.mxu0 0.0
    %1836 = vmatprep.subr.mxu0 0.0
    %1837 = vmatpush2.msra.mxu0 0.0
    %1838 = vmatprep.subr.mxu0 0.0
    %1839 = vmatpush2.msra.mxu0 0.0
    %1840 = vmatprep.subr.mxu0 0.0
    %1841 = vmatpush2.msra.mxu0 0.0
    %1842 = vmatprep.subr.mxu0 0.0
    %1843 = vmatpush2.msra.mxu0 0.0
    %1844 = vmatprep.subr.mxu0 0.0
    %1845 = vmatpush2.msra.mxu0 0.0
    %1846 = vmatprep.subr.mxu0 0.0
    %1847 = vmatpush2.msra.mxu0 0.0
    %1848 = vmatprep.subr.mxu0 0.0
    %1849 = vmatpush2.msra.mxu0 0.0
    %1850 = vmatprep.subr.mxu0 0.0
    %1851 = vmatpush2.msra.mxu0 0.0
    %1852 = vmatprep.subr.mxu0 0.0
    %1853 = vmatpush2.msra.mxu0 0.0
    %1854 = vmatprep.subr.mxu0 0.0
    %1855 = vmatpush2.msra.mxu0 0.0
    %1856 = vmatprep.subr.mxu0 0.0
    %1857 = vmatpush2.msra.mxu0 0.0
    %1858 = vmatprep.subr.mxu0 0.0
    %1859 = vmatpush2.msra.mxu0 0.0
    %1860 = vmatprep.subr.mxu0 0.0
    %1861 = vmatpush2.msra.mxu0 0.0
    %1862 = vmatprep.subr.mxu0 0.0
    %1863 = vmatpush2.msra.mxu0 0.0
    %1864 = vmatprep.subr.mxu0 0.0
    %1865 = vmatpush2.msra.mxu0 0.0
    %1866 = vmatprep.mubr.f32.mxu0 0.0
    %1867 = vmatmul.mubr.f32.gmra.mxu0 %v1797
    %v1868 = vpop.f32.mrf.mxu0
    %v1869 = vadd.f32 %v1793, %v1868
    %v1870 = vpop.f32.mrf.mxu0
    %1871 = vmatprep.mubr.f32.mxu0 0.0
    %1872 = vmatmul.mubr.f32.gmra.mxu0 %v1800
    %v1873 = vpop.f32.mrf.mxu0
    %v1874 = vadd.f32 %v1793, %v1873
    %v1875 = vpop.f32.mrf.mxu0
    %1876 = vdwg.mxu0
    %v1877 = vadd.f32 %v1684, %v1869
    %v1878 = vadd.f32 %v1685, %v1874
    %v1879 = vsel %vm68, %v1877, 0.0
    %1880 = vadd.xlane.f32.xlu0 %v1879
    %v1881 = vpop.xlane.xlu0 %1880
    %v1882 = vsel %vm68, %v1878, 0.0
    %1883 = vadd.xlane.f32.xlu0 %v1882
    %v1884 = vpop.xlane.xlu0 %1883
    %v1885 = vmul.f32 %v1881, %v1629
    %v1886 = vmul.f32 %v1884, %v1629
    %v1887 = vmul.f32 %v1877, %v1877
    %v1888 = vmul.f32 %v1878, %v1878
    %v1889 = vsel %vm68, %v1887, 0.0
    %1890 = vadd.xlane.f32.xlu0 %v1889
    %v1891 = vpop.xlane.xlu0 %1890
    %v1892 = vsel %vm68, %v1888, 0.0
    %1893 = vadd.xlane.f32.xlu0 %v1892
    %v1894 = vpop.xlane.xlu0 %1893
    %v1895 = vmul.f32 %v1891, %v1629
    %v1896 = vmul.f32 %v1894, %v1629
    %v1897 = vmul.f32 %v1885, %v1885
    %v1898 = vmul.f32 %v1886, %v1886
    %v1899 = vsub.f32 %v1895, %v1897
    %v1900 = vsub.f32 %v1896, %v1898
    %v1901 = vsub.f32 %v1877, %v1885
    %v1902 = vsub.f32 %v1878, %v1886
    %v1903 = vadd.f32 %v1899, 1e-05
    %v1904 = vadd.f32 %v1900, 1e-05
    %v1905 = vrsqrt.pop %v1903
    %v1906 = vrsqrt.pop %v1904
    %v1907 = vmul.f32 %v1901, %v1905
    %v1908 = vmul.f32 %v1902, %v1906
    %v1909 = vld [vmem:[%s13] sm:$0x1]
    %v1911 = vlaneseq
    %v1912 = vshrl.u32 %v1911, 7
    %v1913 = vsub.s32 0, %v1912
    %v1914 = vrot.slane %v1909, %v1913
    %v1916 = vmul.f32 %v1907, %v1914
    %v1917 = vmul.f32 %v1908, %v1914
    %v1918 = vld [vmem:[%s14] sm:$0x1]
    %v1920 = vlaneseq
    %v1921 = vshrl.u32 %v1920, 7
    %v1922 = vsub.s32 0, %v1921
    %v1923 = vrot.slane %v1918, %v1922
    %v1925 = vadd.f32 %v1916, %v1923
    %v1926 = vadd.f32 %v1917, %v1923
    %1927 = vst.msk [vmem:[#allocation2] sm:$0xff] %vm68, %v1925
    %1928 = vst.msk [vmem:[#allocation2 + $0x8] sm:$0xff] %vm68, %v1926
    // Predicated region
    $region62: #{cross_modality_encoder_layer.3} parent=1 // pred_check
      _
    $region63: #{cross_modality_encoder_layer.3} parent=1 // pred_check_branch
      %1930 = sbr.rel (0) target = $region65
    $region64: #{cross_modality_encoder_layer.3} parent=1 // pred_region
      %s1932 = ssub.s32 256, 256
      %1933 = vsyncadd [#allocation3], %s1932
      %s1934 = sshll.u32 [#allocation2], 4
      %s1935 = int_to_ptr.vmem [resolvable:$true] %s1934
      %1940 = dma.vmem_to_hbm [thread:$0]  %s1935, 256, %s15, [#allocation3], 128, 128, 8
    $region65: #{cross_modality_encoder_layer.3} parent=1 // pred_fallthru
      _
    // Predicated region
    $region66: #{cross_modality_encoder_layer.3} parent=1 // pred_check
      _
    $region67: #{cross_modality_encoder_layer.3} parent=1 // pred_check_branch
      %1942 = sbr.rel (0) target = $region69
    $region68: #{cross_modality_encoder_layer.3} parent=1 // pred_region
      %1943 = dma.done [#allocation3], 256
    $region69: #{cross_modality_encoder_layer.3} parent=1 // pred_fallthru
      _
    %1944 = vsyncpa [#allocation3], 1

// kernel: cross_modality_encoder_layer.2
$region0: #{cross_modality_encoder_layer.2}
  #allocation0 [shape = 'u32[]', space=smem, size = 0x4, offset = 0x4, fixed_abs, tag = 'smem constant byte address 0x4 - core index']
  #allocation1 [shape = 'u32[144,128]{1,0:T(1,128)}', space=vmem, size = 0x12000, scoped, tag = 'internal scratch']
  %s0 = inlined_call_operand.vmem [shape: f32[2,16,32], index: 0, kind: input, shape index: {}]
  %s1 = inlined_call_operand.vmem [shape: f32[2,1,16], index: 1, kind: input, shape index: {}]
  %s2 = inlined_call_operand.vmem [shape: f32[32,1], index: 2, kind: input, shape index: {}]
  %s3 = inlined_call_operand.vmem [shape: f32[32,96], index: 3, kind: input, shape index: {}]
  %s4 = inlined_call_operand.vmem [shape: f32[1,96], index: 4, kind: input, shape index: {}]
  %s5 = inlined_call_operand.vmem [shape: f32[32,32], index: 5, kind: input, shape index: {}]
  %s6 = inlined_call_operand.vmem [shape: f32[1,32], index: 6, kind: input, shape index: {}]
  %s7 = inlined_call_operand.vmem [shape: f32[1,32], index: 7, kind: input, shape index: {}]
  %s8 = inlined_call_operand.vmem [shape: f32[1,32], index: 8, kind: input, shape index: {}]
  %s9 = inlined_call_operand.vmem [shape: f32[32,64], index: 9, kind: input, shape index: {}]
  %s10 = inlined_call_operand.vmem [shape: f32[1,64], index: 10, kind: input, shape index: {}]
  %s11 = inlined_call_operand.vmem [shape: f32[64,32], index: 11, kind: input, shape index: {}]
  %s12 = inlined_call_operand.vmem [shape: f32[1,32], index: 12, kind: input, shape index: {}]
  %s13 = inlined_call_operand.vmem [shape: f32[1,32], index: 13, kind: input, shape index: {}]
  %s14 = inlined_call_operand.vmem [shape: f32[1,32], index: 14, kind: input, shape index: {}]
  %s15 = inlined_call_operand.hbm [shape: f32[32,32], index: 15, kind: output, shape index: {}]
  %s16 = sld [smem:[#allocation0]]
  $region70: #{cross_modality_encoder_layer.2} parent=0
    _
  %s18 = ssub.s32 1, %s16
  %s19 = scalar_select 0, %s18, %s16
  $region1: #{cross_modality_encoder_layer.2} parent=0
    #allocation2 [shape = 'u8[16384]{0}', space=vmem, size = 0x4000, scoped, tag = 'output window, operand 0, single buffered']
    #allocation3 [shape = 's32[1]{0}', space=sflag, size = 0x4, scoped, tag = 'scoped memory for cross_modality_encoder_layer.2']
    %20 = vsyncpa [#allocation3], 0
    // Predicated region
    $region2: #{cross_modality_encoder_layer.2} parent=1 // pred_check
      _
    $region3: #{cross_modality_encoder_layer.2} parent=1 // pred_check_branch
      %22 = sbr.rel (0) target = $region5
    $region4: #{cross_modality_encoder_layer.2} parent=1 // pred_region
      _
    $region5: #{cross_modality_encoder_layer.2} parent=1 // pred_fallthru
      _
    // Predicated region
    $region6: #{cross_modality_encoder_layer.2} parent=1 // pred_check
      _
    $region7: #{cross_modality_encoder_layer.2} parent=1 // pred_check_branch
      %24 = sbr.rel (0) target = $region9
    $region8: #{cross_modality_encoder_layer.2} parent=1 // pred_region
      _
    $region9: #{cross_modality_encoder_layer.2} parent=1 // pred_fallthru
      _
    // Predicated region
    $region10: #{cross_modality_encoder_layer.2} parent=1 // pred_check
      _
    $region11: #{cross_modality_encoder_layer.2} parent=1 // pred_check_branch
      %26 = sbr.rel (0) target = $region13
    $region12: #{cross_modality_encoder_layer.2} parent=1 // pred_region
      _
    $region13: #{cross_modality_encoder_layer.2} parent=1 // pred_fallthru
      _
    // Predicated region
    $region14: #{cross_modality_encoder_layer.2} parent=1 // pred_check
      _
    $region15: #{cross_modality_encoder_layer.2} parent=1 // pred_check_branch
      %28 = sbr.rel (0) target = $region17
    $region16: #{cross_modality_encoder_layer.2} parent=1 // pred_region
      _
    $region17: #{cross_modality_encoder_layer.2} parent=1 // pred_fallthru
      _
    // Predicated region
    $region18: #{cross_modality_encoder_layer.2} parent=1 // pred_check
      _
    $region19: #{cross_modality_encoder_layer.2} parent=1 // pred_check_branch
      %30 = sbr.rel (0) target = $region21
    $region20: #{cross_modality_encoder_layer.2} parent=1 // pred_region
      _
    $region21: #{cross_modality_encoder_layer.2} parent=1 // pred_fallthru
      _
    // Predicated region
    $region22: #{cross_modality_encoder_layer.2} parent=1 // pred_check
      _
    $region23: #{cross_modality_encoder_layer.2} parent=1 // pred_check_branch
      %32 = sbr.rel (0) target = $region25
    $region24: #{cross_modality_encoder_layer.2} parent=1 // pred_region
      _
    $region25: #{cross_modality_encoder_layer.2} parent=1 // pred_fallthru
      _
    // Predicated region
    $region26: #{cross_modality_encoder_layer.2} parent=1 // pred_check
      _
    $region27: #{cross_modality_encoder_layer.2} parent=1 // pred_check_branch
      %34 = sbr.rel (0) target = $region29
    $region28: #{cross_modality_encoder_layer.2} parent=1 // pred_region
      _
    $region29: #{cross_modality_encoder_layer.2} parent=1 // pred_fallthru
      _
    // Predicated region
    $region30: #{cross_modality_encoder_layer.2} parent=1 // pred_check
      _
    $region31: #{cross_modality_encoder_layer.2} parent=1 // pred_check_branch
      %36 = sbr.rel (0) target = $region33
    $region32: #{cross_modality_encoder_layer.2} parent=1 // pred_region
      _
    $region33: #{cross_modality_encoder_layer.2} parent=1 // pred_fallthru
      _
    // Predicated region
    $region34: #{cross_modality_encoder_layer.2} parent=1 // pred_check
      _
    $region35: #{cross_modality_encoder_layer.2} parent=1 // pred_check_branch
      %38 = sbr.rel (0) target = $region37
    $region36: #{cross_modality_encoder_layer.2} parent=1 // pred_region
      _
    $region37: #{cross_modality_encoder_layer.2} parent=1 // pred_fallthru
      _
    // Predicated region
    $region38: #{cross_modality_encoder_layer.2} parent=1 // pred_check
      _
    $region39: #{cross_modality_encoder_layer.2} parent=1 // pred_check_branch
      %40 = sbr.rel (0) target = $region41
    $region40: #{cross_modality_encoder_layer.2} parent=1 // pred_region
      _
    $region41: #{cross_modality_encoder_layer.2} parent=1 // pred_fallthru
      _
    // Predicated region
    $region42: #{cross_modality_encoder_layer.2} parent=1 // pred_check
      _
    $region43: #{cross_modality_encoder_layer.2} parent=1 // pred_check_branch
      %42 = sbr.rel (0) target = $region45
    $region44: #{cross_modality_encoder_layer.2} parent=1 // pred_region
      _
    $region45: #{cross_modality_encoder_layer.2} parent=1 // pred_fallthru
      _
    // Predicated region
    $region46: #{cross_modality_encoder_layer.2} parent=1 // pred_check
      _
    $region47: #{cross_modality_encoder_layer.2} parent=1 // pred_check_branch
      %44 = sbr.rel (0) target = $region49
    $region48: #{cross_modality_encoder_layer.2} parent=1 // pred_region
      _
    $region49: #{cross_modality_encoder_layer.2} parent=1 // pred_fallthru
      _
    // Predicated region
    $region50: #{cross_modality_encoder_layer.2} parent=1 // pred_check
      _
    $region51: #{cross_modality_encoder_layer.2} parent=1 // pred_check_branch
      %46 = sbr.rel (0) target = $region53
    $region52: #{cross_modality_encoder_layer.2} parent=1 // pred_region
      _
    $region53: #{cross_modality_encoder_layer.2} parent=1 // pred_fallthru
      _
    // Predicated region
    $region54: #{cross_modality_encoder_layer.2} parent=1 // pred_check
      _
    $region55: #{cross_modality_encoder_layer.2} parent=1 // pred_check_branch
      %48 = sbr.rel (0) target = $region57
    $region56: #{cross_modality_encoder_layer.2} parent=1 // pred_region
      _
    $region57: #{cross_modality_encoder_layer.2} parent=1 // pred_fallthru
      _
    // Predicated region
    $region58: #{cross_modality_encoder_layer.2} parent=1 // pred_check
      _
    $region59: #{cross_modality_encoder_layer.2} parent=1 // pred_check_branch
      %50 = sbr.rel (0) target = $region61
    $region60: #{cross_modality_encoder_layer.2} parent=1 // pred_region
      _
    $region61: #{cross_modality_encoder_layer.2} parent=1 // pred_fallthru
      _
    %v51 = vld [vmem:[%s0] sm:$0xff]
    %v52 = vld [vmem:[%s0 + $0x8] sm:$0xff]
    %v53 = vld [vmem:[%s0 + $0x10] sm:$0xff]
    %v54 = vld [vmem:[%s0 + $0x18] sm:$0xff]
    %v55 = vld [vmem:[%s1] sm:$0x1]
    %v56 = vld [vmem:[%s1 + $0x1] sm:$0x1]
    %v57 = vld [vmem:[%s2] sm:$0xff]
    %v58 = vld [vmem:[%s2 + $0x8] sm:$0xff]
    %v59 = vld [vmem:[%s2 + $0x10] sm:$0xff]
    %v60 = vld [vmem:[%s2 + $0x18] sm:$0xff]
    %v61 = vld [vmem:[%s3] sm:$0xff]
    %v62 = vld [vmem:[%s3 + $0x8] sm:$0xff]
    %v63 = vld [vmem:[%s3 + $0x10] sm:$0xff]
    %v64 = vld [vmem:[%s3 + $0x18] sm:$0xff]
    %v65 = vld [vmem:[%s4] sm:$0x1]
    %v67 = vlaneseq
    %v68 = vshrl.u32 %v67, 7
    %v69 = vsub.s32 0, %v68
    %v70 = vrot.slane %v65, %v69
    %vm72 = vcmask 261120
    %v74 = vsel %vm72, %v51, 0
    %v77 = vsel %vm72, %v52, 0
    %v80 = vsel %vm72, %v53, 0
    %v83 = vsel %vm72, %v54, 0
    %85 = vmatprep.subr.mxu0 0.0
    %86 = vmatpush1.msra.mxu0 0.0
    %87 = vmatprep.subr.mxu0 0.0
    %88 = vmatpush1.msra.mxu0 0.0
    %89 = vmatprep.subr.mxu0 0.0
    %90 = vmatpush1.msra.mxu0 0.0
    %91 = vmatprep.subr.mxu0 0.0
    %92 = vmatpush1.msra.mxu0 0.0
    %93 = vmatprep.subr.mxu0 0.0
    %94 = vmatpush1.msra.mxu0 0.0
    %95 = vmatprep.subr.mxu0 0.0
    %96 = vmatpush1.msra.mxu0 0.0
    %97 = vmatprep.subr.mxu0 0.0
    %98 = vmatpush1.msra.mxu0 0.0
    %99 = vmatprep.subr.mxu0 0.0
    %100 = vmatpush1.msra.mxu0 0.0
    %101 = vmatprep.subr.mxu0 0.0
    %102 = vmatpush1.msra.mxu0 0.0
    %103 = vmatprep.subr.mxu0 0.0
    %104 = vmatpush1.msra.mxu0 0.0
    %105 = vmatprep.subr.mxu0 0.0
    %106 = vmatpush1.msra.mxu0 0.0
    %107 = vmatprep.subr.mxu0 0.0
    %108 = vmatpush1.msra.mxu0 0.0
    %109 = vmatprep.subr.mxu0 0.0
    %110 = vmatpush1.msra.mxu0 %v64
    %111 = vmatprep.subr.mxu0 0.0
    %112 = vmatpush1.msra.mxu0 %v63
    %113 = vmatprep.subr.mxu0 0.0
    %114 = vmatpush1.msra.mxu0 %v62
    %115 = vmatprep.subr.mxu0 0.0
    %116 = vmatpush1.msra.mxu0 %v61
    %117 = vmatprep.subr.mxu0 0.0
    %118 = vmatpush2.msra.mxu0 0.0
    %119 = vmatprep.subr.mxu0 0.0
    %120 = vmatpush2.msra.mxu0 0.0
    %121 = vmatprep.subr.mxu0 0.0
    %122 = vmatpush2.msra.mxu0 0.0
    %123 = vmatprep.subr.mxu0 0.0
    %124 = vmatpush2.msra.mxu0 0.0
    %125 = vmatprep.subr.mxu0 0.0
    %126 = vmatpush2.msra.mxu0 0.0
    %127 = vmatprep.subr.mxu0 0.0
    %128 = vmatpush2.msra.mxu0 0.0
    %129 = vmatprep.subr.mxu0 0.0
    %130 = vmatpush2.msra.mxu0 0.0
    %131 = vmatprep.subr.mxu0 0.0
    %132 = vmatpush2.msra.mxu0 0.0
    %133 = vmatprep.subr.mxu0 0.0
    %134 = vmatpush2.msra.mxu0 0.0
    %135 = vmatprep.subr.mxu0 0.0
    %136 = vmatpush2.msra.mxu0 0.0
    %137 = vmatprep.subr.mxu0 0.0
    %138 = vmatpush2.msra.mxu0 0.0
    %139 = vmatprep.subr.mxu0 0.0
    %140 = vmatpush2.msra.mxu0 0.0
    %141 = vmatprep.subr.mxu0 0.0
    %142 = vmatpush2.msra.mxu0 0.0
    %143 = vmatprep.subr.mxu0 0.0
    %144 = vmatpush2.msra.mxu0 0.0
    %145 = vmatprep.subr.mxu0 0.0
    %146 = vmatpush2.msra.mxu0 0.0
    %147 = vmatprep.subr.mxu0 0.0
    %148 = vmatpush2.msra.mxu0 0.0
    %149 = vmatprep.mubr.f32.mxu0 0.0
    %150 = vmatmul.mubr.f32.gmra.mxu0 %v74
    %v151 = vpop.f32.mrf.mxu0
    %v152 = vadd.f32 %v70, %v151
    %v153 = vpop.f32.mrf.mxu0
    %154 = vmatprep.mubr.f32.mxu0 0.0
    %155 = vmatmul.mubr.f32.gmra.mxu0 %v77
    %v156 = vpop.f32.mrf.mxu0
    %v157 = vadd.f32 %v70, %v156
    %v158 = vpop.f32.mrf.mxu0
    %159 = vmatprep.mubr.f32.mxu0 0.0
    %160 = vmatmul.mubr.f32.gmra.mxu0 %v80
    %v161 = vpop.f32.mrf.mxu0
    %v162 = vadd.f32 %v70, %v161
    %v163 = vpop.f32.mrf.mxu0
    %164 = vmatprep.mubr.f32.mxu0 0.0
    %165 = vmatmul.mubr.f32.gmra.mxu0 %v83
    %v166 = vpop.f32.mrf.mxu0
    %v167 = vadd.f32 %v70, %v166
    %v168 = vpop.f32.mrf.mxu0
    %169 = vdwg.mxu0
    %172 = vrot.lane.b32.xlu0 %v152, 96
    %v173 = vpop.permute.xlu0 %172
    %174 = vrot.lane.b32.xlu0 %v157, 96
    %v175 = vpop.permute.xlu0 %174
    %vm176 = vcmask 64512
    %v177 = vsel %vm176, %v152, 0
    %v179 = vsel %vm176, %v157, 0
    %v181 = vsel %vm176, %v173, 0
    %v183 = vsel %vm176, %v175, 0
    %185 = vmatprep.subr.mxu0 0.0
    %186 = vmatpush1.xpose.msra.mxu0 0.0
    %187 = vmatprep.subr.mxu0 0.0
    %188 = vmatpush1.xpose.msra.mxu0 0.0
    %189 = vmatprep.subr.mxu0 0.0
    %190 = vmatpush1.xpose.msra.mxu0 0.0
    %191 = vmatprep.subr.mxu0 0.0
    %192 = vmatpush1.xpose.msra.mxu0 0.0
    %193 = vmatprep.subr.mxu0 0.0
    %194 = vmatpush1.xpose.msra.mxu0 0.0
    %195 = vmatprep.subr.mxu0 0.0
    %196 = vmatpush1.xpose.msra.mxu0 0.0
    %197 = vmatprep.subr.mxu0 0.0
    %198 = vmatpush1.xpose.msra.mxu0 0.0
    %199 = vmatprep.subr.mxu0 0.0
    %200 = vmatpush1.xpose.msra.mxu0 0.0
    %201 = vmatprep.subr.mxu0 0.0
    %202 = vmatpush1.xpose.msra.mxu0 0.0
    %203 = vmatprep.subr.mxu0 0.0
    %204 = vmatpush1.xpose.msra.mxu0 0.0
    %205 = vmatprep.subr.mxu0 0.0
    %206 = vmatpush1.xpose.msra.mxu0 0.0
    %207 = vmatprep.subr.mxu0 0.0
    %208 = vmatpush1.xpose.msra.mxu0 0.0
    %209 = vmatprep.subr.mxu0 0.0
    %210 = vmatpush1.xpose.msra.mxu0 0.0
    %211 = vmatprep.subr.mxu0 0.0
    %212 = vmatpush1.xpose.msra.mxu0 0.0
    %213 = vmatprep.subr.mxu0 0.0
    %214 = vmatpush1.xpose.msra.mxu0 %v183
    %215 = vmatprep.subr.mxu0 0.0
    %216 = vmatpush1.xpose.msra.mxu0 %v181
    %217 = vmatprep.subr.mxu0 0.0
    %218 = vmatpush2.xpose.msra.mxu0 0.0
    %219 = vmatprep.subr.mxu0 0.0
    %220 = vmatpush2.xpose.msra.mxu0 0.0
    %221 = vmatprep.subr.mxu0 0.0
    %222 = vmatpush2.xpose.msra.mxu0 0.0
    %223 = vmatprep.subr.mxu0 0.0
    %224 = vmatpush2.xpose.msra.mxu0 0.0
    %225 = vmatprep.subr.mxu0 0.0
    %226 = vmatpush2.xpose.msra.mxu0 0.0
    %227 = vmatprep.subr.mxu0 0.0
    %228 = vmatpush2.xpose.msra.mxu0 0.0
    %229 = vmatprep.subr.mxu0 0.0
    %230 = vmatpush2.xpose.msra.mxu0 0.0
    %231 = vmatprep.subr.mxu0 0.0
    %232 = vmatpush2.xpose.msra.mxu0 0.0
    %233 = vmatprep.subr.mxu0 0.0
    %234 = vmatpush2.xpose.msra.mxu0 0.0
    %235 = vmatprep.subr.mxu0 0.0
    %236 = vmatpush2.xpose.msra.mxu0 0.0
    %237 = vmatprep.subr.mxu0 0.0
    %238 = vmatpush2.xpose.msra.mxu0 0.0
    %239 = vmatprep.subr.mxu0 0.0
    %240 = vmatpush2.xpose.msra.mxu0 0.0
    %241 = vmatprep.subr.mxu0 0.0
    %242 = vmatpush2.xpose.msra.mxu0 0.0
    %243 = vmatprep.subr.mxu0 0.0
    %244 = vmatpush2.xpose.msra.mxu0 0.0
    %245 = vmatprep.subr.mxu0 0.0
    %246 = vmatpush2.xpose.msra.mxu0 0.0
    %247 = vmatprep.subr.mxu0 0.0
    %248 = vmatpush2.xpose.msra.mxu0 0.0
    %249 = vmatprep.mubr.f32.mxu0 0.0
    %250 = vmatmul.mubr.f32.gmra.mxu0 %v177
    %v251 = vpop.f32.mrf.mxu0
    %v252 = vadd.f32 0.0, %v251
    %v253 = vpop.f32.mrf.mxu0
    %254 = vmatprep.mubr.f32.mxu0 0.0
    %255 = vmatmul.mubr.f32.gmra.mxu0 %v179
    %v256 = vpop.f32.mrf.mxu0
    %v257 = vadd.f32 0.0, %v256
    %v258 = vpop.f32.mrf.mxu0
    %259 = vdwg.mxu0
    %262 = vrot.lane.b32.xlu0 %v162, 96
    %v263 = vpop.permute.xlu0 %262
    %264 = vrot.lane.b32.xlu0 %v167, 96
    %v265 = vpop.permute.xlu0 %264
    %v266 = vsel %vm176, %v162, 0
    %v268 = vsel %vm176, %v167, 0
    %v270 = vsel %vm176, %v263, 0
    %v272 = vsel %vm176, %v265, 0
    %274 = vmatprep.subr.mxu0 0.0
    %275 = vmatpush1.xpose.msra.mxu0 0.0
    %276 = vmatprep.subr.mxu0 0.0
    %277 = vmatpush1.xpose.msra.mxu0 0.0
    %278 = vmatprep.subr.mxu0 0.0
    %279 = vmatpush1.xpose.msra.mxu0 0.0
    %280 = vmatprep.subr.mxu0 0.0
    %281 = vmatpush1.xpose.msra.mxu0 0.0
    %282 = vmatprep.subr.mxu0 0.0
    %283 = vmatpush1.xpose.msra.mxu0 0.0
    %284 = vmatprep.subr.mxu0 0.0
    %285 = vmatpush1.xpose.msra.mxu0 0.0
    %286 = vmatprep.subr.mxu0 0.0
    %287 = vmatpush1.xpose.msra.mxu0 0.0
    %288 = vmatprep.subr.mxu0 0.0
    %289 = vmatpush1.xpose.msra.mxu0 0.0
    %290 = vmatprep.subr.mxu0 0.0
    %291 = vmatpush1.xpose.msra.mxu0 0.0
    %292 = vmatprep.subr.mxu0 0.0
    %293 = vmatpush1.xpose.msra.mxu0 0.0
    %294 = vmatprep.subr.mxu0 0.0
    %295 = vmatpush1.xpose.msra.mxu0 0.0
    %296 = vmatprep.subr.mxu0 0.0
    %297 = vmatpush1.xpose.msra.mxu0 0.0
    %298 = vmatprep.subr.mxu0 0.0
    %299 = vmatpush1.xpose.msra.mxu0 0.0
    %300 = vmatprep.subr.mxu0 0.0
    %301 = vmatpush1.xpose.msra.mxu0 0.0
    %302 = vmatprep.subr.mxu0 0.0
    %303 = vmatpush1.xpose.msra.mxu0 %v272
    %304 = vmatprep.subr.mxu0 0.0
    %305 = vmatpush1.xpose.msra.mxu0 %v270
    %306 = vmatprep.subr.mxu0 0.0
    %307 = vmatpush2.xpose.msra.mxu0 0.0
    %308 = vmatprep.subr.mxu0 0.0
    %309 = vmatpush2.xpose.msra.mxu0 0.0
    %310 = vmatprep.subr.mxu0 0.0
    %311 = vmatpush2.xpose.msra.mxu0 0.0
    %312 = vmatprep.subr.mxu0 0.0
    %313 = vmatpush2.xpose.msra.mxu0 0.0
    %314 = vmatprep.subr.mxu0 0.0
    %315 = vmatpush2.xpose.msra.mxu0 0.0
    %316 = vmatprep.subr.mxu0 0.0
    %317 = vmatpush2.xpose.msra.mxu0 0.0
    %318 = vmatprep.subr.mxu0 0.0
    %319 = vmatpush2.xpose.msra.mxu0 0.0
    %320 = vmatprep.subr.mxu0 0.0
    %321 = vmatpush2.xpose.msra.mxu0 0.0
    %322 = vmatprep.subr.mxu0 0.0
    %323 = vmatpush2.xpose.msra.mxu0 0.0
    %324 = vmatprep.subr.mxu0 0.0
    %325 = vmatpush2.xpose.msra.mxu0 0.0
    %326 = vmatprep.subr.mxu0 0.0
    %327 = vmatpush2.xpose.msra.mxu0 0.0
    %328 = vmatprep.subr.mxu0 0.0
    %329 = vmatpush2.xpose.msra.mxu0 0.0
    %330 = vmatprep.subr.mxu0 0.0
    %331 = vmatpush2.xpose.msra.mxu0 0.0
    %332 = vmatprep.subr.mxu0 0.0
    %333 = vmatpush2.xpose.msra.mxu0 0.0
    %334 = vmatprep.subr.mxu0 0.0
    %335 = vmatpush2.xpose.msra.mxu0 0.0
    %336 = vmatprep.subr.mxu0 0.0
    %337 = vmatpush2.xpose.msra.mxu0 0.0
    %338 = vmatprep.mubr.f32.mxu0 0.0
    %339 = vmatmul.mubr.f32.gmra.mxu0 %v266
    %v340 = vpop.f32.mrf.mxu0
    %v341 = vadd.f32 0.0, %v340
    %v342 = vpop.f32.mrf.mxu0
    %343 = vmatprep.mubr.f32.mxu0 0.0
    %344 = vmatmul.mubr.f32.gmra.mxu0 %v268
    %v345 = vpop.f32.mrf.mxu0
    %v346 = vadd.f32 0.0, %v345
    %v347 = vpop.f32.mrf.mxu0
    %348 = vdwg.mxu0
    %v349 = vmul.f32 %v252, 0.35355338
    %v350 = vmul.f32 %v257, 0.35355338
    %v351 = vmul.f32 %v341, 0.35355338
    %v352 = vmul.f32 %v346, 0.35355338
    %v355 = vlaneseq
    %v356 = vshrl.u32 %v355, 7
    %v357 = vsub.s32 0, %v356
    %v358 = vrot.slane %v55, %v357
    %v359 = vlaneseq
    %v360 = vshrl.u32 %v359, 7
    %v361 = vsub.s32 0, %v360
    %v362 = vrot.slane %v56, %v361
    %v365 = vadd.f32 %v349, %v358
    %v366 = vadd.f32 %v350, %v358
    %v367 = vadd.f32 %v351, %v362
    %v368 = vadd.f32 %v352, %v362
    %vm369 = vcmask 130048
    %v370 = vsel %vm369, %v365, -inf
    %371 = vmax.xlane.f32.xlu0 %v370
    %v372 = vpop.xlane.xlu0 %371
    %v373 = vsel %vm369, %v366, -inf
    %374 = vmax.xlane.f32.xlu0 %v373
    %v375 = vpop.xlane.xlu0 %374
    %v376 = vsel %vm369, %v367, -inf
    %377 = vmax.xlane.f32.xlu0 %v376
    %v378 = vpop.xlane.xlu0 %377
    %v379 = vsel %vm369, %v368, -inf
    %380 = vmax.xlane.f32.xlu0 %v379
    %v381 = vpop.xlane.xlu0 %380
    %v382 = vsub.f32 %v365, %v372
    %v383 = vsub.f32 %v366, %v375
    %v384 = vsub.f32 %v367, %v378
    %v385 = vsub.f32 %v368, %v381
    %v386 = vmul.f32 %v382, 1.442695
    %v387 = vpow.pop %v386
    %v388 = vmul.f32 %v383, 1.442695
    %v389 = vpow.pop %v388
    %v390 = vmul.f32 %v384, 1.442695
    %v391 = vpow.pop %v390
    %v392 = vmul.f32 %v385, 1.442695
    %v393 = vpow.pop %v392
    %v394 = vsel %vm369, %v387, 0.0
    %395 = vadd.xlane.f32.xlu0 %v394
    %v396 = vpop.xlane.xlu0 %395
    %v397 = vsel %vm369, %v389, 0.0
    %398 = vadd.xlane.f32.xlu0 %v397
    %v399 = vpop.xlane.xlu0 %398
    %v400 = vsel %vm369, %v391, 0.0
    %401 = vadd.xlane.f32.xlu0 %v400
    %v402 = vpop.xlane.xlu0 %401
    %v403 = vsel %vm369, %v393, 0.0
    %404 = vadd.xlane.f32.xlu0 %v403
    %v405 = vpop.xlane.xlu0 %404
    %v406 = vrcp.pop %v396
    %v407 = vrcp.pop %v399
    %v408 = vrcp.pop %v402
    %v409 = vrcp.pop %v405
    %v410 = vmul.f32 %v387, %v406
    %v411 = vmul.f32 %v389, %v407
    %v412 = vmul.f32 %v391, %v408
    %v413 = vmul.f32 %v393, %v409
    %414 = vrot.lane.b32.xlu0 %v152, 64
    %v415 = vpop.permute.xlu0 %414
    %416 = vrot.lane.b32.xlu0 %v157, 64
    %v417 = vpop.permute.xlu0 %416
    %v421 = vsel %vm369, %v410, 0
    %v424 = vsel %vm369, %v411, 0
    %426 = vmatprep.subr.mxu0 0.0
    %427 = vmatpush1.msra.mxu0 0.0
    %428 = vmatprep.subr.mxu0 0.0
    %429 = vmatpush1.msra.mxu0 0.0
    %430 = vmatprep.subr.mxu0 0.0
    %431 = vmatpush1.msra.mxu0 0.0
    %432 = vmatprep.subr.mxu0 0.0
    %433 = vmatpush1.msra.mxu0 0.0
    %434 = vmatprep.subr.mxu0 0.0
    %435 = vmatpush1.msra.mxu0 0.0
    %436 = vmatprep.subr.mxu0 0.0
    %437 = vmatpush1.msra.mxu0 0.0
    %438 = vmatprep.subr.mxu0 0.0
    %439 = vmatpush1.msra.mxu0 0.0
    %440 = vmatprep.subr.mxu0 0.0
    %441 = vmatpush1.msra.mxu0 0.0
    %442 = vmatprep.subr.mxu0 0.0
    %443 = vmatpush1.msra.mxu0 0.0
    %444 = vmatprep.subr.mxu0 0.0
    %445 = vmatpush1.msra.mxu0 0.0
    %446 = vmatprep.subr.mxu0 0.0
    %447 = vmatpush1.msra.mxu0 0.0
    %448 = vmatprep.subr.mxu0 0.0
    %449 = vmatpush1.msra.mxu0 0.0
    %450 = vmatprep.subr.mxu0 0.0
    %451 = vmatpush1.msra.mxu0 0.0
    %452 = vmatprep.subr.mxu0 0.0
    %453 = vmatpush1.msra.mxu0 0.0
    %454 = vmatprep.subr.mxu0 0.0
    %455 = vmatpush1.msra.mxu0 %v417
    %456 = vmatprep.subr.mxu0 0.0
    %457 = vmatpush1.msra.mxu0 %v415
    %458 = vmatprep.subr.mxu0 0.0
    %459 = vmatpush2.msra.mxu0 0.0
    %460 = vmatprep.subr.mxu0 0.0
    %461 = vmatpush2.msra.mxu0 0.0
    %462 = vmatprep.subr.mxu0 0.0
    %463 = vmatpush2.msra.mxu0 0.0
    %464 = vmatprep.subr.mxu0 0.0
    %465 = vmatpush2.msra.mxu0 0.0
    %466 = vmatprep.subr.mxu0 0.0
    %467 = vmatpush2.msra.mxu0 0.0
    %468 = vmatprep.subr.mxu0 0.0
    %469 = vmatpush2.msra.mxu0 0.0
    %470 = vmatprep.subr.mxu0 0.0
    %471 = vmatpush2.msra.mxu0 0.0
    %472 = vmatprep.subr.mxu0 0.0
    %473 = vmatpush2.msra.mxu0 0.0
    %474 = vmatprep.subr.mxu0 0.0
    %475 = vmatpush2.msra.mxu0 0.0
    %476 = vmatprep.subr.mxu0 0.0
    %477 = vmatpush2.msra.mxu0 0.0
    %478 = vmatprep.subr.mxu0 0.0
    %479 = vmatpush2.msra.mxu0 0.0
    %480 = vmatprep.subr.mxu0 0.0
    %481 = vmatpush2.msra.mxu0 0.0
    %482 = vmatprep.subr.mxu0 0.0
    %483 = vmatpush2.msra.mxu0 0.0
    %484 = vmatprep.subr.mxu0 0.0
    %485 = vmatpush2.msra.mxu0 0.0
    %486 = vmatprep.subr.mxu0 0.0
    %487 = vmatpush2.msra.mxu0 0.0
    %488 = vmatprep.subr.mxu0 0.0
    %489 = vmatpush2.msra.mxu0 0.0
    %490 = vmatprep.mubr.f32.mxu0 0.0
    %491 = vmatmul.mubr.f32.gmra.mxu0 %v421
    %v492 = vpop.f32.mrf.mxu0
    %v493 = vadd.f32 0.0, %v492
    %v494 = vpop.f32.mrf.mxu0
    %495 = vmatprep.mubr.f32.mxu0 0.0
    %496 = vmatmul.mubr.f32.gmra.mxu0 %v424
    %v497 = vpop.f32.mrf.mxu0
    %v498 = vadd.f32 0.0, %v497
    %v499 = vpop.f32.mrf.mxu0
    %500 = vdwg.mxu0
    %501 = vrot.lane.b32.xlu0 %v162, 64
    %v502 = vpop.permute.xlu0 %501
    %503 = vrot.lane.b32.xlu0 %v167, 64
    %v504 = vpop.permute.xlu0 %503
    %v508 = vsel %vm369, %v412, 0
    %v511 = vsel %vm369, %v413, 0
    %513 = vmatprep.subr.mxu0 0.0
    %514 = vmatpush1.msra.mxu0 0.0
    %515 = vmatprep.subr.mxu0 0.0
    %516 = vmatpush1.msra.mxu0 0.0
    %517 = vmatprep.subr.mxu0 0.0
    %518 = vmatpush1.msra.mxu0 0.0
    %519 = vmatprep.subr.mxu0 0.0
    %520 = vmatpush1.msra.mxu0 0.0
    %521 = vmatprep.subr.mxu0 0.0
    %522 = vmatpush1.msra.mxu0 0.0
    %523 = vmatprep.subr.mxu0 0.0
    %524 = vmatpush1.msra.mxu0 0.0
    %525 = vmatprep.subr.mxu0 0.0
    %526 = vmatpush1.msra.mxu0 0.0
    %527 = vmatprep.subr.mxu0 0.0
    %528 = vmatpush1.msra.mxu0 0.0
    %529 = vmatprep.subr.mxu0 0.0
    %530 = vmatpush1.msra.mxu0 0.0
    %531 = vmatprep.subr.mxu0 0.0
    %532 = vmatpush1.msra.mxu0 0.0
    %533 = vmatprep.subr.mxu0 0.0
    %534 = vmatpush1.msra.mxu0 0.0
    %535 = vmatprep.subr.mxu0 0.0
    %536 = vmatpush1.msra.mxu0 0.0
    %537 = vmatprep.subr.mxu0 0.0
    %538 = vmatpush1.msra.mxu0 0.0
    %539 = vmatprep.subr.mxu0 0.0
    %540 = vmatpush1.msra.mxu0 0.0
    %541 = vmatprep.subr.mxu0 0.0
    %542 = vmatpush1.msra.mxu0 %v504
    %543 = vmatprep.subr.mxu0 0.0
    %544 = vmatpush1.msra.mxu0 %v502
    %545 = vmatprep.subr.mxu0 0.0
    %546 = vmatpush2.msra.mxu0 0.0
    %547 = vmatprep.subr.mxu0 0.0
    %548 = vmatpush2.msra.mxu0 0.0
    %549 = vmatprep.subr.mxu0 0.0
    %550 = vmatpush2.msra.mxu0 0.0
    %551 = vmatprep.subr.mxu0 0.0
    %552 = vmatpush2.msra.mxu0 0.0
    %553 = vmatprep.subr.mxu0 0.0
    %554 = vmatpush2.msra.mxu0 0.0
    %555 = vmatprep.subr.mxu0 0.0
    %556 = vmatpush2.msra.mxu0 0.0
    %557 = vmatprep.subr.mxu0 0.0
    %558 = vmatpush2.msra.mxu0 0.0
    %559 = vmatprep.subr.mxu0 0.0
    %560 = vmatpush2.msra.mxu0 0.0
    %561 = vmatprep.subr.mxu0 0.0
    %562 = vmatpush2.msra.mxu0 0.0
    %563 = vmatprep.subr.mxu0 0.0
    %564 = vmatpush2.msra.mxu0 0.0
    %565 = vmatprep.subr.mxu0 0.0
    %566 = vmatpush2.msra.mxu0 0.0
    %567 = vmatprep.subr.mxu0 0.0
    %568 = vmatpush2.msra.mxu0 0.0
    %569 = vmatprep.subr.mxu0 0.0
    %570 = vmatpush2.msra.mxu0 0.0
    %571 = vmatprep.subr.mxu0 0.0
    %572 = vmatpush2.msra.mxu0 0.0
    %573 = vmatprep.subr.mxu0 0.0
    %574 = vmatpush2.msra.mxu0 0.0
    %575 = vmatprep.subr.mxu0 0.0
    %576 = vmatpush2.msra.mxu0 0.0
    %577 = vmatprep.mubr.f32.mxu0 0.0
    %578 = vmatmul.mubr.f32.gmra.mxu0 %v508
    %v579 = vpop.f32.mrf.mxu0
    %v580 = vadd.f32 0.0, %v579
    %v581 = vpop.f32.mrf.mxu0
    %582 = vmatprep.mubr.f32.mxu0 0.0
    %583 = vmatmul.mubr.f32.gmra.mxu0 %v511
    %v584 = vpop.f32.mrf.mxu0
    %v585 = vadd.f32 0.0, %v584
    %v586 = vpop.f32.mrf.mxu0
    %587 = vdwg.mxu0
    %588 = vrot.lane.b32.xlu0 %v152, 120
    %v589 = vpop.permute.xlu0 %588
    %590 = vrot.lane.b32.xlu0 %v157, 120
    %v591 = vpop.permute.xlu0 %590
    %592 = vrot.lane.b32.xlu0 %v152, 88
    %v593 = vpop.permute.xlu0 %592
    %594 = vrot.lane.b32.xlu0 %v157, 88
    %v595 = vpop.permute.xlu0 %594
    %v596 = vsel %vm176, %v589, 0
    %v598 = vsel %vm176, %v591, 0
    %v600 = vsel %vm176, %v593, 0
    %v602 = vsel %vm176, %v595, 0
    %604 = vmatprep.subr.mxu0 0.0
    %605 = vmatpush1.xpose.msra.mxu0 0.0
    %606 = vmatprep.subr.mxu0 0.0
    %607 = vmatpush1.xpose.msra.mxu0 0.0
    %608 = vmatprep.subr.mxu0 0.0
    %609 = vmatpush1.xpose.msra.mxu0 0.0
    %610 = vmatprep.subr.mxu0 0.0
    %611 = vmatpush1.xpose.msra.mxu0 0.0
    %612 = vmatprep.subr.mxu0 0.0
    %613 = vmatpush1.xpose.msra.mxu0 0.0
    %614 = vmatprep.subr.mxu0 0.0
    %615 = vmatpush1.xpose.msra.mxu0 0.0
    %616 = vmatprep.subr.mxu0 0.0
    %617 = vmatpush1.xpose.msra.mxu0 0.0
    %618 = vmatprep.subr.mxu0 0.0
    %619 = vmatpush1.xpose.msra.mxu0 0.0
    %620 = vmatprep.subr.mxu0 0.0
    %621 = vmatpush1.xpose.msra.mxu0 0.0
    %622 = vmatprep.subr.mxu0 0.0
    %623 = vmatpush1.xpose.msra.mxu0 0.0
    %624 = vmatprep.subr.mxu0 0.0
    %625 = vmatpush1.xpose.msra.mxu0 0.0
    %626 = vmatprep.subr.mxu0 0.0
    %627 = vmatpush1.xpose.msra.mxu0 0.0
    %628 = vmatprep.subr.mxu0 0.0
    %629 = vmatpush1.xpose.msra.mxu0 0.0
    %630 = vmatprep.subr.mxu0 0.0
    %631 = vmatpush1.xpose.msra.mxu0 0.0
    %632 = vmatprep.subr.mxu0 0.0
    %633 = vmatpush1.xpose.msra.mxu0 %v602
    %634 = vmatprep.subr.mxu0 0.0
    %635 = vmatpush1.xpose.msra.mxu0 %v600
    %636 = vmatprep.subr.mxu0 0.0
    %637 = vmatpush2.xpose.msra.mxu0 0.0
    %638 = vmatprep.subr.mxu0 0.0
    %639 = vmatpush2.xpose.msra.mxu0 0.0
    %640 = vmatprep.subr.mxu0 0.0
    %641 = vmatpush2.xpose.msra.mxu0 0.0
    %642 = vmatprep.subr.mxu0 0.0
    %643 = vmatpush2.xpose.msra.mxu0 0.0
    %644 = vmatprep.subr.mxu0 0.0
    %645 = vmatpush2.xpose.msra.mxu0 0.0
    %646 = vmatprep.subr.mxu0 0.0
    %647 = vmatpush2.xpose.msra.mxu0 0.0
    %648 = vmatprep.subr.mxu0 0.0
    %649 = vmatpush2.xpose.msra.mxu0 0.0
    %650 = vmatprep.subr.mxu0 0.0
    %651 = vmatpush2.xpose.msra.mxu0 0.0
    %652 = vmatprep.subr.mxu0 0.0
    %653 = vmatpush2.xpose.msra.mxu0 0.0
    %654 = vmatprep.subr.mxu0 0.0
    %655 = vmatpush2.xpose.msra.mxu0 0.0
    %656 = vmatprep.subr.mxu0 0.0
    %657 = vmatpush2.xpose.msra.mxu0 0.0
    %658 = vmatprep.subr.mxu0 0.0
    %659 = vmatpush2.xpose.msra.mxu0 0.0
    %660 = vmatprep.subr.mxu0 0.0
    %661 = vmatpush2.xpose.msra.mxu0 0.0
    %662 = vmatprep.subr.mxu0 0.0
    %663 = vmatpush2.xpose.msra.mxu0 0.0
    %664 = vmatprep.subr.mxu0 0.0
    %665 = vmatpush2.xpose.msra.mxu0 0.0
    %666 = vmatprep.subr.mxu0 0.0
    %667 = vmatpush2.xpose.msra.mxu0 0.0
    %668 = vmatprep.mubr.f32.mxu0 0.0
    %669 = vmatmul.mubr.f32.gmra.mxu0 %v596
    %v670 = vpop.f32.mrf.mxu0
    %v671 = vadd.f32 0.0, %v670
    %v672 = vpop.f32.mrf.mxu0
    %673 = vmatprep.mubr.f32.mxu0 0.0
    %674 = vmatmul.mubr.f32.gmra.mxu0 %v598
    %v675 = vpop.f32.mrf.mxu0
    %v676 = vadd.f32 0.0, %v675
    %v677 = vpop.f32.mrf.mxu0
    %678 = vdwg.mxu0
    %679 = vrot.lane.b32.xlu0 %v162, 120
    %v680 = vpop.permute.xlu0 %679
    %681 = vrot.lane.b32.xlu0 %v167, 120
    %v682 = vpop.permute.xlu0 %681
    %683 = vrot.lane.b32.xlu0 %v162, 88
    %v684 = vpop.permute.xlu0 %683
    %685 = vrot.lane.b32.xlu0 %v167, 88
    %v686 = vpop.permute.xlu0 %685
    %v687 = vsel %vm176, %v680, 0
    %v689 = vsel %vm176, %v682, 0
    %v691 = vsel %vm176, %v684, 0
    %v693 = vsel %vm176, %v686, 0
    %695 = vmatprep.subr.mxu0 0.0
    %696 = vmatpush1.xpose.msra.mxu0 0.0
    %697 = vmatprep.subr.mxu0 0.0
    %698 = vmatpush1.xpose.msra.mxu0 0.0
    %699 = vmatprep.subr.mxu0 0.0
    %700 = vmatpush1.xpose.msra.mxu0 0.0
    %701 = vmatprep.subr.mxu0 0.0
    %702 = vmatpush1.xpose.msra.mxu0 0.0
    %703 = vmatprep.subr.mxu0 0.0
    %704 = vmatpush1.xpose.msra.mxu0 0.0
    %705 = vmatprep.subr.mxu0 0.0
    %706 = vmatpush1.xpose.msra.mxu0 0.0
    %707 = vmatprep.subr.mxu0 0.0
    %708 = vmatpush1.xpose.msra.mxu0 0.0
    %709 = vmatprep.subr.mxu0 0.0
    %710 = vmatpush1.xpose.msra.mxu0 0.0
    %711 = vmatprep.subr.mxu0 0.0
    %712 = vmatpush1.xpose.msra.mxu0 0.0
    %713 = vmatprep.subr.mxu0 0.0
    %714 = vmatpush1.xpose.msra.mxu0 0.0
    %715 = vmatprep.subr.mxu0 0.0
    %716 = vmatpush1.xpose.msra.mxu0 0.0
    %717 = vmatprep.subr.mxu0 0.0
    %718 = vmatpush1.xpose.msra.mxu0 0.0
    %719 = vmatprep.subr.mxu0 0.0
    %720 = vmatpush1.xpose.msra.mxu0 0.0
    %721 = vmatprep.subr.mxu0 0.0
    %722 = vmatpush1.xpose.msra.mxu0 0.0
    %723 = vmatprep.subr.mxu0 0.0
    %724 = vmatpush1.xpose.msra.mxu0 %v693
    %725 = vmatprep.subr.mxu0 0.0
    %726 = vmatpush1.xpose.msra.mxu0 %v691
    %727 = vmatprep.subr.mxu0 0.0
    %728 = vmatpush2.xpose.msra.mxu0 0.0
    %729 = vmatprep.subr.mxu0 0.0
    %730 = vmatpush2.xpose.msra.mxu0 0.0
    %731 = vmatprep.subr.mxu0 0.0
    %732 = vmatpush2.xpose.msra.mxu0 0.0
    %733 = vmatprep.subr.mxu0 0.0
    %734 = vmatpush2.xpose.msra.mxu0 0.0
    %735 = vmatprep.subr.mxu0 0.0
    %736 = vmatpush2.xpose.msra.mxu0 0.0
    %737 = vmatprep.subr.mxu0 0.0
    %738 = vmatpush2.xpose.msra.mxu0 0.0
    %739 = vmatprep.subr.mxu0 0.0
    %740 = vmatpush2.xpose.msra.mxu0 0.0
    %741 = vmatprep.subr.mxu0 0.0
    %742 = vmatpush2.xpose.msra.mxu0 0.0
    %743 = vmatprep.subr.mxu0 0.0
    %744 = vmatpush2.xpose.msra.mxu0 0.0
    %745 = vmatprep.subr.mxu0 0.0
    %746 = vmatpush2.xpose.msra.mxu0 0.0
    %747 = vmatprep.subr.mxu0 0.0
    %748 = vmatpush2.xpose.msra.mxu0 0.0
    %749 = vmatprep.subr.mxu0 0.0
    %750 = vmatpush2.xpose.msra.mxu0 0.0
    %751 = vmatprep.subr.mxu0 0.0
    %752 = vmatpush2.xpose.msra.mxu0 0.0
    %753 = vmatprep.subr.mxu0 0.0
    %754 = vmatpush2.xpose.msra.mxu0 0.0
    %755 = vmatprep.subr.mxu0 0.0
    %756 = vmatpush2.xpose.msra.mxu0 0.0
    %757 = vmatprep.subr.mxu0 0.0
    %758 = vmatpush2.xpose.msra.mxu0 0.0
    %759 = vmatprep.mubr.f32.mxu0 0.0
    %760 = vmatmul.mubr.f32.gmra.mxu0 %v687
    %v761 = vpop.f32.mrf.mxu0
    %v762 = vadd.f32 0.0, %v761
    %v763 = vpop.f32.mrf.mxu0
    %764 = vmatprep.mubr.f32.mxu0 0.0
    %765 = vmatmul.mubr.f32.gmra.mxu0 %v689
    %v766 = vpop.f32.mrf.mxu0
    %v767 = vadd.f32 0.0, %v766
    %v768 = vpop.f32.mrf.mxu0
    %769 = vdwg.mxu0
    %v770 = vmul.f32 %v671, 0.35355338
    %v771 = vmul.f32 %v676, 0.35355338
    %v772 = vmul.f32 %v762, 0.35355338
    %v773 = vmul.f32 %v767, 0.35355338
    %v774 = vadd.f32 %v770, %v358
    %v775 = vadd.f32 %v771, %v358
    %v776 = vadd.f32 %v772, %v362
    %v777 = vadd.f32 %v773, %v362
    %v778 = vsel %vm369, %v774, -inf
    %779 = vmax.xlane.f32.xlu0 %v778
    %v780 = vpop.xlane.xlu0 %779
    %v781 = vsel %vm369, %v775, -inf
    %782 = vmax.xlane.f32.xlu0 %v781
    %v783 = vpop.xlane.xlu0 %782
    %v784 = vsel %vm369, %v776, -inf
    %785 = vmax.xlane.f32.xlu0 %v784
    %v786 = vpop.xlane.xlu0 %785
    %v787 = vsel %vm369, %v777, -inf
    %788 = vmax.xlane.f32.xlu0 %v787
    %v789 = vpop.xlane.xlu0 %788
    %v790 = vsub.f32 %v774, %v780
    %v791 = vsub.f32 %v775, %v783
    %v792 = vsub.f32 %v776, %v786
    %v793 = vsub.f32 %v777, %v789
    %v794 = vmul.f32 %v790, 1.442695
    %v795 = vpow.pop %v794
    %v796 = vmul.f32 %v791, 1.442695
    %v797 = vpow.pop %v796
    %v798 = vmul.f32 %v792, 1.442695
    %v799 = vpow.pop %v798
    %v800 = vmul.f32 %v793, 1.442695
    %v801 = vpow.pop %v800
    %v802 = vsel %vm369, %v795, 0.0
    %803 = vadd.xlane.f32.xlu0 %v802
    %v804 = vpop.xlane.xlu0 %803
    %v805 = vsel %vm369, %v797, 0.0
    %806 = vadd.xlane.f32.xlu0 %v805
    %v807 = vpop.xlane.xlu0 %806
    %v808 = vsel %vm369, %v799, 0.0
    %809 = vadd.xlane.f32.xlu0 %v808
    %v810 = vpop.xlane.xlu0 %809
    %v811 = vsel %vm369, %v801, 0.0
    %812 = vadd.xlane.f32.xlu0 %v811
    %v813 = vpop.xlane.xlu0 %812
    %v814 = vrcp.pop %v804
    %v815 = vrcp.pop %v807
    %v816 = vrcp.pop %v810
    %v817 = vrcp.pop %v813
    %v818 = vmul.f32 %v795, %v814
    %v819 = vmul.f32 %v797, %v815
    %v820 = vmul.f32 %v799, %v816
    %v821 = vmul.f32 %v801, %v817
    %822 = vrot.lane.b32.xlu0 %v152, 56
    %v823 = vpop.permute.xlu0 %822
    %824 = vrot.lane.b32.xlu0 %v157, 56
    %v825 = vpop.permute.xlu0 %824
    %v829 = vsel %vm369, %v818, 0
    %v832 = vsel %vm369, %v819, 0
    %834 = vmatprep.subr.mxu0 0.0
    %835 = vmatpush1.msra.mxu0 0.0
    %836 = vmatprep.subr.mxu0 0.0
    %837 = vmatpush1.msra.mxu0 0.0
    %838 = vmatprep.subr.mxu0 0.0
    %839 = vmatpush1.msra.mxu0 0.0
    %840 = vmatprep.subr.mxu0 0.0
    %841 = vmatpush1.msra.mxu0 0.0
    %842 = vmatprep.subr.mxu0 0.0
    %843 = vmatpush1.msra.mxu0 0.0
    %844 = vmatprep.subr.mxu0 0.0
    %845 = vmatpush1.msra.mxu0 0.0
    %846 = vmatprep.subr.mxu0 0.0
    %847 = vmatpush1.msra.mxu0 0.0
    %848 = vmatprep.subr.mxu0 0.0
    %849 = vmatpush1.msra.mxu0 0.0
    %850 = vmatprep.subr.mxu0 0.0
    %851 = vmatpush1.msra.mxu0 0.0
    %852 = vmatprep.subr.mxu0 0.0
    %853 = vmatpush1.msra.mxu0 0.0
    %854 = vmatprep.subr.mxu0 0.0
    %855 = vmatpush1.msra.mxu0 0.0
    %856 = vmatprep.subr.mxu0 0.0
    %857 = vmatpush1.msra.mxu0 0.0
    %858 = vmatprep.subr.mxu0 0.0
    %859 = vmatpush1.msra.mxu0 0.0
    %860 = vmatprep.subr.mxu0 0.0
    %861 = vmatpush1.msra.mxu0 0.0
    %862 = vmatprep.subr.mxu0 0.0
    %863 = vmatpush1.msra.mxu0 %v825
    %864 = vmatprep.subr.mxu0 0.0
    %865 = vmatpush1.msra.mxu0 %v823
    %866 = vmatprep.subr.mxu0 0.0
    %867 = vmatpush2.msra.mxu0 0.0
    %868 = vmatprep.subr.mxu0 0.0
    %869 = vmatpush2.msra.mxu0 0.0
    %870 = vmatprep.subr.mxu0 0.0
    %871 = vmatpush2.msra.mxu0 0.0
    %872 = vmatprep.subr.mxu0 0.0
    %873 = vmatpush2.msra.mxu0 0.0
    %874 = vmatprep.subr.mxu0 0.0
    %875 = vmatpush2.msra.mxu0 0.0
    %876 = vmatprep.subr.mxu0 0.0
    %877 = vmatpush2.msra.mxu0 0.0
    %878 = vmatprep.subr.mxu0 0.0
    %879 = vmatpush2.msra.mxu0 0.0
    %880 = vmatprep.subr.mxu0 0.0
    %881 = vmatpush2.msra.mxu0 0.0
    %882 = vmatprep.subr.mxu0 0.0
    %883 = vmatpush2.msra.mxu0 0.0
    %884 = vmatprep.subr.mxu0 0.0
    %885 = vmatpush2.msra.mxu0 0.0
    %886 = vmatprep.subr.mxu0 0.0
    %887 = vmatpush2.msra.mxu0 0.0
    %888 = vmatprep.subr.mxu0 0.0
    %889 = vmatpush2.msra.mxu0 0.0
    %890 = vmatprep.subr.mxu0 0.0
    %891 = vmatpush2.msra.mxu0 0.0
    %892 = vmatprep.subr.mxu0 0.0
    %893 = vmatpush2.msra.mxu0 0.0
    %894 = vmatprep.subr.mxu0 0.0
    %895 = vmatpush2.msra.mxu0 0.0
    %896 = vmatprep.subr.mxu0 0.0
    %897 = vmatpush2.msra.mxu0 0.0
    %898 = vmatprep.mubr.f32.mxu0 0.0
    %899 = vmatmul.mubr.f32.gmra.mxu0 %v829
    %v900 = vpop.f32.mrf.mxu0
    %v901 = vadd.f32 0.0, %v900
    %v902 = vpop.f32.mrf.mxu0
    %903 = vmatprep.mubr.f32.mxu0 0.0
    %904 = vmatmul.mubr.f32.gmra.mxu0 %v832
    %v905 = vpop.f32.mrf.mxu0
    %v906 = vadd.f32 0.0, %v905
    %v907 = vpop.f32.mrf.mxu0
    %908 = vdwg.mxu0
    %909 = vrot.lane.b32.xlu0 %v162, 56
    %v910 = vpop.permute.xlu0 %909
    %911 = vrot.lane.b32.xlu0 %v167, 56
    %v912 = vpop.permute.xlu0 %911
    %v916 = vsel %vm369, %v820, 0
    %v919 = vsel %vm369, %v821, 0
    %921 = vmatprep.subr.mxu0 0.0
    %922 = vmatpush1.msra.mxu0 0.0
    %923 = vmatprep.subr.mxu0 0.0
    %924 = vmatpush1.msra.mxu0 0.0
    %925 = vmatprep.subr.mxu0 0.0
    %926 = vmatpush1.msra.mxu0 0.0
    %927 = vmatprep.subr.mxu0 0.0
    %928 = vmatpush1.msra.mxu0 0.0
    %929 = vmatprep.subr.mxu0 0.0
    %930 = vmatpush1.msra.mxu0 0.0
    %931 = vmatprep.subr.mxu0 0.0
    %932 = vmatpush1.msra.mxu0 0.0
    %933 = vmatprep.subr.mxu0 0.0
    %934 = vmatpush1.msra.mxu0 0.0
    %935 = vmatprep.subr.mxu0 0.0
    %936 = vmatpush1.msra.mxu0 0.0
    %937 = vmatprep.subr.mxu0 0.0
    %938 = vmatpush1.msra.mxu0 0.0
    %939 = vmatprep.subr.mxu0 0.0
    %940 = vmatpush1.msra.mxu0 0.0
    %941 = vmatprep.subr.mxu0 0.0
    %942 = vmatpush1.msra.mxu0 0.0
    %943 = vmatprep.subr.mxu0 0.0
    %944 = vmatpush1.msra.mxu0 0.0
    %945 = vmatprep.subr.mxu0 0.0
    %946 = vmatpush1.msra.mxu0 0.0
    %947 = vmatprep.subr.mxu0 0.0
    %948 = vmatpush1.msra.mxu0 0.0
    %949 = vmatprep.subr.mxu0 0.0
    %950 = vmatpush1.msra.mxu0 %v912
    %951 = vmatprep.subr.mxu0 0.0
    %952 = vmatpush1.msra.mxu0 %v910
    %953 = vmatprep.subr.mxu0 0.0
    %954 = vmatpush2.msra.mxu0 0.0
    %955 = vmatprep.subr.mxu0 0.0
    %956 = vmatpush2.msra.mxu0 0.0
    %957 = vmatprep.subr.mxu0 0.0
    %958 = vmatpush2.msra.mxu0 0.0
    %959 = vmatprep.subr.mxu0 0.0
    %960 = vmatpush2.msra.mxu0 0.0
    %961 = vmatprep.subr.mxu0 0.0
    %962 = vmatpush2.msra.mxu0 0.0
    %963 = vmatprep.subr.mxu0 0.0
    %964 = vmatpush2.msra.mxu0 0.0
    %965 = vmatprep.subr.mxu0 0.0
    %966 = vmatpush2.msra.mxu0 0.0
    %967 = vmatprep.subr.mxu0 0.0
    %968 = vmatpush2.msra.mxu0 0.0
    %969 = vmatprep.subr.mxu0 0.0
    %970 = vmatpush2.msra.mxu0 0.0
    %971 = vmatprep.subr.mxu0 0.0
    %972 = vmatpush2.msra.mxu0 0.0
    %973 = vmatprep.subr.mxu0 0.0
    %974 = vmatpush2.msra.mxu0 0.0
    %975 = vmatprep.subr.mxu0 0.0
    %976 = vmatpush2.msra.mxu0 0.0
    %977 = vmatprep.subr.mxu0 0.0
    %978 = vmatpush2.msra.mxu0 0.0
    %979 = vmatprep.subr.mxu0 0.0
    %980 = vmatpush2.msra.mxu0 0.0
    %981 = vmatprep.subr.mxu0 0.0
    %982 = vmatpush2.msra.mxu0 0.0
    %983 = vmatprep.subr.mxu0 0.0
    %984 = vmatpush2.msra.mxu0 0.0
    %985 = vmatprep.mubr.f32.mxu0 0.0
    %986 = vmatmul.mubr.f32.gmra.mxu0 %v916
    %v987 = vpop.f32.mrf.mxu0
    %v988 = vadd.f32 0.0, %v987
    %v989 = vpop.f32.mrf.mxu0
    %990 = vmatprep.mubr.f32.mxu0 0.0
    %991 = vmatmul.mubr.f32.gmra.mxu0 %v919
    %v992 = vpop.f32.mrf.mxu0
    %v993 = vadd.f32 0.0, %v992
    %v994 = vpop.f32.mrf.mxu0
    %995 = vdwg.mxu0
    %996 = vrot.lane.b32.xlu0 %v152, 112
    %v997 = vpop.permute.xlu0 %996
    %998 = vrot.lane.b32.xlu0 %v157, 112
    %v999 = vpop.permute.xlu0 %998
    %1000 = vrot.lane.b32.xlu0 %v152, 80
    %v1001 = vpop.permute.xlu0 %1000
    %1002 = vrot.lane.b32.xlu0 %v157, 80
    %v1003 = vpop.permute.xlu0 %1002
    %v1004 = vsel %vm176, %v997, 0
    %v1006 = vsel %vm176, %v999, 0
    %v1008 = vsel %vm176, %v1001, 0
    %v1010 = vsel %vm176, %v1003, 0
    %1012 = vmatprep.subr.mxu0 0.0
    %1013 = vmatpush1.xpose.msra.mxu0 0.0
    %1014 = vmatprep.subr.mxu0 0.0
    %1015 = vmatpush1.xpose.msra.mxu0 0.0
    %1016 = vmatprep.subr.mxu0 0.0
    %1017 = vmatpush1.xpose.msra.mxu0 0.0
    %1018 = vmatprep.subr.mxu0 0.0
    %1019 = vmatpush1.xpose.msra.mxu0 0.0
    %1020 = vmatprep.subr.mxu0 0.0
    %1021 = vmatpush1.xpose.msra.mxu0 0.0
    %1022 = vmatprep.subr.mxu0 0.0
    %1023 = vmatpush1.xpose.msra.mxu0 0.0
    %1024 = vmatprep.subr.mxu0 0.0
    %1025 = vmatpush1.xpose.msra.mxu0 0.0
    %1026 = vmatprep.subr.mxu0 0.0
    %1027 = vmatpush1.xpose.msra.mxu0 0.0
    %1028 = vmatprep.subr.mxu0 0.0
    %1029 = vmatpush1.xpose.msra.mxu0 0.0
    %1030 = vmatprep.subr.mxu0 0.0
    %1031 = vmatpush1.xpose.msra.mxu0 0.0
    %1032 = vmatprep.subr.mxu0 0.0
    %1033 = vmatpush1.xpose.msra.mxu0 0.0
    %1034 = vmatprep.subr.mxu0 0.0
    %1035 = vmatpush1.xpose.msra.mxu0 0.0
    %1036 = vmatprep.subr.mxu0 0.0
    %1037 = vmatpush1.xpose.msra.mxu0 0.0
    %1038 = vmatprep.subr.mxu0 0.0
    %1039 = vmatpush1.xpose.msra.mxu0 0.0
    %1040 = vmatprep.subr.mxu0 0.0
    %1041 = vmatpush1.xpose.msra.mxu0 %v1010
    %1042 = vmatprep.subr.mxu0 0.0
    %1043 = vmatpush1.xpose.msra.mxu0 %v1008
    %1044 = vmatprep.subr.mxu0 0.0
    %1045 = vmatpush2.xpose.msra.mxu0 0.0
    %1046 = vmatprep.subr.mxu0 0.0
    %1047 = vmatpush2.xpose.msra.mxu0 0.0
    %1048 = vmatprep.subr.mxu0 0.0
    %1049 = vmatpush2.xpose.msra.mxu0 0.0
    %1050 = vmatprep.subr.mxu0 0.0
    %1051 = vmatpush2.xpose.msra.mxu0 0.0
    %1052 = vmatprep.subr.mxu0 0.0
    %1053 = vmatpush2.xpose.msra.mxu0 0.0
    %1054 = vmatprep.subr.mxu0 0.0
    %1055 = vmatpush2.xpose.msra.mxu0 0.0
    %1056 = vmatprep.subr.mxu0 0.0
    %1057 = vmatpush2.xpose.msra.mxu0 0.0
    %1058 = vmatprep.subr.mxu0 0.0
    %1059 = vmatpush2.xpose.msra.mxu0 0.0
    %1060 = vmatprep.subr.mxu0 0.0
    %1061 = vmatpush2.xpose.msra.mxu0 0.0
    %1062 = vmatprep.subr.mxu0 0.0
    %1063 = vmatpush2.xpose.msra.mxu0 0.0
    %1064 = vmatprep.subr.mxu0 0.0
    %1065 = vmatpush2.xpose.msra.mxu0 0.0
    %1066 = vmatprep.subr.mxu0 0.0
    %1067 = vmatpush2.xpose.msra.mxu0 0.0
    %1068 = vmatprep.subr.mxu0 0.0
    %1069 = vmatpush2.xpose.msra.mxu0 0.0
    %1070 = vmatprep.subr.mxu0 0.0
    %1071 = vmatpush2.xpose.msra.mxu0 0.0
    %1072 = vmatprep.subr.mxu0 0.0
    %1073 = vmatpush2.xpose.msra.mxu0 0.0
    %1074 = vmatprep.subr.mxu0 0.0
    %1075 = vmatpush2.xpose.msra.mxu0 0.0
    %1076 = vmatprep.mubr.f32.mxu0 0.0
    %1077 = vmatmul.mubr.f32.gmra.mxu0 %v1004
    %v1078 = vpop.f32.mrf.mxu0
    %v1079 = vadd.f32 0.0, %v1078
    %v1080 = vpop.f32.mrf.mxu0
    %1081 = vmatprep.mubr.f32.mxu0 0.0
    %1082 = vmatmul.mubr.f32.gmra.mxu0 %v1006
    %v1083 = vpop.f32.mrf.mxu0
    %v1084 = vadd.f32 0.0, %v1083
    %v1085 = vpop.f32.mrf.mxu0
    %1086 = vdwg.mxu0
    %1087 = vrot.lane.b32.xlu0 %v162, 112
    %v1088 = vpop.permute.xlu0 %1087
    %1089 = vrot.lane.b32.xlu0 %v167, 112
    %v1090 = vpop.permute.xlu0 %1089
    %1091 = vrot.lane.b32.xlu0 %v162, 80
    %v1092 = vpop.permute.xlu0 %1091
    %1093 = vrot.lane.b32.xlu0 %v167, 80
    %v1094 = vpop.permute.xlu0 %1093
    %v1095 = vsel %vm176, %v1088, 0
    %v1097 = vsel %vm176, %v1090, 0
    %v1099 = vsel %vm176, %v1092, 0
    %v1101 = vsel %vm176, %v1094, 0
    %1103 = vmatprep.subr.mxu0 0.0
    %1104 = vmatpush1.xpose.msra.mxu0 0.0
    %1105 = vmatprep.subr.mxu0 0.0
    %1106 = vmatpush1.xpose.msra.mxu0 0.0
    %1107 = vmatprep.subr.mxu0 0.0
    %1108 = vmatpush1.xpose.msra.mxu0 0.0
    %1109 = vmatprep.subr.mxu0 0.0
    %1110 = vmatpush1.xpose.msra.mxu0 0.0
    %1111 = vmatprep.subr.mxu0 0.0
    %1112 = vmatpush1.xpose.msra.mxu0 0.0
    %1113 = vmatprep.subr.mxu0 0.0
    %1114 = vmatpush1.xpose.msra.mxu0 0.0
    %1115 = vmatprep.subr.mxu0 0.0
    %1116 = vmatpush1.xpose.msra.mxu0 0.0
    %1117 = vmatprep.subr.mxu0 0.0
    %1118 = vmatpush1.xpose.msra.mxu0 0.0
    %1119 = vmatprep.subr.mxu0 0.0
    %1120 = vmatpush1.xpose.msra.mxu0 0.0
    %1121 = vmatprep.subr.mxu0 0.0
    %1122 = vmatpush1.xpose.msra.mxu0 0.0
    %1123 = vmatprep.subr.mxu0 0.0
    %1124 = vmatpush1.xpose.msra.mxu0 0.0
    %1125 = vmatprep.subr.mxu0 0.0
    %1126 = vmatpush1.xpose.msra.mxu0 0.0
    %1127 = vmatprep.subr.mxu0 0.0
    %1128 = vmatpush1.xpose.msra.mxu0 0.0
    %1129 = vmatprep.subr.mxu0 0.0
    %1130 = vmatpush1.xpose.msra.mxu0 0.0
    %1131 = vmatprep.subr.mxu0 0.0
    %1132 = vmatpush1.xpose.msra.mxu0 %v1101
    %1133 = vmatprep.subr.mxu0 0.0
    %1134 = vmatpush1.xpose.msra.mxu0 %v1099
    %1135 = vmatprep.subr.mxu0 0.0
    %1136 = vmatpush2.xpose.msra.mxu0 0.0
    %1137 = vmatprep.subr.mxu0 0.0
    %1138 = vmatpush2.xpose.msra.mxu0 0.0
    %1139 = vmatprep.subr.mxu0 0.0
    %1140 = vmatpush2.xpose.msra.mxu0 0.0
    %1141 = vmatprep.subr.mxu0 0.0
    %1142 = vmatpush2.xpose.msra.mxu0 0.0
    %1143 = vmatprep.subr.mxu0 0.0
    %1144 = vmatpush2.xpose.msra.mxu0 0.0
    %1145 = vmatprep.subr.mxu0 0.0
    %1146 = vmatpush2.xpose.msra.mxu0 0.0
    %1147 = vmatprep.subr.mxu0 0.0
    %1148 = vmatpush2.xpose.msra.mxu0 0.0
    %1149 = vmatprep.subr.mxu0 0.0
    %1150 = vmatpush2.xpose.msra.mxu0 0.0
    %1151 = vmatprep.subr.mxu0 0.0
    %1152 = vmatpush2.xpose.msra.mxu0 0.0
    %1153 = vmatprep.subr.mxu0 0.0
    %1154 = vmatpush2.xpose.msra.mxu0 0.0
    %1155 = vmatprep.subr.mxu0 0.0
    %1156 = vmatpush2.xpose.msra.mxu0 0.0
    %1157 = vmatprep.subr.mxu0 0.0
    %1158 = vmatpush2.xpose.msra.mxu0 0.0
    %1159 = vmatprep.subr.mxu0 0.0
    %1160 = vmatpush2.xpose.msra.mxu0 0.0
    %1161 = vmatprep.subr.mxu0 0.0
    %1162 = vmatpush2.xpose.msra.mxu0 0.0
    %1163 = vmatprep.subr.mxu0 0.0
    %1164 = vmatpush2.xpose.msra.mxu0 0.0
    %1165 = vmatprep.subr.mxu0 0.0
    %1166 = vmatpush2.xpose.msra.mxu0 0.0
    %1167 = vmatprep.mubr.f32.mxu0 0.0
    %1168 = vmatmul.mubr.f32.gmra.mxu0 %v1095
    %v1169 = vpop.f32.mrf.mxu0
    %v1170 = vadd.f32 0.0, %v1169
    %v1171 = vpop.f32.mrf.mxu0
    %1172 = vmatprep.mubr.f32.mxu0 0.0
    %1173 = vmatmul.mubr.f32.gmra.mxu0 %v1097
    %v1174 = vpop.f32.mrf.mxu0
    %v1175 = vadd.f32 0.0, %v1174
    %v1176 = vpop.f32.mrf.mxu0
    %1177 = vdwg.mxu0
    %v1178 = vmul.f32 %v1079, 0.35355338
    %v1179 = vmul.f32 %v1084, 0.35355338
    %v1180 = vmul.f32 %v1170, 0.35355338
    %v1181 = vmul.f32 %v1175, 0.35355338
    %v1182 = vadd.f32 %v1178, %v358
    %v1183 = vadd.f32 %v1179, %v358
    %v1184 = vadd.f32 %v1180, %v362
    %v1185 = vadd.f32 %v1181, %v362
    %v1186 = vsel %vm369, %v1182, -inf
    %1187 = vmax.xlane.f32.xlu0 %v1186
    %v1188 = vpop.xlane.xlu0 %1187
    %v1189 = vsel %vm369, %v1183, -inf
    %1190 = vmax.xlane.f32.xlu0 %v1189
    %v1191 = vpop.xlane.xlu0 %1190
    %v1192 = vsel %vm369, %v1184, -inf
    %1193 = vmax.xlane.f32.xlu0 %v1192
    %v1194 = vpop.xlane.xlu0 %1193
    %v1195 = vsel %vm369, %v1185, -inf
    %1196 = vmax.xlane.f32.xlu0 %v1195
    %v1197 = vpop.xlane.xlu0 %1196
    %v1198 = vsub.f32 %v1182, %v1188
    %v1199 = vsub.f32 %v1183, %v1191
    %v1200 = vsub.f32 %v1184, %v1194
    %v1201 = vsub.f32 %v1185, %v1197
    %v1202 = vmul.f32 %v1198, 1.442695
    %v1203 = vpow.pop %v1202
    %v1204 = vmul.f32 %v1199, 1.442695
    %v1205 = vpow.pop %v1204
    %v1206 = vmul.f32 %v1200, 1.442695
    %v1207 = vpow.pop %v1206
    %v1208 = vmul.f32 %v1201, 1.442695
    %v1209 = vpow.pop %v1208
    %v1210 = vsel %vm369, %v1203, 0.0
    %1211 = vadd.xlane.f32.xlu0 %v1210
    %v1212 = vpop.xlane.xlu0 %1211
    %v1213 = vsel %vm369, %v1205, 0.0
    %1214 = vadd.xlane.f32.xlu0 %v1213
    %v1215 = vpop.xlane.xlu0 %1214
    %v1216 = vsel %vm369, %v1207, 0.0
    %1217 = vadd.xlane.f32.xlu0 %v1216
    %v1218 = vpop.xlane.xlu0 %1217
    %v1219 = vsel %vm369, %v1209, 0.0
    %1220 = vadd.xlane.f32.xlu0 %v1219
    %v1221 = vpop.xlane.xlu0 %1220
    %v1222 = vrcp.pop %v1212
    %v1223 = vrcp.pop %v1215
    %v1224 = vrcp.pop %v1218
    %v1225 = vrcp.pop %v1221
    %v1226 = vmul.f32 %v1203, %v1222
    %v1227 = vmul.f32 %v1205, %v1223
    %v1228 = vmul.f32 %v1207, %v1224
    %v1229 = vmul.f32 %v1209, %v1225
    %1230 = vrot.lane.b32.xlu0 %v152, 48
    %v1231 = vpop.permute.xlu0 %1230
    %1232 = vrot.lane.b32.xlu0 %v157, 48
    %v1233 = vpop.permute.xlu0 %1232
    %v1237 = vsel %vm369, %v1226, 0
    %v1240 = vsel %vm369, %v1227, 0
    %1242 = vmatprep.subr.mxu0 0.0
    %1243 = vmatpush1.msra.mxu0 0.0
    %1244 = vmatprep.subr.mxu0 0.0
    %1245 = vmatpush1.msra.mxu0 0.0
    %1246 = vmatprep.subr.mxu0 0.0
    %1247 = vmatpush1.msra.mxu0 0.0
    %1248 = vmatprep.subr.mxu0 0.0
    %1249 = vmatpush1.msra.mxu0 0.0
    %1250 = vmatprep.subr.mxu0 0.0
    %1251 = vmatpush1.msra.mxu0 0.0
    %1252 = vmatprep.subr.mxu0 0.0
    %1253 = vmatpush1.msra.mxu0 0.0
    %1254 = vmatprep.subr.mxu0 0.0
    %1255 = vmatpush1.msra.mxu0 0.0
    %1256 = vmatprep.subr.mxu0 0.0
    %1257 = vmatpush1.msra.mxu0 0.0
    %1258 = vmatprep.subr.mxu0 0.0
    %1259 = vmatpush1.msra.mxu0 0.0
    %1260 = vmatprep.subr.mxu0 0.0
    %1261 = vmatpush1.msra.mxu0 0.0
    %1262 = vmatprep.subr.mxu0 0.0
    %1263 = vmatpush1.msra.mxu0 0.0
    %1264 = vmatprep.subr.mxu0 0.0
    %1265 = vmatpush1.msra.mxu0 0.0
    %1266 = vmatprep.subr.mxu0 0.0
    %1267 = vmatpush1.msra.mxu0 0.0
    %1268 = vmatprep.subr.mxu0 0.0
    %1269 = vmatpush1.msra.mxu0 0.0
    %1270 = vmatprep.subr.mxu0 0.0
    %1271 = vmatpush1.msra.mxu0 %v1233
    %1272 = vmatprep.subr.mxu0 0.0
    %1273 = vmatpush1.msra.mxu0 %v1231
    %1274 = vmatprep.subr.mxu0 0.0
    %1275 = vmatpush2.msra.mxu0 0.0
    %1276 = vmatprep.subr.mxu0 0.0
    %1277 = vmatpush2.msra.mxu0 0.0
    %1278 = vmatprep.subr.mxu0 0.0
    %1279 = vmatpush2.msra.mxu0 0.0
    %1280 = vmatprep.subr.mxu0 0.0
    %1281 = vmatpush2.msra.mxu0 0.0
    %1282 = vmatprep.subr.mxu0 0.0
    %1283 = vmatpush2.msra.mxu0 0.0
    %1284 = vmatprep.subr.mxu0 0.0
    %1285 = vmatpush2.msra.mxu0 0.0
    %1286 = vmatprep.subr.mxu0 0.0
    %1287 = vmatpush2.msra.mxu0 0.0
    %1288 = vmatprep.subr.mxu0 0.0
    %1289 = vmatpush2.msra.mxu0 0.0
    %1290 = vmatprep.subr.mxu0 0.0
    %1291 = vmatpush2.msra.mxu0 0.0
    %1292 = vmatprep.subr.mxu0 0.0
    %1293 = vmatpush2.msra.mxu0 0.0
    %1294 = vmatprep.subr.mxu0 0.0
    %1295 = vmatpush2.msra.mxu0 0.0
    %1296 = vmatprep.subr.mxu0 0.0
    %1297 = vmatpush2.msra.mxu0 0.0
    %1298 = vmatprep.subr.mxu0 0.0
    %1299 = vmatpush2.msra.mxu0 0.0
    %1300 = vmatprep.subr.mxu0 0.0
    %1301 = vmatpush2.msra.mxu0 0.0
    %1302 = vmatprep.subr.mxu0 0.0
    %1303 = vmatpush2.msra.mxu0 0.0
    %1304 = vmatprep.subr.mxu0 0.0
    %1305 = vmatpush2.msra.mxu0 0.0
    %1306 = vmatprep.mubr.f32.mxu0 0.0
    %1307 = vmatmul.mubr.f32.gmra.mxu0 %v1237
    %v1308 = vpop.f32.mrf.mxu0
    %v1309 = vadd.f32 0.0, %v1308
    %v1310 = vpop.f32.mrf.mxu0
    %1311 = vmatprep.mubr.f32.mxu0 0.0
    %1312 = vmatmul.mubr.f32.gmra.mxu0 %v1240
    %v1313 = vpop.f32.mrf.mxu0
    %v1314 = vadd.f32 0.0, %v1313
    %v1315 = vpop.f32.mrf.mxu0
    %1316 = vdwg.mxu0
    %1317 = vrot.lane.b32.xlu0 %v162, 48
    %v1318 = vpop.permute.xlu0 %1317
    %1319 = vrot.lane.b32.xlu0 %v167, 48
    %v1320 = vpop.permute.xlu0 %1319
    %v1324 = vsel %vm369, %v1228, 0
    %v1327 = vsel %vm369, %v1229, 0
    %1329 = vmatprep.subr.mxu0 0.0
    %1330 = vmatpush1.msra.mxu0 0.0
    %1331 = vmatprep.subr.mxu0 0.0
    %1332 = vmatpush1.msra.mxu0 0.0
    %1333 = vmatprep.subr.mxu0 0.0
    %1334 = vmatpush1.msra.mxu0 0.0
    %1335 = vmatprep.subr.mxu0 0.0
    %1336 = vmatpush1.msra.mxu0 0.0
    %1337 = vmatprep.subr.mxu0 0.0
    %1338 = vmatpush1.msra.mxu0 0.0
    %1339 = vmatprep.subr.mxu0 0.0
    %1340 = vmatpush1.msra.mxu0 0.0
    %1341 = vmatprep.subr.mxu0 0.0
    %1342 = vmatpush1.msra.mxu0 0.0
    %1343 = vmatprep.subr.mxu0 0.0
    %1344 = vmatpush1.msra.mxu0 0.0
    %1345 = vmatprep.subr.mxu0 0.0
    %1346 = vmatpush1.msra.mxu0 0.0
    %1347 = vmatprep.subr.mxu0 0.0
    %1348 = vmatpush1.msra.mxu0 0.0
    %1349 = vmatprep.subr.mxu0 0.0
    %1350 = vmatpush1.msra.mxu0 0.0
    %1351 = vmatprep.subr.mxu0 0.0
    %1352 = vmatpush1.msra.mxu0 0.0
    %1353 = vmatprep.subr.mxu0 0.0
    %1354 = vmatpush1.msra.mxu0 0.0
    %1355 = vmatprep.subr.mxu0 0.0
    %1356 = vmatpush1.msra.mxu0 0.0
    %1357 = vmatprep.subr.mxu0 0.0
    %1358 = vmatpush1.msra.mxu0 %v1320
    %1359 = vmatprep.subr.mxu0 0.0
    %1360 = vmatpush1.msra.mxu0 %v1318
    %1361 = vmatprep.subr.mxu0 0.0
    %1362 = vmatpush2.msra.mxu0 0.0
    %1363 = vmatprep.subr.mxu0 0.0
    %1364 = vmatpush2.msra.mxu0 0.0
    %1365 = vmatprep.subr.mxu0 0.0
    %1366 = vmatpush2.msra.mxu0 0.0
    %1367 = vmatprep.subr.mxu0 0.0
    %1368 = vmatpush2.msra.mxu0 0.0
    %1369 = vmatprep.subr.mxu0 0.0
    %1370 = vmatpush2.msra.mxu0 0.0
    %1371 = vmatprep.subr.mxu0 0.0
    %1372 = vmatpush2.msra.mxu0 0.0
    %1373 = vmatprep.subr.mxu0 0.0
    %1374 = vmatpush2.msra.mxu0 0.0
    %1375 = vmatprep.subr.mxu0 0.0
    %1376 = vmatpush2.msra.mxu0 0.0
    %1377 = vmatprep.subr.mxu0 0.0
    %1378 = vmatpush2.msra.mxu0 0.0
    %1379 = vmatprep.subr.mxu0 0.0
    %1380 = vmatpush2.msra.mxu0 0.0
    %1381 = vmatprep.subr.mxu0 0.0
    %1382 = vmatpush2.msra.mxu0 0.0
    %1383 = vmatprep.subr.mxu0 0.0
    %1384 = vmatpush2.msra.mxu0 0.0
    %1385 = vmatprep.subr.mxu0 0.0
    %1386 = vmatpush2.msra.mxu0 0.0
    %1387 = vmatprep.subr.mxu0 0.0
    %1388 = vmatpush2.msra.mxu0 0.0
    %1389 = vmatprep.subr.mxu0 0.0
    %1390 = vmatpush2.msra.mxu0 0.0
    %1391 = vmatprep.subr.mxu0 0.0
    %1392 = vmatpush2.msra.mxu0 0.0
    %1393 = vmatprep.mubr.f32.mxu0 0.0
    %1394 = vmatmul.mubr.f32.gmra.mxu0 %v1324
    %v1395 = vpop.f32.mrf.mxu0
    %v1396 = vadd.f32 0.0, %v1395
    %v1397 = vpop.f32.mrf.mxu0
    %1398 = vmatprep.mubr.f32.mxu0 0.0
    %1399 = vmatmul.mubr.f32.gmra.mxu0 %v1327
    %v1400 = vpop.f32.mrf.mxu0
    %v1401 = vadd.f32 0.0, %v1400
    %v1402 = vpop.f32.mrf.mxu0
    %1403 = vdwg.mxu0
    %1404 = vrot.lane.b32.xlu0 %v152, 104
    %v1405 = vpop.permute.xlu0 %1404
    %1406 = vrot.lane.b32.xlu0 %v157, 104
    %v1407 = vpop.permute.xlu0 %1406
    %1408 = vrot.lane.b32.xlu0 %v152, 72
    %v1409 = vpop.permute.xlu0 %1408
    %1410 = vrot.lane.b32.xlu0 %v157, 72
    %v1411 = vpop.permute.xlu0 %1410
    %v1412 = vsel %vm176, %v1405, 0
    %v1414 = vsel %vm176, %v1407, 0
    %v1416 = vsel %vm176, %v1409, 0
    %v1418 = vsel %vm176, %v1411, 0
    %1420 = vmatprep.subr.mxu0 0.0
    %1421 = vmatpush1.xpose.msra.mxu0 0.0
    %1422 = vmatprep.subr.mxu0 0.0
    %1423 = vmatpush1.xpose.msra.mxu0 0.0
    %1424 = vmatprep.subr.mxu0 0.0
    %1425 = vmatpush1.xpose.msra.mxu0 0.0
    %1426 = vmatprep.subr.mxu0 0.0
    %1427 = vmatpush1.xpose.msra.mxu0 0.0
    %1428 = vmatprep.subr.mxu0 0.0
    %1429 = vmatpush1.xpose.msra.mxu0 0.0
    %1430 = vmatprep.subr.mxu0 0.0
    %1431 = vmatpush1.xpose.msra.mxu0 0.0
    %1432 = vmatprep.subr.mxu0 0.0
    %1433 = vmatpush1.xpose.msra.mxu0 0.0
    %1434 = vmatprep.subr.mxu0 0.0
    %1435 = vmatpush1.xpose.msra.mxu0 0.0
    %1436 = vmatprep.subr.mxu0 0.0
    %1437 = vmatpush1.xpose.msra.mxu0 0.0
    %1438 = vmatprep.subr.mxu0 0.0
    %1439 = vmatpush1.xpose.msra.mxu0 0.0
    %1440 = vmatprep.subr.mxu0 0.0
    %1441 = vmatpush1.xpose.msra.mxu0 0.0
    %1442 = vmatprep.subr.mxu0 0.0
    %1443 = vmatpush1.xpose.msra.mxu0 0.0
    %1444 = vmatprep.subr.mxu0 0.0
    %1445 = vmatpush1.xpose.msra.mxu0 0.0
    %1446 = vmatprep.subr.mxu0 0.0
    %1447 = vmatpush1.xpose.msra.mxu0 0.0
    %1448 = vmatprep.subr.mxu0 0.0
    %1449 = vmatpush1.xpose.msra.mxu0 %v1418
    %1450 = vmatprep.subr.mxu0 0.0
    %1451 = vmatpush1.xpose.msra.mxu0 %v1416
    %1452 = vmatprep.subr.mxu0 0.0
    %1453 = vmatpush2.xpose.msra.mxu0 0.0
    %1454 = vmatprep.subr.mxu0 0.0
    %1455 = vmatpush2.xpose.msra.mxu0 0.0
    %1456 = vmatprep.subr.mxu0 0.0
    %1457 = vmatpush2.xpose.msra.mxu0 0.0
    %1458 = vmatprep.subr.mxu0 0.0
    %1459 = vmatpush2.xpose.msra.mxu0 0.0
    %1460 = vmatprep.subr.mxu0 0.0
    %1461 = vmatpush2.xpose.msra.mxu0 0.0
    %1462 = vmatprep.subr.mxu0 0.0
    %1463 = vmatpush2.xpose.msra.mxu0 0.0
    %1464 = vmatprep.subr.mxu0 0.0
    %1465 = vmatpush2.xpose.msra.mxu0 0.0
    %1466 = vmatprep.subr.mxu0 0.0
    %1467 = vmatpush2.xpose.msra.mxu0 0.0
    %1468 = vmatprep.subr.mxu0 0.0
    %1469 = vmatpush2.xpose.msra.mxu0 0.0
    %1470 = vmatprep.subr.mxu0 0.0
    %1471 = vmatpush2.xpose.msra.mxu0 0.0
    %1472 = vmatprep.subr.mxu0 0.0
    %1473 = vmatpush2.xpose.msra.mxu0 0.0
    %1474 = vmatprep.subr.mxu0 0.0
    %1475 = vmatpush2.xpose.msra.mxu0 0.0
    %1476 = vmatprep.subr.mxu0 0.0
    %1477 = vmatpush2.xpose.msra.mxu0 0.0
    %1478 = vmatprep.subr.mxu0 0.0
    %1479 = vmatpush2.xpose.msra.mxu0 0.0
    %1480 = vmatprep.subr.mxu0 0.0
    %1481 = vmatpush2.xpose.msra.mxu0 0.0
    %1482 = vmatprep.subr.mxu0 0.0
    %1483 = vmatpush2.xpose.msra.mxu0 0.0
    %1484 = vmatprep.mubr.f32.mxu0 0.0
    %1485 = vmatmul.mubr.f32.gmra.mxu0 %v1412
    %v1486 = vpop.f32.mrf.mxu0
    %v1487 = vadd.f32 0.0, %v1486
    %v1488 = vpop.f32.mrf.mxu0
    %1489 = vmatprep.mubr.f32.mxu0 0.0
    %1490 = vmatmul.mubr.f32.gmra.mxu0 %v1414
    %v1491 = vpop.f32.mrf.mxu0
    %v1492 = vadd.f32 0.0, %v1491
    %v1493 = vpop.f32.mrf.mxu0
    %1494 = vdwg.mxu0
    %1495 = vrot.lane.b32.xlu0 %v162, 104
    %v1496 = vpop.permute.xlu0 %1495
    %1497 = vrot.lane.b32.xlu0 %v167, 104
    %v1498 = vpop.permute.xlu0 %1497
    %1499 = vrot.lane.b32.xlu0 %v162, 72
    %v1500 = vpop.permute.xlu0 %1499
    %1501 = vrot.lane.b32.xlu0 %v167, 72
    %v1502 = vpop.permute.xlu0 %1501
    %v1503 = vsel %vm176, %v1496, 0
    %v1505 = vsel %vm176, %v1498, 0
    %v1507 = vsel %vm176, %v1500, 0
    %v1509 = vsel %vm176, %v1502, 0
    %1511 = vmatprep.subr.mxu0 0.0
    %1512 = vmatpush1.xpose.msra.mxu0 0.0
    %1513 = vmatprep.subr.mxu0 0.0
    %1514 = vmatpush1.xpose.msra.mxu0 0.0
    %1515 = vmatprep.subr.mxu0 0.0
    %1516 = vmatpush1.xpose.msra.mxu0 0.0
    %1517 = vmatprep.subr.mxu0 0.0
    %1518 = vmatpush1.xpose.msra.mxu0 0.0
    %1519 = vmatprep.subr.mxu0 0.0
    %1520 = vmatpush1.xpose.msra.mxu0 0.0
    %1521 = vmatprep.subr.mxu0 0.0
    %1522 = vmatpush1.xpose.msra.mxu0 0.0
    %1523 = vmatprep.subr.mxu0 0.0
    %1524 = vmatpush1.xpose.msra.mxu0 0.0
    %1525 = vmatprep.subr.mxu0 0.0
    %1526 = vmatpush1.xpose.msra.mxu0 0.0
    %1527 = vmatprep.subr.mxu0 0.0
    %1528 = vmatpush1.xpose.msra.mxu0 0.0
    %1529 = vmatprep.subr.mxu0 0.0
    %1530 = vmatpush1.xpose.msra.mxu0 0.0
    %1531 = vmatprep.subr.mxu0 0.0
    %1532 = vmatpush1.xpose.msra.mxu0 0.0
    %1533 = vmatprep.subr.mxu0 0.0
    %1534 = vmatpush1.xpose.msra.mxu0 0.0
    %1535 = vmatprep.subr.mxu0 0.0
    %1536 = vmatpush1.xpose.msra.mxu0 0.0
    %1537 = vmatprep.subr.mxu0 0.0
    %1538 = vmatpush1.xpose.msra.mxu0 0.0
    %1539 = vmatprep.subr.mxu0 0.0
    %1540 = vmatpush1.xpose.msra.mxu0 %v1509
    %1541 = vmatprep.subr.mxu0 0.0
    %1542 = vmatpush1.xpose.msra.mxu0 %v1507
    %1543 = vmatprep.subr.mxu0 0.0
    %1544 = vmatpush2.xpose.msra.mxu0 0.0
    %1545 = vmatprep.subr.mxu0 0.0
    %1546 = vmatpush2.xpose.msra.mxu0 0.0
    %1547 = vmatprep.subr.mxu0 0.0
    %1548 = vmatpush2.xpose.msra.mxu0 0.0
    %1549 = vmatprep.subr.mxu0 0.0
    %1550 = vmatpush2.xpose.msra.mxu0 0.0
    %1551 = vmatprep.subr.mxu0 0.0
    %1552 = vmatpush2.xpose.msra.mxu0 0.0
    %1553 = vmatprep.subr.mxu0 0.0
    %1554 = vmatpush2.xpose.msra.mxu0 0.0
    %1555 = vmatprep.subr.mxu0 0.0
    %1556 = vmatpush2.xpose.msra.mxu0 0.0
    %1557 = vmatprep.subr.mxu0 0.0
    %1558 = vmatpush2.xpose.msra.mxu0 0.0
    %1559 = vmatprep.subr.mxu0 0.0
    %1560 = vmatpush2.xpose.msra.mxu0 0.0
    %1561 = vmatprep.subr.mxu0 0.0
    %1562 = vmatpush2.xpose.msra.mxu0 0.0
    %1563 = vmatprep.subr.mxu0 0.0
    %1564 = vmatpush2.xpose.msra.mxu0 0.0
    %1565 = vmatprep.subr.mxu0 0.0
    %1566 = vmatpush2.xpose.msra.mxu0 0.0
    %1567 = vmatprep.subr.mxu0 0.0
    %1568 = vmatpush2.xpose.msra.mxu0 0.0
    %1569 = vmatprep.subr.mxu0 0.0
    %1570 = vmatpush2.xpose.msra.mxu0 0.0
    %1571 = vmatprep.subr.mxu0 0.0
    %1572 = vmatpush2.xpose.msra.mxu0 0.0
    %1573 = vmatprep.subr.mxu0 0.0
    %1574 = vmatpush2.xpose.msra.mxu0 0.0
    %1575 = vmatprep.mubr.f32.mxu0 0.0
    %1576 = vmatmul.mubr.f32.gmra.mxu0 %v1503
    %v1577 = vpop.f32.mrf.mxu0
    %v1578 = vadd.f32 0.0, %v1577
    %v1579 = vpop.f32.mrf.mxu0
    %1580 = vmatprep.mubr.f32.mxu0 0.0
    %1581 = vmatmul.mubr.f32.gmra.mxu0 %v1505
    %v1582 = vpop.f32.mrf.mxu0
    %v1583 = vadd.f32 0.0, %v1582
    %v1584 = vpop.f32.mrf.mxu0
    %1585 = vdwg.mxu0
    %v1586 = vmul.f32 %v1487, 0.35355338
    %v1587 = vmul.f32 %v1492, 0.35355338
    %v1588 = vmul.f32 %v1578, 0.35355338
    %v1589 = vmul.f32 %v1583, 0.35355338
    %v1590 = vadd.f32 %v1586, %v358
    %v1591 = vadd.f32 %v1587, %v358
    %v1592 = vadd.f32 %v1588, %v362
    %v1593 = vadd.f32 %v1589, %v362
    %v1594 = vsel %vm369, %v1590, -inf
    %1595 = vmax.xlane.f32.xlu0 %v1594
    %v1596 = vpop.xlane.xlu0 %1595
    %v1597 = vsel %vm369, %v1591, -inf
    %1598 = vmax.xlane.f32.xlu0 %v1597
    %v1599 = vpop.xlane.xlu0 %1598
    %v1600 = vsel %vm369, %v1592, -inf
    %1601 = vmax.xlane.f32.xlu0 %v1600
    %v1602 = vpop.xlane.xlu0 %1601
    %v1603 = vsel %vm369, %v1593, -inf
    %1604 = vmax.xlane.f32.xlu0 %v1603
    %v1605 = vpop.xlane.xlu0 %1604
    %v1606 = vsub.f32 %v1590, %v1596
    %v1607 = vsub.f32 %v1591, %v1599
    %v1608 = vsub.f32 %v1592, %v1602
    %v1609 = vsub.f32 %v1593, %v1605
    %v1610 = vmul.f32 %v1606, 1.442695
    %v1611 = vpow.pop %v1610
    %v1612 = vmul.f32 %v1607, 1.442695
    %v1613 = vpow.pop %v1612
    %v1614 = vmul.f32 %v1608, 1.442695
    %v1615 = vpow.pop %v1614
    %v1616 = vmul.f32 %v1609, 1.442695
    %v1617 = vpow.pop %v1616
    %v1618 = vsel %vm369, %v1611, 0.0
    %1619 = vadd.xlane.f32.xlu0 %v1618
    %v1620 = vpop.xlane.xlu0 %1619
    %v1621 = vsel %vm369, %v1613, 0.0
    %1622 = vadd.xlane.f32.xlu0 %v1621
    %v1623 = vpop.xlane.xlu0 %1622
    %v1624 = vsel %vm369, %v1615, 0.0
    %1625 = vadd.xlane.f32.xlu0 %v1624
    %v1626 = vpop.xlane.xlu0 %1625
    %v1627 = vsel %vm369, %v1617, 0.0
    %1628 = vadd.xlane.f32.xlu0 %v1627
    %v1629 = vpop.xlane.xlu0 %1628
    %v1630 = vrcp.pop %v1620
    %v1631 = vrcp.pop %v1623
    %v1632 = vrcp.pop %v1626
    %v1633 = vrcp.pop %v1629
    %v1634 = vmul.f32 %v1611, %v1630
    %v1635 = vmul.f32 %v1613, %v1631
    %v1636 = vmul.f32 %v1615, %v1632
    %v1637 = vmul.f32 %v1617, %v1633
    %1638 = vrot.lane.b32.xlu0 %v152, 40
    %v1639 = vpop.permute.xlu0 %1638
    %1640 = vrot.lane.b32.xlu0 %v157, 40
    %v1641 = vpop.permute.xlu0 %1640
    %v1645 = vsel %vm369, %v1634, 0
    %v1648 = vsel %vm369, %v1635, 0
    %1650 = vmatprep.subr.mxu0 0.0
    %1651 = vmatpush1.msra.mxu0 0.0
    %1652 = vmatprep.subr.mxu0 0.0
    %1653 = vmatpush1.msra.mxu0 0.0
    %1654 = vmatprep.subr.mxu0 0.0
    %1655 = vmatpush1.msra.mxu0 0.0
    %1656 = vmatprep.subr.mxu0 0.0
    %1657 = vmatpush1.msra.mxu0 0.0
    %1658 = vmatprep.subr.mxu0 0.0
    %1659 = vmatpush1.msra.mxu0 0.0
    %1660 = vmatprep.subr.mxu0 0.0
    %1661 = vmatpush1.msra.mxu0 0.0
    %1662 = vmatprep.subr.mxu0 0.0
    %1663 = vmatpush1.msra.mxu0 0.0
    %1664 = vmatprep.subr.mxu0 0.0
    %1665 = vmatpush1.msra.mxu0 0.0
    %1666 = vmatprep.subr.mxu0 0.0
    %1667 = vmatpush1.msra.mxu0 0.0
    %1668 = vmatprep.subr.mxu0 0.0
    %1669 = vmatpush1.msra.mxu0 0.0
    %1670 = vmatprep.subr.mxu0 0.0
    %1671 = vmatpush1.msra.mxu0 0.0
    %1672 = vmatprep.subr.mxu0 0.0
    %1673 = vmatpush1.msra.mxu0 0.0
    %1674 = vmatprep.subr.mxu0 0.0
    %1675 = vmatpush1.msra.mxu0 0.0
    %1676 = vmatprep.subr.mxu0 0.0
    %1677 = vmatpush1.msra.mxu0 0.0
    %1678 = vmatprep.subr.mxu0 0.0
    %1679 = vmatpush1.msra.mxu0 %v1641
    %1680 = vmatprep.subr.mxu0 0.0
    %1681 = vmatpush1.msra.mxu0 %v1639
    %1682 = vmatprep.subr.mxu0 0.0
    %1683 = vmatpush2.msra.mxu0 0.0
    %1684 = vmatprep.subr.mxu0 0.0
    %1685 = vmatpush2.msra.mxu0 0.0
    %1686 = vmatprep.subr.mxu0 0.0
    %1687 = vmatpush2.msra.mxu0 0.0
    %1688 = vmatprep.subr.mxu0 0.0
    %1689 = vmatpush2.msra.mxu0 0.0
    %1690 = vmatprep.subr.mxu0 0.0
    %1691 = vmatpush2.msra.mxu0 0.0
    %1692 = vmatprep.subr.mxu0 0.0
    %1693 = vmatpush2.msra.mxu0 0.0
    %1694 = vmatprep.subr.mxu0 0.0
    %1695 = vmatpush2.msra.mxu0 0.0
    %1696 = vmatprep.subr.mxu0 0.0
    %1697 = vmatpush2.msra.mxu0 0.0
    %1698 = vmatprep.subr.mxu0 0.0
    %1699 = vmatpush2.msra.mxu0 0.0
    %1700 = vmatprep.subr.mxu0 0.0
    %1701 = vmatpush2.msra.mxu0 0.0
    %1702 = vmatprep.subr.mxu0 0.0
    %1703 = vmatpush2.msra.mxu0 0.0
    %1704 = vmatprep.subr.mxu0 0.0
    %1705 = vmatpush2.msra.mxu0 0.0
    %1706 = vmatprep.subr.mxu0 0.0
    %1707 = vmatpush2.msra.mxu0 0.0
    %1708 = vmatprep.subr.mxu0 0.0
    %1709 = vmatpush2.msra.mxu0 0.0
    %1710 = vmatprep.subr.mxu0 0.0
    %1711 = vmatpush2.msra.mxu0 0.0
    %1712 = vmatprep.subr.mxu0 0.0
    %1713 = vmatpush2.msra.mxu0 0.0
    %1714 = vmatprep.mubr.f32.mxu0 0.0
    %1715 = vmatmul.mubr.f32.gmra.mxu0 %v1645
    %v1716 = vpop.f32.mrf.mxu0
    %v1717 = vadd.f32 0.0, %v1716
    %v1718 = vpop.f32.mrf.mxu0
    %1719 = vmatprep.mubr.f32.mxu0 0.0
    %1720 = vmatmul.mubr.f32.gmra.mxu0 %v1648
    %v1721 = vpop.f32.mrf.mxu0
    %v1722 = vadd.f32 0.0, %v1721
    %v1723 = vpop.f32.mrf.mxu0
    %1724 = vdwg.mxu0
    %1725 = vrot.lane.b32.xlu0 %v162, 40
    %v1726 = vpop.permute.xlu0 %1725
    %1727 = vrot.lane.b32.xlu0 %v167, 40
    %v1728 = vpop.permute.xlu0 %1727
    %v1732 = vsel %vm369, %v1636, 0
    %v1735 = vsel %vm369, %v1637, 0
    %1737 = vmatprep.subr.mxu0 0.0
    %1738 = vmatpush1.msra.mxu0 0.0
    %1739 = vmatprep.subr.mxu0 0.0
    %1740 = vmatpush1.msra.mxu0 0.0
    %1741 = vmatprep.subr.mxu0 0.0
    %1742 = vmatpush1.msra.mxu0 0.0
    %1743 = vmatprep.subr.mxu0 0.0
    %1744 = vmatpush1.msra.mxu0 0.0
    %1745 = vmatprep.subr.mxu0 0.0
    %1746 = vmatpush1.msra.mxu0 0.0
    %1747 = vmatprep.subr.mxu0 0.0
    %1748 = vmatpush1.msra.mxu0 0.0
    %1749 = vmatprep.subr.mxu0 0.0
    %1750 = vmatpush1.msra.mxu0 0.0
    %1751 = vmatprep.subr.mxu0 0.0
    %1752 = vmatpush1.msra.mxu0 0.0
    %1753 = vmatprep.subr.mxu0 0.0
    %1754 = vmatpush1.msra.mxu0 0.0
    %1755 = vmatprep.subr.mxu0 0.0
    %1756 = vmatpush1.msra.mxu0 0.0
    %1757 = vmatprep.subr.mxu0 0.0
    %1758 = vmatpush1.msra.mxu0 0.0
    %1759 = vmatprep.subr.mxu0 0.0
    %1760 = vmatpush1.msra.mxu0 0.0
    %1761 = vmatprep.subr.mxu0 0.0
    %1762 = vmatpush1.msra.mxu0 0.0
    %1763 = vmatprep.subr.mxu0 0.0
    %1764 = vmatpush1.msra.mxu0 0.0
    %1765 = vmatprep.subr.mxu0 0.0
    %1766 = vmatpush1.msra.mxu0 %v1728
    %1767 = vmatprep.subr.mxu0 0.0
    %1768 = vmatpush1.msra.mxu0 %v1726
    %1769 = vmatprep.subr.mxu0 0.0
    %1770 = vmatpush2.msra.mxu0 0.0
    %1771 = vmatprep.subr.mxu0 0.0
    %1772 = vmatpush2.msra.mxu0 0.0
    %1773 = vmatprep.subr.mxu0 0.0
    %1774 = vmatpush2.msra.mxu0 0.0
    %1775 = vmatprep.subr.mxu0 0.0
    %1776 = vmatpush2.msra.mxu0 0.0
    %1777 = vmatprep.subr.mxu0 0.0
    %1778 = vmatpush2.msra.mxu0 0.0
    %1779 = vmatprep.subr.mxu0 0.0
    %1780 = vmatpush2.msra.mxu0 0.0
    %1781 = vmatprep.subr.mxu0 0.0
    %1782 = vmatpush2.msra.mxu0 0.0
    %1783 = vmatprep.subr.mxu0 0.0
    %1784 = vmatpush2.msra.mxu0 0.0
    %1785 = vmatprep.subr.mxu0 0.0
    %1786 = vmatpush2.msra.mxu0 0.0
    %1787 = vmatprep.subr.mxu0 0.0
    %1788 = vmatpush2.msra.mxu0 0.0
    %1789 = vmatprep.subr.mxu0 0.0
    %1790 = vmatpush2.msra.mxu0 0.0
    %1791 = vmatprep.subr.mxu0 0.0
    %1792 = vmatpush2.msra.mxu0 0.0
    %1793 = vmatprep.subr.mxu0 0.0
    %1794 = vmatpush2.msra.mxu0 0.0
    %1795 = vmatprep.subr.mxu0 0.0
    %1796 = vmatpush2.msra.mxu0 0.0
    %1797 = vmatprep.subr.mxu0 0.0
    %1798 = vmatpush2.msra.mxu0 0.0
    %1799 = vmatprep.subr.mxu0 0.0
    %1800 = vmatpush2.msra.mxu0 0.0
    %1801 = vmatprep.mubr.f32.mxu0 0.0
    %1802 = vmatmul.mubr.f32.gmra.mxu0 %v1732
    %v1803 = vpop.f32.mrf.mxu0
    %v1804 = vadd.f32 0.0, %v1803
    %v1805 = vpop.f32.mrf.mxu0
    %1806 = vmatprep.mubr.f32.mxu0 0.0
    %1807 = vmatmul.mubr.f32.gmra.mxu0 %v1735
    %v1808 = vpop.f32.mrf.mxu0
    %v1809 = vadd.f32 0.0, %v1808
    %v1810 = vpop.f32.mrf.mxu0
    %1811 = vdwg.mxu0
    %1816 = vrot.lane.b32.xlu0 %v901, 8
    %v1817 = vpop.permute.xlu0 %1816
    %1818 = vrot.lane.b32.xlu0 %v906, 8
    %v1819 = vpop.permute.xlu0 %1818
    %1820 = vrot.lane.b32.xlu0 %v988, 8
    %v1821 = vpop.permute.xlu0 %1820
    %1822 = vrot.lane.b32.xlu0 %v993, 8
    %v1823 = vpop.permute.xlu0 %1822
    %1832 = vrot.lane.b32.xlu0 %v1309, 16
    %v1833 = vpop.permute.xlu0 %1832
    %1834 = vrot.lane.b32.xlu0 %v1314, 16
    %v1835 = vpop.permute.xlu0 %1834
    %1836 = vrot.lane.b32.xlu0 %v1396, 16
    %v1837 = vpop.permute.xlu0 %1836
    %1838 = vrot.lane.b32.xlu0 %v1401, 16
    %v1839 = vpop.permute.xlu0 %1838
    %1848 = vrot.lane.b32.xlu0 %v1717, 24
    %v1849 = vpop.permute.xlu0 %1848
    %1850 = vrot.lane.b32.xlu0 %v1722, 24
    %v1851 = vpop.permute.xlu0 %1850
    %1852 = vrot.lane.b32.xlu0 %v1804, 24
    %v1853 = vpop.permute.xlu0 %1852
    %1854 = vrot.lane.b32.xlu0 %v1809, 24
    %v1855 = vpop.permute.xlu0 %1854
    %v1860 = vsel %vm176, %v493, %v1817
    %v1861 = vsel %vm176, %v498, %v1819
    %v1862 = vsel %vm176, %v580, %v1821
    %v1863 = vsel %vm176, %v585, %v1823
    %v1864 = vsel %vm369, %v1860, %v1833
    %v1865 = vsel %vm369, %v1861, %v1835
    %v1866 = vsel %vm369, %v1862, %v1837
    %v1867 = vsel %vm369, %v1863, %v1839
    %vm1868 = vcmask 195584
    %v1869 = vsel %vm1868, %v1864, %v1849
    %v1870 = vsel %vm1868, %v1865, %v1851
    %v1871 = vsel %vm1868, %v1866, %v1853
    %v1872 = vsel %vm1868, %v1867, %v1855
    %v1873 = vld [vmem:[%s5] sm:$0xff]
    %v1874 = vld [vmem:[%s5 + $0x8] sm:$0xff]
    %v1875 = vld [vmem:[%s5 + $0x10] sm:$0xff]
    %v1876 = vld [vmem:[%s5 + $0x18] sm:$0xff]
    %v1877 = vld [vmem:[%s6] sm:$0x1]
    %v1879 = vlaneseq
    %v1880 = vshrl.u32 %v1879, 7
    %v1881 = vsub.s32 0, %v1880
    %v1882 = vrot.slane %v1877, %v1881
    %v1885 = vsel %vm72, %v1869, 0
    %v1888 = vsel %vm72, %v1870, 0
    %v1891 = vsel %vm72, %v1871, 0
    %v1894 = vsel %vm72, %v1872, 0
    %1896 = vmatprep.subr.mxu0 0.0
    %1897 = vmatpush1.msra.mxu0 0.0
    %1898 = vmatprep.subr.mxu0 0.0
    %1899 = vmatpush1.msra.mxu0 0.0
    %1900 = vmatprep.subr.mxu0 0.0
    %1901 = vmatpush1.msra.mxu0 0.0
    %1902 = vmatprep.subr.mxu0 0.0
    %1903 = vmatpush1.msra.mxu0 0.0
    %1904 = vmatprep.subr.mxu0 0.0
    %1905 = vmatpush1.msra.mxu0 0.0
    %1906 = vmatprep.subr.mxu0 0.0
    %1907 = vmatpush1.msra.mxu0 0.0
    %1908 = vmatprep.subr.mxu0 0.0
    %1909 = vmatpush1.msra.mxu0 0.0
    %1910 = vmatprep.subr.mxu0 0.0
    %1911 = vmatpush1.msra.mxu0 0.0
    %1912 = vmatprep.subr.mxu0 0.0
    %1913 = vmatpush1.msra.mxu0 0.0
    %1914 = vmatprep.subr.mxu0 0.0
    %1915 = vmatpush1.msra.mxu0 0.0
    %1916 = vmatprep.subr.mxu0 0.0
    %1917 = vmatpush1.msra.mxu0 0.0
    %1918 = vmatprep.subr.mxu0 0.0
    %1919 = vmatpush1.msra.mxu0 0.0
    %1920 = vmatprep.subr.mxu0 0.0
    %1921 = vmatpush1.msra.mxu0 %v1876
    %1922 = vmatprep.subr.mxu0 0.0
    %1923 = vmatpush1.msra.mxu0 %v1875
    %1924 = vmatprep.subr.mxu0 0.0
    %1925 = vmatpush1.msra.mxu0 %v1874
    %1926 = vmatprep.subr.mxu0 0.0
    %1927 = vmatpush1.msra.mxu0 %v1873
    %1928 = vmatprep.subr.mxu0 0.0
    %1929 = vmatpush2.msra.mxu0 0.0
    %1930 = vmatprep.subr.mxu0 0.0
    %1931 = vmatpush2.msra.mxu0 0.0
    %1932 = vmatprep.subr.mxu0 0.0
    %1933 = vmatpush2.msra.mxu0 0.0
    %1934 = vmatprep.subr.mxu0 0.0
    %1935 = vmatpush2.msra.mxu0 0.0
    %1936 = vmatprep.subr.mxu0 0.0
    %1937 = vmatpush2.msra.mxu0 0.0
    %1938 = vmatprep.subr.mxu0 0.0
    %1939 = vmatpush2.msra.mxu0 0.0
    %1940 = vmatprep.subr.mxu0 0.0
    %1941 = vmatpush2.msra.mxu0 0.0
    %1942 = vmatprep.subr.mxu0 0.0
    %1943 = vmatpush2.msra.mxu0 0.0
    %1944 = vmatprep.subr.mxu0 0.0
    %1945 = vmatpush2.msra.mxu0 0.0
    %1946 = vmatprep.subr.mxu0 0.0
    %1947 = vmatpush2.msra.mxu0 0.0
    %1948 = vmatprep.subr.mxu0 0.0
    %1949 = vmatpush2.msra.mxu0 0.0
    %1950 = vmatprep.subr.mxu0 0.0
    %1951 = vmatpush2.msra.mxu0 0.0
    %1952 = vmatprep.subr.mxu0 0.0
    %1953 = vmatpush2.msra.mxu0 0.0
    %1954 = vmatprep.subr.mxu0 0.0
    %1955 = vmatpush2.msra.mxu0 0.0
    %1956 = vmatprep.subr.mxu0 0.0
    %1957 = vmatpush2.msra.mxu0 0.0
    %1958 = vmatprep.subr.mxu0 0.0
    %1959 = vmatpush2.msra.mxu0 0.0
    %1960 = vmatprep.mubr.f32.mxu0 0.0
    %1961 = vmatmul.mubr.f32.gmra.mxu0 %v1885
    %v1962 = vpop.f32.mrf.mxu0
    %v1963 = vadd.f32 %v1882, %v1962
    %v1964 = vpop.f32.mrf.mxu0
    %1965 = vmatprep.mubr.f32.mxu0 0.0
    %1966 = vmatmul.mubr.f32.gmra.mxu0 %v1888
    %v1967 = vpop.f32.mrf.mxu0
    %v1968 = vadd.f32 %v1882, %v1967
    %v1969 = vpop.f32.mrf.mxu0
    %1970 = vmatprep.mubr.f32.mxu0 0.0
    %1971 = vmatmul.mubr.f32.gmra.mxu0 %v1891
    %v1972 = vpop.f32.mrf.mxu0
    %v1973 = vadd.f32 %v1882, %v1972
    %v1974 = vpop.f32.mrf.mxu0
    %1975 = vmatprep.mubr.f32.mxu0 0.0
    %1976 = vmatmul.mubr.f32.gmra.mxu0 %v1894
    %v1977 = vpop.f32.mrf.mxu0
    %v1978 = vadd.f32 %v1882, %v1977
    %v1979 = vpop.f32.mrf.mxu0
    %1980 = vdwg.mxu0
    %v1981 = vadd.f32 %v51, %v1963
    %v1982 = vadd.f32 %v52, %v1968
    %v1983 = vadd.f32 %v53, %v1973
    %v1984 = vadd.f32 %v54, %v1978
    %v1985 = vsel %vm72, %v1981, 0.0
    %1986 = vadd.xlane.f32.xlu0 %v1985
    %v1987 = vpop.xlane.xlu0 %1986
    %v1988 = vsel %vm72, %v1982, 0.0
    %1989 = vadd.xlane.f32.xlu0 %v1988
    %v1990 = vpop.xlane.xlu0 %1989
    %v1991 = vsel %vm72, %v1983, 0.0
    %1992 = vadd.xlane.f32.xlu0 %v1991
    %v1993 = vpop.xlane.xlu0 %1992
    %v1994 = vsel %vm72, %v1984, 0.0
    %1995 = vadd.xlane.f32.xlu0 %v1994
    %v1996 = vpop.xlane.xlu0 %1995
    %v1997 = vrcp.pop 32.0
    %v1998 = vmul.f32 %v1987, %v1997
    %v1999 = vmul.f32 %v1990, %v1997
    %v2000 = vmul.f32 %v1993, %v1997
    %v2001 = vmul.f32 %v1996, %v1997
    %v2002 = vmul.f32 %v1981, %v1981
    %v2003 = vmul.f32 %v1982, %v1982
    %v2004 = vmul.f32 %v1983, %v1983
    %v2005 = vmul.f32 %v1984, %v1984
    %v2006 = vsel %vm72, %v2002, 0.0
    %2007 = vadd.xlane.f32.xlu0 %v2006
    %v2008 = vpop.xlane.xlu0 %2007
    %v2009 = vsel %vm72, %v2003, 0.0
    %2010 = vadd.xlane.f32.xlu0 %v2009
    %v2011 = vpop.xlane.xlu0 %2010
    %v2012 = vsel %vm72, %v2004, 0.0
    %2013 = vadd.xlane.f32.xlu0 %v2012
    %v2014 = vpop.xlane.xlu0 %2013
    %v2015 = vsel %vm72, %v2005, 0.0
    %2016 = vadd.xlane.f32.xlu0 %v2015
    %v2017 = vpop.xlane.xlu0 %2016
    %v2018 = vmul.f32 %v2008, %v1997
    %v2019 = vmul.f32 %v2011, %v1997
    %v2020 = vmul.f32 %v2014, %v1997
    %v2021 = vmul.f32 %v2017, %v1997
    %v2022 = vmul.f32 %v1998, %v1998
    %v2023 = vmul.f32 %v1999, %v1999
    %v2024 = vmul.f32 %v2000, %v2000
    %v2025 = vmul.f32 %v2001, %v2001
    %v2026 = vsub.f32 %v2018, %v2022
    %v2027 = vsub.f32 %v2019, %v2023
    %v2028 = vsub.f32 %v2020, %v2024
    %v2029 = vsub.f32 %v2021, %v2025
    %v2030 = vsub.f32 %v1981, %v1998
    %v2031 = vsub.f32 %v1982, %v1999
    %v2032 = vsub.f32 %v1983, %v2000
    %v2033 = vsub.f32 %v1984, %v2001
    %v2034 = vadd.f32 %v2026, 1e-05
    %v2035 = vadd.f32 %v2027, 1e-05
    %v2036 = vadd.f32 %v2028, 1e-05
    %v2037 = vadd.f32 %v2029, 1e-05
    %v2038 = vrsqrt.pop %v2034
    %v2039 = vrsqrt.pop %v2035
    %v2040 = vrsqrt.pop %v2036
    %v2041 = vrsqrt.pop %v2037
    %v2042 = vmul.f32 %v2030, %v2038
    %v2043 = vmul.f32 %v2031, %v2039
    %v2044 = vmul.f32 %v2032, %v2040
    %v2045 = vmul.f32 %v2033, %v2041
    %v2046 = vld [vmem:[%s7] sm:$0x1]
    %v2048 = vlaneseq
    %v2049 = vshrl.u32 %v2048, 7
    %v2050 = vsub.s32 0, %v2049
    %v2051 = vrot.slane %v2046, %v2050
    %v2053 = vmul.f32 %v2042, %v2051
    %v2054 = vmul.f32 %v2043, %v2051
    %v2055 = vmul.f32 %v2044, %v2051
    %v2056 = vmul.f32 %v2045, %v2051
    %v2057 = vld [vmem:[%s8] sm:$0x1]
    %v2059 = vlaneseq
    %v2060 = vshrl.u32 %v2059, 7
    %v2061 = vsub.s32 0, %v2060
    %v2062 = vrot.slane %v2057, %v2061
    %v2064 = vadd.f32 %v2053, %v2062
    %v2065 = vadd.f32 %v2054, %v2062
    %v2066 = vadd.f32 %v2055, %v2062
    %v2067 = vadd.f32 %v2056, %v2062
    %vm2068 = vcmp.gt.f32.partialorder %v57, 0.5
    %vm2069 = vcmp.gt.f32.partialorder %v58, 0.5
    %vm2070 = vcmp.gt.f32.partialorder %v59, 0.5
    %vm2071 = vcmp.gt.f32.partialorder %v60, 0.5
    %v2072 = vsel %vm2068, 1, 0
    %v2073 = vsel %vm2069, 1, 0
    %v2074 = vsel %vm2070, 1, 0
    %v2075 = vsel %vm2071, 1, 0
    %2076 = vset.pattern.permute.xlu0 0
    %2077 = vperm.xlu0 %2076, %v2072
    %v2078 = vpop.permute.xlu0 %2077
    %2079 = vset.pattern.permute.xlu0 0
    %2080 = vperm.xlu0 %2079, %v2073
    %v2081 = vpop.permute.xlu0 %2080
    %2082 = vset.pattern.permute.xlu0 0
    %2083 = vperm.xlu0 %2082, %v2074
    %v2084 = vpop.permute.xlu0 %2083
    %2085 = vset.pattern.permute.xlu0 0
    %2086 = vperm.xlu0 %2085, %v2075
    %v2087 = vpop.permute.xlu0 %2086
    %vm2088 = vcmp.eq.s32.totalorder %v2078, 1
    %vm2089 = vcmp.eq.s32.totalorder %v2081, 1
    %vm2090 = vcmp.eq.s32.totalorder %v2084, 1
    %vm2091 = vcmp.eq.s32.totalorder %v2087, 1
    %v2092 = vsel %vm2088, 0.0, %v2064
    %v2093 = vsel %vm2089, 0.0, %v2065
    %v2094 = vsel %vm2090, 0.0, %v2066
    %v2095 = vsel %vm2091, 0.0, %v2067
    %v2096 = vld [vmem:[%s9] sm:$0xff]
    %v2097 = vld [vmem:[%s9 + $0x8] sm:$0xff]
    %v2098 = vld [vmem:[%s9 + $0x10] sm:$0xff]
    %v2099 = vld [vmem:[%s9 + $0x18] sm:$0xff]
    %v2100 = vld [vmem:[%s10] sm:$0x1]
    %v2102 = vlaneseq
    %v2103 = vshrl.u32 %v2102, 7
    %v2104 = vsub.s32 0, %v2103
    %v2105 = vrot.slane %v2100, %v2104
    %v2108 = vsel %vm72, %v2092, 0
    %v2111 = vsel %vm72, %v2093, 0
    %v2114 = vsel %vm72, %v2094, 0
    %v2117 = vsel %vm72, %v2095, 0
    %2119 = vmatprep.subr.mxu0 0.0
    %2120 = vmatpush1.msra.mxu0 0.0
    %2121 = vmatprep.subr.mxu0 0.0
    %2122 = vmatpush1.msra.mxu0 0.0
    %2123 = vmatprep.subr.mxu0 0.0
    %2124 = vmatpush1.msra.mxu0 0.0
    %2125 = vmatprep.subr.mxu0 0.0
    %2126 = vmatpush1.msra.mxu0 0.0
    %2127 = vmatprep.subr.mxu0 0.0
    %2128 = vmatpush1.msra.mxu0 0.0
    %2129 = vmatprep.subr.mxu0 0.0
    %2130 = vmatpush1.msra.mxu0 0.0
    %2131 = vmatprep.subr.mxu0 0.0
    %2132 = vmatpush1.msra.mxu0 0.0
    %2133 = vmatprep.subr.mxu0 0.0
    %2134 = vmatpush1.msra.mxu0 0.0
    %2135 = vmatprep.subr.mxu0 0.0
    %2136 = vmatpush1.msra.mxu0 0.0
    %2137 = vmatprep.subr.mxu0 0.0
    %2138 = vmatpush1.msra.mxu0 0.0
    %2139 = vmatprep.subr.mxu0 0.0
    %2140 = vmatpush1.msra.mxu0 0.0
    %2141 = vmatprep.subr.mxu0 0.0
    %2142 = vmatpush1.msra.mxu0 0.0
    %2143 = vmatprep.subr.mxu0 0.0
    %2144 = vmatpush1.msra.mxu0 %v2099
    %2145 = vmatprep.subr.mxu0 0.0
    %2146 = vmatpush1.msra.mxu0 %v2098
    %2147 = vmatprep.subr.mxu0 0.0
    %2148 = vmatpush1.msra.mxu0 %v2097
    %2149 = vmatprep.subr.mxu0 0.0
    %2150 = vmatpush1.msra.mxu0 %v2096
    %2151 = vmatprep.subr.mxu0 0.0
    %2152 = vmatpush2.msra.mxu0 0.0
    %2153 = vmatprep.subr.mxu0 0.0
    %2154 = vmatpush2.msra.mxu0 0.0
    %2155 = vmatprep.subr.mxu0 0.0
    %2156 = vmatpush2.msra.mxu0 0.0
    %2157 = vmatprep.subr.mxu0 0.0
    %2158 = vmatpush2.msra.mxu0 0.0
    %2159 = vmatprep.subr.mxu0 0.0
    %2160 = vmatpush2.msra.mxu0 0.0
    %2161 = vmatprep.subr.mxu0 0.0
    %2162 = vmatpush2.msra.mxu0 0.0
    %2163 = vmatprep.subr.mxu0 0.0
    %2164 = vmatpush2.msra.mxu0 0.0
    %2165 = vmatprep.subr.mxu0 0.0
    %2166 = vmatpush2.msra.mxu0 0.0
    %2167 = vmatprep.subr.mxu0 0.0
    %2168 = vmatpush2.msra.mxu0 0.0
    %2169 = vmatprep.subr.mxu0 0.0
    %2170 = vmatpush2.msra.mxu0 0.0
    %2171 = vmatprep.subr.mxu0 0.0
    %2172 = vmatpush2.msra.mxu0 0.0
    %2173 = vmatprep.subr.mxu0 0.0
    %2174 = vmatpush2.msra.mxu0 0.0
    %2175 = vmatprep.subr.mxu0 0.0
    %2176 = vmatpush2.msra.mxu0 0.0
    %2177 = vmatprep.subr.mxu0 0.0
    %2178 = vmatpush2.msra.mxu0 0.0
    %2179 = vmatprep.subr.mxu0 0.0
    %2180 = vmatpush2.msra.mxu0 0.0
    %2181 = vmatprep.subr.mxu0 0.0
    %2182 = vmatpush2.msra.mxu0 0.0
    %2183 = vmatprep.mubr.f32.mxu0 0.0
    %2184 = vmatmul.mubr.f32.gmra.mxu0 %v2108
    %v2185 = vpop.f32.mrf.mxu0
    %v2186 = vadd.f32 %v2105, %v2185
    %v2187 = vpop.f32.mrf.mxu0
    %2188 = vmatprep.mubr.f32.mxu0 0.0
    %2189 = vmatmul.mubr.f32.gmra.mxu0 %v2111
    %v2190 = vpop.f32.mrf.mxu0
    %v2191 = vadd.f32 %v2105, %v2190
    %v2192 = vpop.f32.mrf.mxu0
    %2193 = vmatprep.mubr.f32.mxu0 0.0
    %2194 = vmatmul.mubr.f32.gmra.mxu0 %v2114
    %v2195 = vpop.f32.mrf.mxu0
    %v2196 = vadd.f32 %v2105, %v2195
    %v2197 = vpop.f32.mrf.mxu0
    %2198 = vmatprep.mubr.f32.mxu0 0.0
    %2199 = vmatmul.mubr.f32.gmra.mxu0 %v2117
    %v2200 = vpop.f32.mrf.mxu0
    %v2201 = vadd.f32 %v2105, %v2200
    %v2202 = vpop.f32.mrf.mxu0
    %2203 = vdwg.mxu0
    %v2204 = vmax.f32 %v2186, 0.0
    %v2205 = vmax.f32 %v2191, 0.0
    %v2206 = vmax.f32 %v2196, 0.0
    %v2207 = vmax.f32 %v2201, 0.0
    %v2208 = vld [vmem:[%s11] sm:$0xff]
    %v2209 = vld [vmem:[%s11 + $0x8] sm:$0xff]
    %v2210 = vld [vmem:[%s11 + $0x10] sm:$0xff]
    %v2211 = vld [vmem:[%s11 + $0x18] sm:$0xff]
    %v2212 = vld [vmem:[%s11 + $0x20] sm:$0xff]
    %v2213 = vld [vmem:[%s11 + $0x28] sm:$0xff]
    %v2214 = vld [vmem:[%s11 + $0x30] sm:$0xff]
    %v2215 = vld [vmem:[%s11 + $0x38] sm:$0xff]
    %v2216 = vld [vmem:[%s12] sm:$0x1]
    %v2218 = vlaneseq
    %v2219 = vshrl.u32 %v2218, 7
    %v2220 = vsub.s32 0, %v2219
    %v2221 = vrot.slane %v2216, %v2220
    %vm2223 = vcmask 523264
    %v2225 = vsel %vm2223, %v2204, 0
    %v2228 = vsel %vm2223, %v2205, 0
    %v2231 = vsel %vm2223, %v2206, 0
    %v2234 = vsel %vm2223, %v2207, 0
    %2236 = vmatprep.subr.mxu0 0.0
    %2237 = vmatpush1.msra.mxu0 0.0
    %2238 = vmatprep.subr.mxu0 0.0
    %2239 = vmatpush1.msra.mxu0 0.0
    %2240 = vmatprep.subr.mxu0 0.0
    %2241 = vmatpush1.msra.mxu0 0.0
    %2242 = vmatprep.subr.mxu0 0.0
    %2243 = vmatpush1.msra.mxu0 0.0
    %2244 = vmatprep.subr.mxu0 0.0
    %2245 = vmatpush1.msra.mxu0 0.0
    %2246 = vmatprep.subr.mxu0 0.0
    %2247 = vmatpush1.msra.mxu0 0.0
    %2248 = vmatprep.subr.mxu0 0.0
    %2249 = vmatpush1.msra.mxu0 0.0
    %2250 = vmatprep.subr.mxu0 0.0
    %2251 = vmatpush1.msra.mxu0 0.0
    %2252 = vmatprep.subr.mxu0 0.0
    %2253 = vmatpush1.msra.mxu0 %v2215
    %2254 = vmatprep.subr.mxu0 0.0
    %2255 = vmatpush1.msra.mxu0 %v2214
    %2256 = vmatprep.subr.mxu0 0.0
    %2257 = vmatpush1.msra.mxu0 %v2213
    %2258 = vmatprep.subr.mxu0 0.0
    %2259 = vmatpush1.msra.mxu0 %v2212
    %2260 = vmatprep.subr.mxu0 0.0
    %2261 = vmatpush1.msra.mxu0 %v2211
    %2262 = vmatprep.subr.mxu0 0.0
    %2263 = vmatpush1.msra.mxu0 %v2210
    %2264 = vmatprep.subr.mxu0 0.0
    %2265 = vmatpush1.msra.mxu0 %v2209
    %2266 = vmatprep.subr.mxu0 0.0
    %2267 = vmatpush1.msra.mxu0 %v2208
    %2268 = vmatprep.subr.mxu0 0.0
    %2269 = vmatpush2.msra.mxu0 0.0
    %2270 = vmatprep.subr.mxu0 0.0
    %2271 = vmatpush2.msra.mxu0 0.0
    %2272 = vmatprep.subr.mxu0 0.0
    %2273 = vmatpush2.msra.mxu0 0.0
    %2274 = vmatprep.subr.mxu0 0.0
    %2275 = vmatpush2.msra.mxu0 0.0
    %2276 = vmatprep.subr.mxu0 0.0
    %2277 = vmatpush2.msra.mxu0 0.0
    %2278 = vmatprep.subr.mxu0 0.0
    %2279 = vmatpush2.msra.mxu0 0.0
    %2280 = vmatprep.subr.mxu0 0.0
    %2281 = vmatpush2.msra.mxu0 0.0
    %2282 = vmatprep.subr.mxu0 0.0
    %2283 = vmatpush2.msra.mxu0 0.0
    %2284 = vmatprep.subr.mxu0 0.0
    %2285 = vmatpush2.msra.mxu0 0.0
    %2286 = vmatprep.subr.mxu0 0.0
    %2287 = vmatpush2.msra.mxu0 0.0
    %2288 = vmatprep.subr.mxu0 0.0
    %2289 = vmatpush2.msra.mxu0 0.0
    %2290 = vmatprep.subr.mxu0 0.0
    %2291 = vmatpush2.msra.mxu0 0.0
    %2292 = vmatprep.subr.mxu0 0.0
    %2293 = vmatpush2.msra.mxu0 0.0
    %2294 = vmatprep.subr.mxu0 0.0
    %2295 = vmatpush2.msra.mxu0 0.0
    %2296 = vmatprep.subr.mxu0 0.0
    %2297 = vmatpush2.msra.mxu0 0.0
    %2298 = vmatprep.subr.mxu0 0.0
    %2299 = vmatpush2.msra.mxu0 0.0
    %2300 = vmatprep.mubr.f32.mxu0 0.0
    %2301 = vmatmul.mubr.f32.gmra.mxu0 %v2225
    %v2302 = vpop.f32.mrf.mxu0
    %v2303 = vadd.f32 %v2221, %v2302
    %v2304 = vpop.f32.mrf.mxu0
    %2305 = vmatprep.mubr.f32.mxu0 0.0
    %2306 = vmatmul.mubr.f32.gmra.mxu0 %v2228
    %v2307 = vpop.f32.mrf.mxu0
    %v2308 = vadd.f32 %v2221, %v2307
    %v2309 = vpop.f32.mrf.mxu0
    %2310 = vmatprep.mubr.f32.mxu0 0.0
    %2311 = vmatmul.mubr.f32.gmra.mxu0 %v2231
    %v2312 = vpop.f32.mrf.mxu0
    %v2313 = vadd.f32 %v2221, %v2312
    %v2314 = vpop.f32.mrf.mxu0
    %2315 = vmatprep.mubr.f32.mxu0 0.0
    %2316 = vmatmul.mubr.f32.gmra.mxu0 %v2234
    %v2317 = vpop.f32.mrf.mxu0
    %v2318 = vadd.f32 %v2221, %v2317
    %v2319 = vpop.f32.mrf.mxu0
    %2320 = vdwg.mxu0
    %v2321 = vadd.f32 %v2092, %v2303
    %v2322 = vadd.f32 %v2093, %v2308
    %v2323 = vadd.f32 %v2094, %v2313
    %v2324 = vadd.f32 %v2095, %v2318
    %v2325 = vsel %vm72, %v2321, 0.0
    %2326 = vadd.xlane.f32.xlu0 %v2325
    %v2327 = vpop.xlane.xlu0 %2326
    %v2328 = vsel %vm72, %v2322, 0.0
    %2329 = vadd.xlane.f32.xlu0 %v2328
    %v2330 = vpop.xlane.xlu0 %2329
    %v2331 = vsel %vm72, %v2323, 0.0
    %2332 = vadd.xlane.f32.xlu0 %v2331
    %v2333 = vpop.xlane.xlu0 %2332
    %v2334 = vsel %vm72, %v2324, 0.0
    %2335 = vadd.xlane.f32.xlu0 %v2334
    %v2336 = vpop.xlane.xlu0 %2335
    %v2337 = vmul.f32 %v2327, %v1997
    %v2338 = vmul.f32 %v2330, %v1997
    %v2339 = vmul.f32 %v2333, %v1997
    %v2340 = vmul.f32 %v2336, %v1997
    %v2341 = vmul.f32 %v2321, %v2321
    %v2342 = vmul.f32 %v2322, %v2322
    %v2343 = vmul.f32 %v2323, %v2323
    %v2344 = vmul.f32 %v2324, %v2324
    %v2345 = vsel %vm72, %v2341, 0.0
    %2346 = vadd.xlane.f32.xlu0 %v2345
    %v2347 = vpop.xlane.xlu0 %2346
    %v2348 = vsel %vm72, %v2342, 0.0
    %2349 = vadd.xlane.f32.xlu0 %v2348
    %v2350 = vpop.xlane.xlu0 %2349
    %v2351 = vsel %vm72, %v2343, 0.0
    %2352 = vadd.xlane.f32.xlu0 %v2351
    %v2353 = vpop.xlane.xlu0 %2352
    %v2354 = vsel %vm72, %v2344, 0.0
    %2355 = vadd.xlane.f32.xlu0 %v2354
    %v2356 = vpop.xlane.xlu0 %2355
    %v2357 = vmul.f32 %v2347, %v1997
    %v2358 = vmul.f32 %v2350, %v1997
    %v2359 = vmul.f32 %v2353, %v1997
    %v2360 = vmul.f32 %v2356, %v1997
    %v2361 = vmul.f32 %v2337, %v2337
    %v2362 = vmul.f32 %v2338, %v2338
    %v2363 = vmul.f32 %v2339, %v2339
    %v2364 = vmul.f32 %v2340, %v2340
    %v2365 = vsub.f32 %v2357, %v2361
    %v2366 = vsub.f32 %v2358, %v2362
    %v2367 = vsub.f32 %v2359, %v2363
    %v2368 = vsub.f32 %v2360, %v2364
    %v2369 = vsub.f32 %v2321, %v2337
    %v2370 = vsub.f32 %v2322, %v2338
    %v2371 = vsub.f32 %v2323, %v2339
    %v2372 = vsub.f32 %v2324, %v2340
    %v2373 = vadd.f32 %v2365, 1e-05
    %v2374 = vadd.f32 %v2366, 1e-05
    %v2375 = vadd.f32 %v2367, 1e-05
    %v2376 = vadd.f32 %v2368, 1e-05
    %v2377 = vrsqrt.pop %v2373
    %v2378 = vrsqrt.pop %v2374
    %v2379 = vrsqrt.pop %v2375
    %v2380 = vrsqrt.pop %v2376
    %v2381 = vmul.f32 %v2369, %v2377
    %v2382 = vmul.f32 %v2370, %v2378
    %v2383 = vmul.f32 %v2371, %v2379
    %v2384 = vmul.f32 %v2372, %v2380
    %v2385 = vld [vmem:[%s13] sm:$0x1]
    %v2387 = vlaneseq
    %v2388 = vshrl.u32 %v2387, 7
    %v2389 = vsub.s32 0, %v2388
    %v2390 = vrot.slane %v2385, %v2389
    %v2392 = vmul.f32 %v2381, %v2390
    %v2393 = vmul.f32 %v2382, %v2390
    %v2394 = vmul.f32 %v2383, %v2390
    %v2395 = vmul.f32 %v2384, %v2390
    %v2396 = vld [vmem:[%s14] sm:$0x1]
    %v2398 = vlaneseq
    %v2399 = vshrl.u32 %v2398, 7
    %v2400 = vsub.s32 0, %v2399
    %v2401 = vrot.slane %v2396, %v2400
    %v2403 = vadd.f32 %v2392, %v2401
    %v2404 = vadd.f32 %v2393, %v2401
    %v2405 = vadd.f32 %v2394, %v2401
    %v2406 = vadd.f32 %v2395, %v2401
    %2407 = vst.msk [vmem:[#allocation2] sm:$0xff] %vm72, %v2403
    %2408 = vst.msk [vmem:[#allocation2 + $0x8] sm:$0xff] %vm72, %v2404
    %2409 = vst.msk [vmem:[#allocation2 + $0x10] sm:$0xff] %vm72, %v2405
    %2410 = vst.msk [vmem:[#allocation2 + $0x18] sm:$0xff] %vm72, %v2406
    // Predicated region
    $region62: #{cross_modality_encoder_layer.2} parent=1 // pred_check
      _
    $region63: #{cross_modality_encoder_layer.2} parent=1 // pred_check_branch
      %2412 = sbr.rel (0) target = $region65
    $region64: #{cross_modality_encoder_layer.2} parent=1 // pred_region
      %s2414 = ssub.s32 512, 512
      %2415 = vsyncadd [#allocation3], %s2414
      %s2416 = sshll.u32 [#allocation2], 4
      %s2417 = int_to_ptr.vmem [resolvable:$true] %s2416
      %2422 = dma.vmem_to_hbm [thread:$0]  %s2417, 512, %s15, [#allocation3], 128, 128, 8
    $region65: #{cross_modality_encoder_layer.2} parent=1 // pred_fallthru
      _
    // Predicated region
    $region66: #{cross_modality_encoder_layer.2} parent=1 // pred_check
      _
    $region67: #{cross_modality_encoder_layer.2} parent=1 // pred_check_branch
      %2424 = sbr.rel (0) target = $region69
    $region68: #{cross_modality_encoder_layer.2} parent=1 // pred_region
      %2425 = dma.done [#allocation3], 512
    $region69: #{cross_modality_encoder_layer.2} parent=1 // pred_fallthru
      _
    %2426 = vsyncpa [#allocation3], 1

</llo_original>
